<compile_context>
chip_gen: v6e
topology: v6e:2x2x1
jax: 0.10.0
libtpu: 0.0.40
codegen_flags: <defaults>
</compile_context>

<pallas_src>
import functools

import jax
import jax.numpy as jnp
from jax.experimental import pallas as pl
from jax.experimental.pallas import tpu as pltpu


# ----------------------------- kernel helpers ------------------------------ #

def _conv3x3_relu_from_padded(pad_ref, w_ref, b_ref, H, W, Cin):
    """3x3 'valid' conv over a zero-padded VMEM scratch (H+2, W+2, Cin).

    Implemented as 9 accumulated matmuls (one per tap) over shifted slices of
    the VMEM-resident padded input -- no im2col tensor is ever materialized.
    Operands are cast to bf16 for the MXU; accumulation is f32.
    Returns relu(conv + bias) as an (H*W, Cout) f32 value.
    """
    Cout = w_ref.shape[2]
    acc = jnp.zeros((H * W, Cout), jnp.float32)
    for ky in range(3):
        for kx in range(3):
            xs = pad_ref[ky:ky + H, kx:kx + W, :].reshape(H * W, Cin)
            acc = acc + jnp.dot(xs.astype(jnp.bfloat16), w_ref[ky * 3 + kx],
                                preferred_element_type=jnp.float32)
    return jnp.maximum(acc + b_ref[...], 0.0)


def _maxpool2x2(a, pool_ref, H, W, C):
    """2x2 / stride-2 max pool of an (H*W, C) f32 value -> (H/2*W/2, C) f32.

    H-direction: tile-aligned reshape (free relabel) + max over the pair axis.
    W-direction: write the half-pooled tensor to a VMEM scratch and read the
    even-/odd-column rows back with a sublane-strided slice (stride=2).
    Rows of the result are in (h, w) raster order; channels stay on lanes.
    """
    Ho, Wo = H // 2, W // 2
    a4 = a.reshape(Ho, 2, W, C)                      # split row pairs (free)
    hmax = jnp.maximum(a4[:, 0], a4[:, 1])           # (Ho, W, C)
    pool_ref[0:Ho * W, :] = hmax.reshape(Ho * W, C)  # collapse (free)
    even = pool_ref[pl.ds(0, Ho * Wo, 2), :]         # columns 0,2,4,...
    odd = pool_ref[pl.ds(1, Ho * Wo, 2), :]          # columns 1,3,5,...
    return jnp.maximum(even, odd)                    # (Ho*Wo, C)


def _fused_cnn_kernel(x_ref, w1_ref, b1_ref, w2_ref, b2_ref,
                      fc1w_ref, fc1b_ref, fc2w_ref, fc2b_ref,
                      o_ref, pad1, pad2, pool1, pool2,
                      *, H, W, C0, C1):
    """Whole forward pass for one batch element (grid axis = batch)."""
    H2, W2 = H // 2, W // 2
    H3, W3 = H // 4, W // 4

    # ----- layer1: conv3x3(pad=1) + ReLU + maxpool2 (all in VMEM) -----
    pad1[...] = jnp.zeros(pad1.shape, dtype=pad1.dtype)
    pad1[1:H + 1, 1:W + 1, :] = x_ref[0].astype(pad1.dtype)
    a1 = _conv3x3_relu_from_padded(pad1, w1_ref, b1_ref, H, W, C0)
    p1 = _maxpool2x2(a1, pool1, H, W, C1)            # (H2*W2, C1)

    # ----- layer2: conv3x3(pad=1) + ReLU + maxpool2 -----
    pad2[...] = jnp.zeros(pad2.shape, dtype=pad2.dtype)
    pad2[1:H2 + 1, 1:W2 + 1, :] = p1.reshape(H2, W2, C1)
    a2 = _conv3x3_relu_from_padded(pad2, w2_ref, b2_ref, H2, W2, C1)
    p2 = _maxpool2x2(a2, pool2, H2, W2, C1)          # (H3*W3, C1)

    # ----- head: Linear(fc_in,128) + ReLU + Linear(128,out_dim) -----
    # fc1 weights were pre-permuted (host side) to (H3*W3, C1, 128) so that the
    # flatten happens implicitly: no in-kernel transpose/relayout is needed.
    h = fc1b_ref[...]                                # (1, 128) f32
    for r in range(H3 * W3):
        h = h + jnp.dot(p2[r:r + 1, :].astype(jnp.bfloat16), fc1w_ref[r],
                        preferred_element_type=jnp.float32)
    h = jnp.maximum(h, 0.0)
    out = jnp.dot(h.astype(jnp.bfloat16), fc2w_ref[...],
                  preferred_element_type=jnp.float32) + fc2b_ref[...]
    o_ref[0] = out.astype(o_ref.dtype)


# ------------------------------- model glue -------------------------------- #

def init_params(key, input_dim, hidden_units, output_dim, H, W):
    """Master parameters in PyTorch-equivalent layout, f32."""
    ks = jax.random.split(key, 8)
    fc_in = hidden_units * (H // 4) * (W // 4)
    s = lambda fan_in: 1.0 / jnp.sqrt(fan_in)
    return {
        "conv1_w": jax.random.normal(ks[0], (hidden_units, input_dim, 3, 3),
                                     jnp.float32) * s(input_dim * 9),
        "conv1_b": jax.random.normal(ks[1], (hidden_units,), jnp.float32) * 0.01,
        "conv2_w": jax.random.normal(ks[2], (hidden_units, hidden_units, 3, 3),
                                     jnp.float32) * s(hidden_units * 9),
        "conv2_b": jax.random.normal(ks[3], (hidden_units,), jnp.float32) * 0.01,
        # Stored as (in_features, out_features); in_features in torch (C,H,W)
        # flatten order.
        "fc1_w": jax.random.normal(ks[4], (fc_in, 128), jnp.float32) * s(fc_in),
        "fc1_b": jax.random.normal(ks[5], (128,), jnp.float32) * 0.01,
        "fc2_w": jax.random.normal(ks[6], (128, output_dim), jnp.float32) * s(128),
        "fc2_b": jax.random.normal(ks[7], (output_dim,), jnp.float32) * 0.01,
    }


def prepare_params(params, H, W):
    """One-time host-side weight re-layout for the fused kernel.

    * conv weights -> (9 taps, Cin, Cout)
    * fc1 rows permuted from torch (c, h, w) flatten order to the kernel's
      (h*w row, c) order and reshaped to (H3*W3, C1, 128)
    * matmul operands cast to bf16 (biases stay f32).
    """
    C1 = params["conv1_b"].shape[0]
    H3, W3 = H // 4, W // 4
    w1 = jnp.transpose(params["conv1_w"], (2, 3, 1, 0)).reshape(9, -1, C1)
    w2 = jnp.transpose(params["conv2_w"], (2, 3, 1, 0)).reshape(9, C1, C1)
    fc1w = params["fc1_w"].reshape(C1, H3 * W3, -1)
    fc1w = jnp.transpose(fc1w, (1, 0, 2))            # (H3*W3, C1, 128)
    return {
        "w1": w1.astype(jnp.bfloat16),
        "b1": params["conv1_b"].reshape(1, -1).astype(jnp.float32),
        "w2": w2.astype(jnp.bfloat16),
        "b2": params["conv2_b"].reshape(1, -1).astype(jnp.float32),
        "fc1_w": fc1w.astype(jnp.bfloat16),
        "fc1_b": params["fc1_b"].reshape(1, -1).astype(jnp.float32),
        "fc2_w": params["fc2_w"].astype(jnp.bfloat16),
        "fc2_b": params["fc2_b"].reshape(1, -1).astype(jnp.float32),
    }


def cnn_forward(x_nchw, kp):
    N, C0, H, W = x_nchw.shape
    C1 = kp["b1"].shape[1]
    fc_hid = kp["fc1_b"].shape[1]
    out_dim = kp["fc2_b"].shape[1]
    H2, W2 = H // 2, W // 2
    H3, W3 = H // 4, W // 4

    # NCHW -> NHWC (channels on lanes inside the kernel), bf16 MXU operand.
    x = jnp.transpose(x_nchw, (0, 2, 3, 1)).astype(jnp.bfloat16)

    kernel = functools.partial(_fused_cnn_kernel, H=H, W=W, C0=C0, C1=C1)
    out3 = pl.pallas_call(
        kernel,
        out_shape=jax.ShapeDtypeStruct((N, 1, out_dim), jnp.float32),
        grid=(N,),
        in_specs=[
            pl.BlockSpec((1, H, W, C0), lambda n: (n, 0, 0, 0)),
            pl.BlockSpec((9, C0, C1), lambda n: (0, 0, 0)),
            pl.BlockSpec((1, C1), lambda n: (0, 0)),
            pl.BlockSpec((9, C1, C1), lambda n: (0, 0, 0)),
            pl.BlockSpec((1, C1), lambda n: (0, 0)),
            pl.BlockSpec((H3 * W3, C1, fc_hid), lambda n: (0, 0, 0)),
            pl.BlockSpec((1, fc_hid), lambda n: (0, 0)),
            pl.BlockSpec((fc_hid, out_dim), lambda n: (0, 0)),
            pl.BlockSpec((1, out_dim), lambda n: (0, 0)),
        ],
        out_specs=pl.BlockSpec((1, 1, out_dim), lambda n: (n, 0, 0)),
        scratch_shapes=[
            pltpu.VMEM((H + 2, W + 2, C0), jnp.float32),       # padded layer1 input
            pltpu.VMEM((H2 + 2, W2 + 2, C1), jnp.float32),     # padded layer2 input
            pltpu.VMEM((H2 * W + 8, C1), jnp.float32),         # pool1 staging
            pltpu.VMEM((H3 * W2 + 8, C1), jnp.float32),        # pool2 staging
        ],
        compiler_params=pltpu.CompilerParams(
            dimension_semantics=("parallel",)),
    )(x, kp["w1"], kp["b1"], kp["w2"], kp["b2"],
      kp["fc1_w"], kp["fc1_b"], kp["fc2_w"], kp["fc2_b"])
    return out3.reshape(N, out_dim)


if __name__ == "__main__":
    # Small shapes: batch=2, input_dim=4, spatial=16x16, hidden_units=8, classes=10.
    N, Cin, H, W = 2, 4, 16, 16
    hidden_units, output_dim = 8, 10

    key = jax.random.PRNGKey(0)
    k_x, k_p = jax.random.split(key)
    x = jax.random.normal(k_x, (N, Cin, H, W), jnp.float32)
    params = init_params(k_p, Cin, hidden_units, output_dim, H, W)
    kp = prepare_params(params, H, W)      # one-time host-side re-layout

    out = jax.jit(cnn_forward)(x, kp)
    out = jax.block_until_ready(out)
    assert out.shape == (N, output_dim), out.shape
    print("KERNEL_OK")
</pallas_src>

<mosaic_0001>
module attributes {stable_mosaic.version = 11 : i64} {
  func.func @_fused_cnn_kernel(%arg0: i32, %arg1: memref<1x16x16x4xbf16, #tpu.memory_space<vmem>>, %arg2: memref<9x4x8xbf16, #tpu.memory_space<vmem>>, %arg3: memref<1x8xf32, #tpu.memory_space<vmem>>, %arg4: memref<9x8x8xbf16, #tpu.memory_space<vmem>>, %arg5: memref<1x8xf32, #tpu.memory_space<vmem>>, %arg6: memref<16x8x128xbf16, #tpu.memory_space<vmem>>, %arg7: memref<1x128xf32, #tpu.memory_space<vmem>>, %arg8: memref<128x10xbf16, #tpu.memory_space<vmem>>, %arg9: memref<1x10xf32, #tpu.memory_space<vmem>>, %arg10: memref<1x1x10xf32, #tpu.memory_space<vmem>>, %arg11: memref<18x18x4xf32, #tpu.memory_space<vmem>>, %arg12: memref<10x10x8xf32, #tpu.memory_space<vmem>>, %arg13: memref<136x8xf32, #tpu.memory_space<vmem>>, %arg14: memref<40x8xf32, #tpu.memory_space<vmem>>) attributes {dimension_semantics = [#tpu.dimension_semantics<parallel>], iteration_bounds = array<i64: 2>, scalar_prefetch = 0 : i64, scratch_operands = 4 : i64, tpu.core_type = #tpu.core_type<tc>, window_params = [{transform_indices = @transform_0, window_bounds = array<i64: 1, 16, 16, 4>}, {pipeline_mode = #tpu.pipeline_mode<synchronous>, transform_indices = @transform_1, window_bounds = array<i64: 9, 4, 8>}, {pipeline_mode = #tpu.pipeline_mode<synchronous>, transform_indices = @transform_2, window_bounds = array<i64: 1, 8>}, {pipeline_mode = #tpu.pipeline_mode<synchronous>, transform_indices = @transform_3, window_bounds = array<i64: 9, 8, 8>}, {pipeline_mode = #tpu.pipeline_mode<synchronous>, transform_indices = @transform_4, window_bounds = array<i64: 1, 8>}, {pipeline_mode = #tpu.pipeline_mode<synchronous>, transform_indices = @transform_5, window_bounds = array<i64: 16, 8, 128>}, {pipeline_mode = #tpu.pipeline_mode<synchronous>, transform_indices = @transform_6, window_bounds = array<i64: 1, 128>}, {pipeline_mode = #tpu.pipeline_mode<synchronous>, transform_indices = @transform_7, window_bounds = array<i64: 128, 10>}, {pipeline_mode = #tpu.pipeline_mode<synchronous>, transform_indices = @transform_8, window_bounds = array<i64: 1, 10>}, {transform_indices = @transform_9, window_bounds = array<i64: 1, 1, 10>}]} {
    %cst = arith.constant 0.000000e+00 : f32
    %0 = vector.broadcast %cst : f32 to vector<18x18x4xf32>
    %c0 = arith.constant 0 : index
    %c0_0 = arith.constant 0 : index
    %c0_1 = arith.constant 0 : index
    %1 = vector.load %arg11[%c0, %c0_0, %c0_1] : memref<18x18x4xf32, #tpu.memory_space<vmem>>, vector<18x18x4xf32>
    tpu.vector_store %arg11[%c0, %c0_0, %c0_1], %0 {strides = array<i32>} : memref<18x18x4xf32, #tpu.memory_space<vmem>>, vector<18x18x4xf32>,
    %c0_2 = arith.constant 0 : index
    %c0_3 = arith.constant 0 : index
    %c0_4 = arith.constant 0 : index
    %c0_5 = arith.constant 0 : index
    %2 = vector.load %arg1[%c0_2, %c0_3, %c0_4, %c0_5] : memref<1x16x16x4xbf16, #tpu.memory_space<vmem>>, vector<1x16x16x4xbf16>
    %3 = vector.shape_cast %2 : vector<1x16x16x4xbf16> to vector<16x16x4xbf16>
    %4 = arith.extf %3 : vector<16x16x4xbf16> to vector<16x16x4xf32>
    %c1 = arith.constant 1 : index
    %c1_6 = arith.constant 1 : index
    %c0_7 = arith.constant 0 : index
    %5 = vector.load %arg11[%c1, %c1_6, %c0_7] : memref<18x18x4xf32, #tpu.memory_space<vmem>>, vector<16x16x4xf32>
    tpu.vector_store %arg11[%c1, %c1_6, %c0_7], %4 {strides = array<i32>} : memref<18x18x4xf32, #tpu.memory_space<vmem>>, vector<16x16x4xf32>,
    %cst_8 = arith.constant 0.000000e+00 : f32
    %6 = vector.broadcast %cst_8 : f32 to vector<256x8xf32>
    %c0_9 = arith.constant 0 : index
    %c0_10 = arith.constant 0 : index
    %c0_11 = arith.constant 0 : index
    %7 = vector.load %arg11[%c0_9, %c0_10, %c0_11] : memref<18x18x4xf32, #tpu.memory_space<vmem>>, vector<16x16x4xf32>
    %8 = vector.shape_cast %7 : vector<16x16x4xf32> to vector<256x4xf32>
    %9 = arith.truncf %8 : vector<256x4xf32> to vector<256x4xbf16>
    %c0_12 = arith.constant 0 : index
    %c0_13 = arith.constant 0 : index
    %c0_14 = arith.constant 0 : index
    %10 = vector.load %arg2[%c0_12, %c0_13, %c0_14] : memref<9x4x8xbf16, #tpu.memory_space<vmem>>, vector<1x4x8xbf16>
    %11 = vector.shape_cast %10 : vector<1x4x8xbf16> to vector<4x8xbf16>
    %cst_15 = arith.constant dense<0.000000e+00> : vector<256x8xf32>
    %12 = tpu.matmul %9, %11, %cst_15 {dimension_numbers = #tpu.dot_dimension_numbers<[1], [0], [0], [1], [0, 0, 1, 1], [], []>} : vector<256x4xbf16>, vector<4x8xbf16>, vector<256x8xf32> -> vector<256x8xf32>
    %13 = arith.addf %6, %12 : vector<256x8xf32>
    %c0_16 = arith.constant 0 : index
    %c1_17 = arith.constant 1 : index
    %c0_18 = arith.constant 0 : index
    %14 = vector.load %arg11[%c0_16, %c1_17, %c0_18] : memref<18x18x4xf32, #tpu.memory_space<vmem>>, vector<16x16x4xf32>
    %15 = vector.shape_cast %14 : vector<16x16x4xf32> to vector<256x4xf32>
    %16 = arith.truncf %15 : vector<256x4xf32> to vector<256x4xbf16>
    %c1_19 = arith.constant 1 : index
    %c0_20 = arith.constant 0 : index
    %c0_21 = arith.constant 0 : index
    %17 = vector.load %arg2[%c1_19, %c0_20, %c0_21] : memref<9x4x8xbf16, #tpu.memory_space<vmem>>, vector<1x4x8xbf16>
    %18 = vector.shape_cast %17 : vector<1x4x8xbf16> to vector<4x8xbf16>
    %cst_22 = arith.constant dense<0.000000e+00> : vector<256x8xf32>
    %19 = tpu.matmul %16, %18, %cst_22 {dimension_numbers = #tpu.dot_dimension_numbers<[1], [0], [0], [1], [0, 0, 1, 1], [], []>} : vector<256x4xbf16>, vector<4x8xbf16>, vector<256x8xf32> -> vector<256x8xf32>
    %20 = arith.addf %13, %19 : vector<256x8xf32>
    %c0_23 = arith.constant 0 : index
    %c2 = arith.constant 2 : index
    %c0_24 = arith.constant 0 : index
    %21 = vector.load %arg11[%c0_23, %c2, %c0_24] : memref<18x18x4xf32, #tpu.memory_space<vmem>>, vector<16x16x4xf32>
    %22 = vector.shape_cast %21 : vector<16x16x4xf32> to vector<256x4xf32>
    %23 = arith.truncf %22 : vector<256x4xf32> to vector<256x4xbf16>
    %c2_25 = arith.constant 2 : index
    %c0_26 = arith.constant 0 : index
    %c0_27 = arith.constant 0 : index
    %24 = vector.load %arg2[%c2_25, %c0_26, %c0_27] : memref<9x4x8xbf16, #tpu.memory_space<vmem>>, vector<1x4x8xbf16>
    %25 = vector.shape_cast %24 : vector<1x4x8xbf16> to vector<4x8xbf16>
    %cst_28 = arith.constant dense<0.000000e+00> : vector<256x8xf32>
    %26 = tpu.matmul %23, %25, %cst_28 {dimension_numbers = #tpu.dot_dimension_numbers<[1], [0], [0], [1], [0, 0, 1, 1], [], []>} : vector<256x4xbf16>, vector<4x8xbf16>, vector<256x8xf32> -> vector<256x8xf32>
    %27 = arith.addf %20, %26 : vector<256x8xf32>
    %c1_29 = arith.constant 1 : index
    %c0_30 = arith.constant 0 : index
    %c0_31 = arith.constant 0 : index
    %28 = vector.load %arg11[%c1_29, %c0_30, %c0_31] : memref<18x18x4xf32, #tpu.memory_space<vmem>>, vector<16x16x4xf32>
    %29 = vector.shape_cast %28 : vector<16x16x4xf32> to vector<256x4xf32>
    %30 = arith.truncf %29 : vector<256x4xf32> to vector<256x4xbf16>
    %c3 = arith.constant 3 : index
    %c0_32 = arith.constant 0 : index
    %c0_33 = arith.constant 0 : index
    %31 = vector.load %arg2[%c3, %c0_32, %c0_33] : memref<9x4x8xbf16, #tpu.memory_space<vmem>>, vector<1x4x8xbf16>
    %32 = vector.shape_cast %31 : vector<1x4x8xbf16> to vector<4x8xbf16>
    %cst_34 = arith.constant dense<0.000000e+00> : vector<256x8xf32>
    %33 = tpu.matmul %30, %32, %cst_34 {dimension_numbers = #tpu.dot_dimension_numbers<[1], [0], [0], [1], [0, 0, 1, 1], [], []>} : vector<256x4xbf16>, vector<4x8xbf16>, vector<256x8xf32> -> vector<256x8xf32>
    %34 = arith.addf %27, %33 : vector<256x8xf32>
    %c1_35 = arith.constant 1 : index
    %c1_36 = arith.constant 1 : index
    %c0_37 = arith.constant 0 : index
    %35 = vector.load %arg11[%c1_35, %c1_36, %c0_37] : memref<18x18x4xf32, #tpu.memory_space<vmem>>, vector<16x16x4xf32>
    %36 = vector.shape_cast %35 : vector<16x16x4xf32> to vector<256x4xf32>
    %37 = arith.truncf %36 : vector<256x4xf32> to vector<256x4xbf16>
    %c4 = arith.constant 4 : index
    %c0_38 = arith.constant 0 : index
    %c0_39 = arith.constant 0 : index
    %38 = vector.load %arg2[%c4, %c0_38, %c0_39] : memref<9x4x8xbf16, #tpu.memory_space<vmem>>, vector<1x4x8xbf16>
    %39 = vector.shape_cast %38 : vector<1x4x8xbf16> to vector<4x8xbf16>
    %cst_40 = arith.constant dense<0.000000e+00> : vector<256x8xf32>
    %40 = tpu.matmul %37, %39, %cst_40 {dimension_numbers = #tpu.dot_dimension_numbers<[1], [0], [0], [1], [0, 0, 1, 1], [], []>} : vector<256x4xbf16>, vector<4x8xbf16>, vector<256x8xf32> -> vector<256x8xf32>
    %41 = arith.addf %34, %40 : vector<256x8xf32>
    %c1_41 = arith.constant 1 : index
    %c2_42 = arith.constant 2 : index
    %c0_43 = arith.constant 0 : index
    %42 = vector.load %arg11[%c1_41, %c2_42, %c0_43] : memref<18x18x4xf32, #tpu.memory_space<vmem>>, vector<16x16x4xf32>
    %43 = vector.shape_cast %42 : vector<16x16x4xf32> to vector<256x4xf32>
    %44 = arith.truncf %43 : vector<256x4xf32> to vector<256x4xbf16>
    %c5 = arith.constant 5 : index
    %c0_44 = arith.constant 0 : index
    %c0_45 = arith.constant 0 : index
    %45 = vector.load %arg2[%c5, %c0_44, %c0_45] : memref<9x4x8xbf16, #tpu.memory_space<vmem>>, vector<1x4x8xbf16>
    %46 = vector.shape_cast %45 : vector<1x4x8xbf16> to vector<4x8xbf16>
    %cst_46 = arith.constant dense<0.000000e+00> : vector<256x8xf32>
    %47 = tpu.matmul %44, %46, %cst_46 {dimension_numbers = #tpu.dot_dimension_numbers<[1], [0], [0], [1], [0, 0, 1, 1], [], []>} : vector<256x4xbf16>, vector<4x8xbf16>, vector<256x8xf32> -> vector<256x8xf32>
    %48 = arith.addf %41, %47 : vector<256x8xf32>
    %c2_47 = arith.constant 2 : index
    %c0_48 = arith.constant 0 : index
    %c0_49 = arith.constant 0 : index
    %49 = vector.load %arg11[%c2_47, %c0_48, %c0_49] : memref<18x18x4xf32, #tpu.memory_space<vmem>>, vector<16x16x4xf32>
    %50 = vector.shape_cast %49 : vector<16x16x4xf32> to vector<256x4xf32>
    %51 = arith.truncf %50 : vector<256x4xf32> to vector<256x4xbf16>
    %c6 = arith.constant 6 : index
    %c0_50 = arith.constant 0 : index
    %c0_51 = arith.constant 0 : index
    %52 = vector.load %arg2[%c6, %c0_50, %c0_51] : memref<9x4x8xbf16, #tpu.memory_space<vmem>>, vector<1x4x8xbf16>
    %53 = vector.shape_cast %52 : vector<1x4x8xbf16> to vector<4x8xbf16>
    %cst_52 = arith.constant dense<0.000000e+00> : vector<256x8xf32>
    %54 = tpu.matmul %51, %53, %cst_52 {dimension_numbers = #tpu.dot_dimension_numbers<[1], [0], [0], [1], [0, 0, 1, 1], [], []>} : vector<256x4xbf16>, vector<4x8xbf16>, vector<256x8xf32> -> vector<256x8xf32>
    %55 = arith.addf %48, %54 : vector<256x8xf32>
    %c2_53 = arith.constant 2 : index
    %c1_54 = arith.constant 1 : index
    %c0_55 = arith.constant 0 : index
    %56 = vector.load %arg11[%c2_53, %c1_54, %c0_55] : memref<18x18x4xf32, #tpu.memory_space<vmem>>, vector<16x16x4xf32>
    %57 = vector.shape_cast %56 : vector<16x16x4xf32> to vector<256x4xf32>
    %58 = arith.truncf %57 : vector<256x4xf32> to vector<256x4xbf16>
    %c7 = arith.constant 7 : index
    %c0_56 = arith.constant 0 : index
    %c0_57 = arith.constant 0 : index
    %59 = vector.load %arg2[%c7, %c0_56, %c0_57] : memref<9x4x8xbf16, #tpu.memory_space<vmem>>, vector<1x4x8xbf16>
    %60 = vector.shape_cast %59 : vector<1x4x8xbf16> to vector<4x8xbf16>
    %cst_58 = arith.constant dense<0.000000e+00> : vector<256x8xf32>
    %61 = tpu.matmul %58, %60, %cst_58 {dimension_numbers = #tpu.dot_dimension_numbers<[1], [0], [0], [1], [0, 0, 1, 1], [], []>} : vector<256x4xbf16>, vector<4x8xbf16>, vector<256x8xf32> -> vector<256x8xf32>
    %62 = arith.addf %55, %61 : vector<256x8xf32>
    %c2_59 = arith.constant 2 : index
    %c2_60 = arith.constant 2 : index
    %c0_61 = arith.constant 0 : index
    %63 = vector.load %arg11[%c2_59, %c2_60, %c0_61] : memref<18x18x4xf32, #tpu.memory_space<vmem>>, vector<16x16x4xf32>
    %64 = vector.shape_cast %63 : vector<16x16x4xf32> to vector<256x4xf32>
    %65 = arith.truncf %64 : vector<256x4xf32> to vector<256x4xbf16>
    %c8 = arith.constant 8 : index
    %c0_62 = arith.constant 0 : index
    %c0_63 = arith.constant 0 : index
    %66 = vector.load %arg2[%c8, %c0_62, %c0_63] : memref<9x4x8xbf16, #tpu.memory_space<vmem>>, vector<1x4x8xbf16>
    %67 = vector.shape_cast %66 : vector<1x4x8xbf16> to vector<4x8xbf16>
    %cst_64 = arith.constant dense<0.000000e+00> : vector<256x8xf32>
    %68 = tpu.matmul %65, %67, %cst_64 {dimension_numbers = #tpu.dot_dimension_numbers<[1], [0], [0], [1], [0, 0, 1, 1], [], []>} : vector<256x4xbf16>, vector<4x8xbf16>, vector<256x8xf32> -> vector<256x8xf32>
    %69 = arith.addf %62, %68 : vector<256x8xf32>
    %c0_65 = arith.constant 0 : index
    %c0_66 = arith.constant 0 : index
    %70 = vector.load %arg3[%c0_65, %c0_66] : memref<1x8xf32, #tpu.memory_space<vmem>>, vector<1x8xf32>
    %71 = vector.broadcast %70 : vector<1x8xf32> to vector<256x8xf32>
    %72 = arith.addf %69, %71 : vector<256x8xf32>
    %cst_67 = arith.constant 0.000000e+00 : f32
    %73 = vector.broadcast %cst_67 : f32 to vector<256x8xf32>
    %74 = arith.maximumf %72, %73 : vector<256x8xf32>
    %75 = vector.shape_cast %74 : vector<256x8xf32> to vector<8x2x16x8xf32>
    %76 = vector.extract_strided_slice %75 {offsets = [0, 0, 0, 0], sizes = [8, 1, 16, 8], strides = [1, 1, 1, 1]} : vector<8x2x16x8xf32> to vector<8x1x16x8xf32>
    %77 = vector.shape_cast %76 : vector<8x1x16x8xf32> to vector<8x16x8xf32>
    %78 = vector.extract_strided_slice %75 {offsets = [0, 1, 0, 0], sizes = [8, 1, 16, 8], strides = [1, 1, 1, 1]} : vector<8x2x16x8xf32> to vector<8x1x16x8xf32>
    %79 = vector.shape_cast %78 : vector<8x1x16x8xf32> to vector<8x16x8xf32>
    %80 = arith.maximumf %77, %79 : vector<8x16x8xf32>
    %81 = vector.shape_cast %80 : vector<8x16x8xf32> to vector<128x8xf32>
    %c0_68 = arith.constant 0 : index
    %c0_69 = arith.constant 0 : index
    %82 = vector.load %arg13[%c0_68, %c0_69] : memref<136x8xf32, #tpu.memory_space<vmem>>, vector<128x8xf32>
    tpu.vector_store %arg13[%c0_68, %c0_69], %81 {strides = array<i32>} : memref<136x8xf32, #tpu.memory_space<vmem>>, vector<128x8xf32>,
    %c0_70 = arith.constant 0 : index
    %c0_71 = arith.constant 0 : index
    %83 = tpu.strided_load %arg13[%c0_70, %c0_71] {strides = array<i32: 2, 1>} : memref<136x8xf32, #tpu.memory_space<vmem>>, vector<64x8xf32>
    %c1_72 = arith.constant 1 : index
    %c0_73 = arith.constant 0 : index
    %84 = tpu.strided_load %arg13[%c1_72, %c0_73] {strides = array<i32: 2, 1>} : memref<136x8xf32, #tpu.memory_space<vmem>>, vector<64x8xf32>
    %85 = arith.maximumf %83, %84 : vector<64x8xf32>
    %cst_74 = arith.constant 0.000000e+00 : f32
    %86 = vector.broadcast %cst_74 : f32 to vector<10x10x8xf32>
    %c0_75 = arith.constant 0 : index
    %c0_76 = arith.constant 0 : index
    %c0_77 = arith.constant 0 : index
    %87 = vector.load %arg12[%c0_75, %c0_76, %c0_77] : memref<10x10x8xf32, #tpu.memory_space<vmem>>, vector<10x10x8xf32>
    tpu.vector_store %arg12[%c0_75, %c0_76, %c0_77], %86 {strides = array<i32>} : memref<10x10x8xf32, #tpu.memory_space<vmem>>, vector<10x10x8xf32>,
    %88 = vector.shape_cast %85 : vector<64x8xf32> to vector<8x8x8xf32>
    %c1_78 = arith.constant 1 : index
    %c1_79 = arith.constant 1 : index
    %c0_80 = arith.constant 0 : index
    %89 = vector.load %arg12[%c1_78, %c1_79, %c0_80] : memref<10x10x8xf32, #tpu.memory_space<vmem>>, vector<8x8x8xf32>
    tpu.vector_store %arg12[%c1_78, %c1_79, %c0_80], %88 {strides = array<i32>} : memref<10x10x8xf32, #tpu.memory_space<vmem>>, vector<8x8x8xf32>,
    %cst_81 = arith.constant 0.000000e+00 : f32
    %90 = vector.broadcast %cst_81 : f32 to vector<64x8xf32>
    %c0_82 = arith.constant 0 : index
    %c0_83 = arith.constant 0 : index
    %c0_84 = arith.constant 0 : index
    %91 = vector.load %arg12[%c0_82, %c0_83, %c0_84] : memref<10x10x8xf32, #tpu.memory_space<vmem>>, vector<8x8x8xf32>
    %92 = vector.shape_cast %91 : vector<8x8x8xf32> to vector<64x8xf32>
    %93 = arith.truncf %92 : vector<64x8xf32> to vector<64x8xbf16>
    %c0_85 = arith.constant 0 : index
    %c0_86 = arith.constant 0 : index
    %c0_87 = arith.constant 0 : index
    %94 = vector.load %arg4[%c0_85, %c0_86, %c0_87] : memref<9x8x8xbf16, #tpu.memory_space<vmem>>, vector<1x8x8xbf16>
    %95 = vector.shape_cast %94 : vector<1x8x8xbf16> to vector<8x8xbf16>
    %cst_88 = arith.constant dense<0.000000e+00> : vector<64x8xf32>
    %96 = tpu.matmul %93, %95, %cst_88 {dimension_numbers = #tpu.dot_dimension_numbers<[1], [0], [0], [1], [0, 0, 1, 1], [], []>} : vector<64x8xbf16>, vector<8x8xbf16>, vector<64x8xf32> -> vector<64x8xf32>
    %97 = arith.addf %90, %96 : vector<64x8xf32>
    %c0_89 = arith.constant 0 : index
    %c1_90 = arith.constant 1 : index
    %c0_91 = arith.constant 0 : index
    %98 = vector.load %arg12[%c0_89, %c1_90, %c0_91] : memref<10x10x8xf32, #tpu.memory_space<vmem>>, vector<8x8x8xf32>
    %99 = vector.shape_cast %98 : vector<8x8x8xf32> to vector<64x8xf32>
    %100 = arith.truncf %99 : vector<64x8xf32> to vector<64x8xbf16>
    %c1_92 = arith.constant 1 : index
    %c0_93 = arith.constant 0 : index
    %c0_94 = arith.constant 0 : index
    %101 = vector.load %arg4[%c1_92, %c0_93, %c0_94] : memref<9x8x8xbf16, #tpu.memory_space<vmem>>, vector<1x8x8xbf16>
    %102 = vector.shape_cast %101 : vector<1x8x8xbf16> to vector<8x8xbf16>
    %cst_95 = arith.constant dense<0.000000e+00> : vector<64x8xf32>
    %103 = tpu.matmul %100, %102, %cst_95 {dimension_numbers = #tpu.dot_dimension_numbers<[1], [0], [0], [1], [0, 0, 1, 1], [], []>} : vector<64x8xbf16>, vector<8x8xbf16>, vector<64x8xf32> -> vector<64x8xf32>
    %104 = arith.addf %97, %103 : vector<64x8xf32>
    %c0_96 = arith.constant 0 : index
    %c2_97 = arith.constant 2 : index
    %c0_98 = arith.constant 0 : index
    %105 = vector.load %arg12[%c0_96, %c2_97, %c0_98] : memref<10x10x8xf32, #tpu.memory_space<vmem>>, vector<8x8x8xf32>
    %106 = vector.shape_cast %105 : vector<8x8x8xf32> to vector<64x8xf32>
    %107 = arith.truncf %106 : vector<64x8xf32> to vector<64x8xbf16>
    %c2_99 = arith.constant 2 : index
    %c0_100 = arith.constant 0 : index
    %c0_101 = arith.constant 0 : index
    %108 = vector.load %arg4[%c2_99, %c0_100, %c0_101] : memref<9x8x8xbf16, #tpu.memory_space<vmem>>, vector<1x8x8xbf16>
    %109 = vector.shape_cast %108 : vector<1x8x8xbf16> to vector<8x8xbf16>
    %cst_102 = arith.constant dense<0.000000e+00> : vector<64x8xf32>
    %110 = tpu.matmul %107, %109, %cst_102 {dimension_numbers = #tpu.dot_dimension_numbers<[1], [0], [0], [1], [0, 0, 1, 1], [], []>} : vector<64x8xbf16>, vector<8x8xbf16>, vector<64x8xf32> -> vector<64x8xf32>
    %111 = arith.addf %104, %110 : vector<64x8xf32>
    %c1_103 = arith.constant 1 : index
    %c0_104 = arith.constant 0 : index
    %c0_105 = arith.constant 0 : index
    %112 = vector.load %arg12[%c1_103, %c0_104, %c0_105] : memref<10x10x8xf32, #tpu.memory_space<vmem>>, vector<8x8x8xf32>
    %113 = vector.shape_cast %112 : vector<8x8x8xf32> to vector<64x8xf32>
    %114 = arith.truncf %113 : vector<64x8xf32> to vector<64x8xbf16>
    %c3_106 = arith.constant 3 : index
    %c0_107 = arith.constant 0 : index
    %c0_108 = arith.constant 0 : index
    %115 = vector.load %arg4[%c3_106, %c0_107, %c0_108] : memref<9x8x8xbf16, #tpu.memory_space<vmem>>, vector<1x8x8xbf16>
    %116 = vector.shape_cast %115 : vector<1x8x8xbf16> to vector<8x8xbf16>
    %cst_109 = arith.constant dense<0.000000e+00> : vector<64x8xf32>
    %117 = tpu.matmul %114, %116, %cst_109 {dimension_numbers = #tpu.dot_dimension_numbers<[1], [0], [0], [1], [0, 0, 1, 1], [], []>} : vector<64x8xbf16>, vector<8x8xbf16>, vector<64x8xf32> -> vector<64x8xf32>
    %118 = arith.addf %111, %117 : vector<64x8xf32>
    %c1_110 = arith.constant 1 : index
    %c1_111 = arith.constant 1 : index
    %c0_112 = arith.constant 0 : index
    %119 = vector.load %arg12[%c1_110, %c1_111, %c0_112] : memref<10x10x8xf32, #tpu.memory_space<vmem>>, vector<8x8x8xf32>
    %120 = vector.shape_cast %119 : vector<8x8x8xf32> to vector<64x8xf32>
    %121 = arith.truncf %120 : vector<64x8xf32> to vector<64x8xbf16>
    %c4_113 = arith.constant 4 : index
    %c0_114 = arith.constant 0 : index
    %c0_115 = arith.constant 0 : index
    %122 = vector.load %arg4[%c4_113, %c0_114, %c0_115] : memref<9x8x8xbf16, #tpu.memory_space<vmem>>, vector<1x8x8xbf16>
    %123 = vector.shape_cast %122 : vector<1x8x8xbf16> to vector<8x8xbf16>
    %cst_116 = arith.constant dense<0.000000e+00> : vector<64x8xf32>
    %124 = tpu.matmul %121, %123, %cst_116 {dimension_numbers = #tpu.dot_dimension_numbers<[1], [0], [0], [1], [0, 0, 1, 1], [], []>} : vector<64x8xbf16>, vector<8x8xbf16>, vector<64x8xf32> -> vector<64x8xf32>
    %125 = arith.addf %118, %124 : vector<64x8xf32>
    %c1_117 = arith.constant 1 : index
    %c2_118 = arith.constant 2 : index
    %c0_119 = arith.constant 0 : index
    %126 = vector.load %arg12[%c1_117, %c2_118, %c0_119] : memref<10x10x8xf32, #tpu.memory_space<vmem>>, vector<8x8x8xf32>
    %127 = vector.shape_cast %126 : vector<8x8x8xf32> to vector<64x8xf32>
    %128 = arith.truncf %127 : vector<64x8xf32> to vector<64x8xbf16>
    %c5_120 = arith.constant 5 : index
    %c0_121 = arith.constant 0 : index
    %c0_122 = arith.constant 0 : index
    %129 = vector.load %arg4[%c5_120, %c0_121, %c0_122] : memref<9x8x8xbf16, #tpu.memory_space<vmem>>, vector<1x8x8xbf16>
    %130 = vector.shape_cast %129 : vector<1x8x8xbf16> to vector<8x8xbf16>
    %cst_123 = arith.constant dense<0.000000e+00> : vector<64x8xf32>
    %131 = tpu.matmul %128, %130, %cst_123 {dimension_numbers = #tpu.dot_dimension_numbers<[1], [0], [0], [1], [0, 0, 1, 1], [], []>} : vector<64x8xbf16>, vector<8x8xbf16>, vector<64x8xf32> -> vector<64x8xf32>
    %132 = arith.addf %125, %131 : vector<64x8xf32>
    %c2_124 = arith.constant 2 : index
    %c0_125 = arith.constant 0 : index
    %c0_126 = arith.constant 0 : index
    %133 = vector.load %arg12[%c2_124, %c0_125, %c0_126] : memref<10x10x8xf32, #tpu.memory_space<vmem>>, vector<8x8x8xf32>
    %134 = vector.shape_cast %133 : vector<8x8x8xf32> to vector<64x8xf32>
    %135 = arith.truncf %134 : vector<64x8xf32> to vector<64x8xbf16>
    %c6_127 = arith.constant 6 : index
    %c0_128 = arith.constant 0 : index
    %c0_129 = arith.constant 0 : index
    %136 = vector.load %arg4[%c6_127, %c0_128, %c0_129] : memref<9x8x8xbf16, #tpu.memory_space<vmem>>, vector<1x8x8xbf16>
    %137 = vector.shape_cast %136 : vector<1x8x8xbf16> to vector<8x8xbf16>
    %cst_130 = arith.constant dense<0.000000e+00> : vector<64x8xf32>
    %138 = tpu.matmul %135, %137, %cst_130 {dimension_numbers = #tpu.dot_dimension_numbers<[1], [0], [0], [1], [0, 0, 1, 1], [], []>} : vector<64x8xbf16>, vector<8x8xbf16>, vector<64x8xf32> -> vector<64x8xf32>
    %139 = arith.addf %132, %138 : vector<64x8xf32>
    %c2_131 = arith.constant 2 : index
    %c1_132 = arith.constant 1 : index
    %c0_133 = arith.constant 0 : index
    %140 = vector.load %arg12[%c2_131, %c1_132, %c0_133] : memref<10x10x8xf32, #tpu.memory_space<vmem>>, vector<8x8x8xf32>
    %141 = vector.shape_cast %140 : vector<8x8x8xf32> to vector<64x8xf32>
    %142 = arith.truncf %141 : vector<64x8xf32> to vector<64x8xbf16>
    %c7_134 = arith.constant 7 : index
    %c0_135 = arith.constant 0 : index
    %c0_136 = arith.constant 0 : index
    %143 = vector.load %arg4[%c7_134, %c0_135, %c0_136] : memref<9x8x8xbf16, #tpu.memory_space<vmem>>, vector<1x8x8xbf16>
    %144 = vector.shape_cast %143 : vector<1x8x8xbf16> to vector<8x8xbf16>
    %cst_137 = arith.constant dense<0.000000e+00> : vector<64x8xf32>
    %145 = tpu.matmul %142, %144, %cst_137 {dimension_numbers = #tpu.dot_dimension_numbers<[1], [0], [0], [1], [0, 0, 1, 1], [], []>} : vector<64x8xbf16>, vector<8x8xbf16>, vector<64x8xf32> -> vector<64x8xf32>
    %146 = arith.addf %139, %145 : vector<64x8xf32>
    %c2_138 = arith.constant 2 : index
    %c2_139 = arith.constant 2 : index
    %c0_140 = arith.constant 0 : index
    %147 = vector.load %arg12[%c2_138, %c2_139, %c0_140] : memref<10x10x8xf32, #tpu.memory_space<vmem>>, vector<8x8x8xf32>
    %148 = vector.shape_cast %147 : vector<8x8x8xf32> to vector<64x8xf32>
    %149 = arith.truncf %148 : vector<64x8xf32> to vector<64x8xbf16>
    %c8_141 = arith.constant 8 : index
    %c0_142 = arith.constant 0 : index
    %c0_143 = arith.constant 0 : index
    %150 = vector.load %arg4[%c8_141, %c0_142, %c0_143] : memref<9x8x8xbf16, #tpu.memory_space<vmem>>, vector<1x8x8xbf16>
    %151 = vector.shape_cast %150 : vector<1x8x8xbf16> to vector<8x8xbf16>
    %cst_144 = arith.constant dense<0.000000e+00> : vector<64x8xf32>
    %152 = tpu.matmul %149, %151, %cst_144 {dimension_numbers = #tpu.dot_dimension_numbers<[1], [0], [0], [1], [0, 0, 1, 1], [], []>} : vector<64x8xbf16>, vector<8x8xbf16>, vector<64x8xf32> -> vector<64x8xf32>
    %153 = arith.addf %146, %152 : vector<64x8xf32>
    %c0_145 = arith.constant 0 : index
    %c0_146 = arith.constant 0 : index
    %154 = vector.load %arg5[%c0_145, %c0_146] : memref<1x8xf32, #tpu.memory_space<vmem>>, vector<1x8xf32>
    %155 = vector.broadcast %154 : vector<1x8xf32> to vector<64x8xf32>
    %156 = arith.addf %153, %155 : vector<64x8xf32>
    %cst_147 = arith.constant 0.000000e+00 : f32
    %157 = vector.broadcast %cst_147 : f32 to vector<64x8xf32>
    %158 = arith.maximumf %156, %157 : vector<64x8xf32>
    %159 = vector.shape_cast %158 : vector<64x8xf32> to vector<4x2x8x8xf32>
    %160 = vector.extract_strided_slice %159 {offsets = [0, 0, 0, 0], sizes = [4, 1, 8, 8], strides = [1, 1, 1, 1]} : vector<4x2x8x8xf32> to vector<4x1x8x8xf32>
    %161 = vector.shape_cast %160 : vector<4x1x8x8xf32> to vector<4x8x8xf32>
    %162 = vector.extract_strided_slice %159 {offsets = [0, 1, 0, 0], sizes = [4, 1, 8, 8], strides = [1, 1, 1, 1]} : vector<4x2x8x8xf32> to vector<4x1x8x8xf32>
    %163 = vector.shape_cast %162 : vector<4x1x8x8xf32> to vector<4x8x8xf32>
    %164 = arith.maximumf %161, %163 : vector<4x8x8xf32>
    %165 = vector.shape_cast %164 : vector<4x8x8xf32> to vector<32x8xf32>
    %c0_148 = arith.constant 0 : index
    %c0_149 = arith.constant 0 : index
    %166 = vector.load %arg14[%c0_148, %c0_149] : memref<40x8xf32, #tpu.memory_space<vmem>>, vector<32x8xf32>
    tpu.vector_store %arg14[%c0_148, %c0_149], %165 {strides = array<i32>} : memref<40x8xf32, #tpu.memory_space<vmem>>, vector<32x8xf32>,
    %c0_150 = arith.constant 0 : index
    %c0_151 = arith.constant 0 : index
    %167 = tpu.strided_load %arg14[%c0_150, %c0_151] {strides = array<i32: 2, 1>} : memref<40x8xf32, #tpu.memory_space<vmem>>, vector<16x8xf32>
    %c1_152 = arith.constant 1 : index
    %c0_153 = arith.constant 0 : index
    %168 = tpu.strided_load %arg14[%c1_152, %c0_153] {strides = array<i32: 2, 1>} : memref<40x8xf32, #tpu.memory_space<vmem>>, vector<16x8xf32>
    %169 = arith.maximumf %167, %168 : vector<16x8xf32>
    %c0_154 = arith.constant 0 : index
    %c0_155 = arith.constant 0 : index
    %170 = vector.load %arg7[%c0_154, %c0_155] : memref<1x128xf32, #tpu.memory_space<vmem>>, vector<1x128xf32>
    %171 = vector.extract_strided_slice %169 {offsets = [0, 0], sizes = [1, 8], strides = [1, 1]} : vector<16x8xf32> to vector<1x8xf32>
    %172 = arith.truncf %171 : vector<1x8xf32> to vector<1x8xbf16>
    %c0_156 = arith.constant 0 : index
    %c0_157 = arith.constant 0 : index
    %c0_158 = arith.constant 0 : index
    %173 = vector.load %arg6[%c0_156, %c0_157, %c0_158] : memref<16x8x128xbf16, #tpu.memory_space<vmem>>, vector<1x8x128xbf16>
    %174 = vector.shape_cast %173 : vector<1x8x128xbf16> to vector<8x128xbf16>
    %cst_159 = arith.constant dense<0.000000e+00> : vector<1x128xf32>
    %175 = tpu.matmul %172, %174, %cst_159 {dimension_numbers = #tpu.dot_dimension_numbers<[1], [0], [0], [1], [0, 0, 1, 1], [], []>} : vector<1x8xbf16>, vector<8x128xbf16>, vector<1x128xf32> -> vector<1x128xf32>
    %176 = arith.addf %170, %175 : vector<1x128xf32>
    %177 = vector.extract_strided_slice %169 {offsets = [1, 0], sizes = [1, 8], strides = [1, 1]} : vector<16x8xf32> to vector<1x8xf32>
    %178 = arith.truncf %177 : vector<1x8xf32> to vector<1x8xbf16>
    %c1_160 = arith.constant 1 : index
    %c0_161 = arith.constant 0 : index
    %c0_162 = arith.constant 0 : index
    %179 = vector.load %arg6[%c1_160, %c0_161, %c0_162] : memref<16x8x128xbf16, #tpu.memory_space<vmem>>, vector<1x8x128xbf16>
    %180 = vector.shape_cast %179 : vector<1x8x128xbf16> to vector<8x128xbf16>
    %cst_163 = arith.constant dense<0.000000e+00> : vector<1x128xf32>
    %181 = tpu.matmul %178, %180, %cst_163 {dimension_numbers = #tpu.dot_dimension_numbers<[1], [0], [0], [1], [0, 0, 1, 1], [], []>} : vector<1x8xbf16>, vector<8x128xbf16>, vector<1x128xf32> -> vector<1x128xf32>
    %182 = arith.addf %176, %181 : vector<1x128xf32>
    %183 = vector.extract_strided_slice %169 {offsets = [2, 0], sizes = [1, 8], strides = [1, 1]} : vector<16x8xf32> to vector<1x8xf32>
    %184 = arith.truncf %183 : vector<1x8xf32> to vector<1x8xbf16>
    %c2_164 = arith.constant 2 : index
    %c0_165 = arith.constant 0 : index
    %c0_166 = arith.constant 0 : index
    %185 = vector.load %arg6[%c2_164, %c0_165, %c0_166] : memref<16x8x128xbf16, #tpu.memory_space<vmem>>, vector<1x8x128xbf16>
    %186 = vector.shape_cast %185 : vector<1x8x128xbf16> to vector<8x128xbf16>
    %cst_167 = arith.constant dense<0.000000e+00> : vector<1x128xf32>
    %187 = tpu.matmul %184, %186, %cst_167 {dimension_numbers = #tpu.dot_dimension_numbers<[1], [0], [0], [1], [0, 0, 1, 1], [], []>} : vector<1x8xbf16>, vector<8x128xbf16>, vector<1x128xf32> -> vector<1x128xf32>
    %188 = arith.addf %182, %187 : vector<1x128xf32>
    %189 = vector.extract_strided_slice %169 {offsets = [3, 0], sizes = [1, 8], strides = [1, 1]} : vector<16x8xf32> to vector<1x8xf32>
    %190 = arith.truncf %189 : vector<1x8xf32> to vector<1x8xbf16>
    %c3_168 = arith.constant 3 : index
    %c0_169 = arith.constant 0 : index
    %c0_170 = arith.constant 0 : index
    %191 = vector.load %arg6[%c3_168, %c0_169, %c0_170] : memref<16x8x128xbf16, #tpu.memory_space<vmem>>, vector<1x8x128xbf16>
    %192 = vector.shape_cast %191 : vector<1x8x128xbf16> to vector<8x128xbf16>
    %cst_171 = arith.constant dense<0.000000e+00> : vector<1x128xf32>
    %193 = tpu.matmul %190, %192, %cst_171 {dimension_numbers = #tpu.dot_dimension_numbers<[1], [0], [0], [1], [0, 0, 1, 1], [], []>} : vector<1x8xbf16>, vector<8x128xbf16>, vector<1x128xf32> -> vector<1x128xf32>
    %194 = arith.addf %188, %193 : vector<1x128xf32>
    %195 = vector.extract_strided_slice %169 {offsets = [4, 0], sizes = [1, 8], strides = [1, 1]} : vector<16x8xf32> to vector<1x8xf32>
    %196 = arith.truncf %195 : vector<1x8xf32> to vector<1x8xbf16>
    %c4_172 = arith.constant 4 : index
    %c0_173 = arith.constant 0 : index
    %c0_174 = arith.constant 0 : index
    %197 = vector.load %arg6[%c4_172, %c0_173, %c0_174] : memref<16x8x128xbf16, #tpu.memory_space<vmem>>, vector<1x8x128xbf16>
    %198 = vector.shape_cast %197 : vector<1x8x128xbf16> to vector<8x128xbf16>
    %cst_175 = arith.constant dense<0.000000e+00> : vector<1x128xf32>
    %199 = tpu.matmul %196, %198, %cst_175 {dimension_numbers = #tpu.dot_dimension_numbers<[1], [0], [0], [1], [0, 0, 1, 1], [], []>} : vector<1x8xbf16>, vector<8x128xbf16>, vector<1x128xf32> -> vector<1x128xf32>
    %200 = arith.addf %194, %199 : vector<1x128xf32>
    %201 = vector.extract_strided_slice %169 {offsets = [5, 0], sizes = [1, 8], strides = [1, 1]} : vector<16x8xf32> to vector<1x8xf32>
    %202 = arith.truncf %201 : vector<1x8xf32> to vector<1x8xbf16>
    %c5_176 = arith.constant 5 : index
    %c0_177 = arith.constant 0 : index
    %c0_178 = arith.constant 0 : index
    %203 = vector.load %arg6[%c5_176, %c0_177, %c0_178] : memref<16x8x128xbf16, #tpu.memory_space<vmem>>, vector<1x8x128xbf16>
    %204 = vector.shape_cast %203 : vector<1x8x128xbf16> to vector<8x128xbf16>
    %cst_179 = arith.constant dense<0.000000e+00> : vector<1x128xf32>
    %205 = tpu.matmul %202, %204, %cst_179 {dimension_numbers = #tpu.dot_dimension_numbers<[1], [0], [0], [1], [0, 0, 1, 1], [], []>} : vector<1x8xbf16>, vector<8x128xbf16>, vector<1x128xf32> -> vector<1x128xf32>
    %206 = arith.addf %200, %205 : vector<1x128xf32>
    %207 = vector.extract_strided_slice %169 {offsets = [6, 0], sizes = [1, 8], strides = [1, 1]} : vector<16x8xf32> to vector<1x8xf32>
    %208 = arith.truncf %207 : vector<1x8xf32> to vector<1x8xbf16>
    %c6_180 = arith.constant 6 : index
    %c0_181 = arith.constant 0 : index
    %c0_182 = arith.constant 0 : index
    %209 = vector.load %arg6[%c6_180, %c0_181, %c0_182] : memref<16x8x128xbf16, #tpu.memory_space<vmem>>, vector<1x8x128xbf16>
    %210 = vector.shape_cast %209 : vector<1x8x128xbf16> to vector<8x128xbf16>
    %cst_183 = arith.constant dense<0.000000e+00> : vector<1x128xf32>
    %211 = tpu.matmul %208, %210, %cst_183 {dimension_numbers = #tpu.dot_dimension_numbers<[1], [0], [0], [1], [0, 0, 1, 1], [], []>} : vector<1x8xbf16>, vector<8x128xbf16>, vector<1x128xf32> -> vector<1x128xf32>
    %212 = arith.addf %206, %211 : vector<1x128xf32>
    %213 = vector.extract_strided_slice %169 {offsets = [7, 0], sizes = [1, 8], strides = [1, 1]} : vector<16x8xf32> to vector<1x8xf32>
    %214 = arith.truncf %213 : vector<1x8xf32> to vector<1x8xbf16>
    %c7_184 = arith.constant 7 : index
    %c0_185 = arith.constant 0 : index
    %c0_186 = arith.constant 0 : index
    %215 = vector.load %arg6[%c7_184, %c0_185, %c0_186] : memref<16x8x128xbf16, #tpu.memory_space<vmem>>, vector<1x8x128xbf16>
    %216 = vector.shape_cast %215 : vector<1x8x128xbf16> to vector<8x128xbf16>
    %cst_187 = arith.constant dense<0.000000e+00> : vector<1x128xf32>
    %217 = tpu.matmul %214, %216, %cst_187 {dimension_numbers = #tpu.dot_dimension_numbers<[1], [0], [0], [1], [0, 0, 1, 1], [], []>} : vector<1x8xbf16>, vector<8x128xbf16>, vector<1x128xf32> -> vector<1x128xf32>
    %218 = arith.addf %212, %217 : vector<1x128xf32>
    %219 = vector.extract_strided_slice %169 {offsets = [8, 0], sizes = [1, 8], strides = [1, 1]} : vector<16x8xf32> to vector<1x8xf32>
    %220 = arith.truncf %219 : vector<1x8xf32> to vector<1x8xbf16>
    %c8_188 = arith.constant 8 : index
    %c0_189 = arith.constant 0 : index
    %c0_190 = arith.constant 0 : index
    %221 = vector.load %arg6[%c8_188, %c0_189, %c0_190] : memref<16x8x128xbf16, #tpu.memory_space<vmem>>, vector<1x8x128xbf16>
    %222 = vector.shape_cast %221 : vector<1x8x128xbf16> to vector<8x128xbf16>
    %cst_191 = arith.constant dense<0.000000e+00> : vector<1x128xf32>
    %223 = tpu.matmul %220, %222, %cst_191 {dimension_numbers = #tpu.dot_dimension_numbers<[1], [0], [0], [1], [0, 0, 1, 1], [], []>} : vector<1x8xbf16>, vector<8x128xbf16>, vector<1x128xf32> -> vector<1x128xf32>
    %224 = arith.addf %218, %223 : vector<1x128xf32>
    %225 = vector.extract_strided_slice %169 {offsets = [9, 0], sizes = [1, 8], strides = [1, 1]} : vector<16x8xf32> to vector<1x8xf32>
    %226 = arith.truncf %225 : vector<1x8xf32> to vector<1x8xbf16>
    %c9 = arith.constant 9 : index
    %c0_192 = arith.constant 0 : index
    %c0_193 = arith.constant 0 : index
    %227 = vector.load %arg6[%c9, %c0_192, %c0_193] : memref<16x8x128xbf16, #tpu.memory_space<vmem>>, vector<1x8x128xbf16>
    %228 = vector.shape_cast %227 : vector<1x8x128xbf16> to vector<8x128xbf16>
    %cst_194 = arith.constant dense<0.000000e+00> : vector<1x128xf32>
    %229 = tpu.matmul %226, %228, %cst_194 {dimension_numbers = #tpu.dot_dimension_numbers<[1], [0], [0], [1], [0, 0, 1, 1], [], []>} : vector<1x8xbf16>, vector<8x128xbf16>, vector<1x128xf32> -> vector<1x128xf32>
    %230 = arith.addf %224, %229 : vector<1x128xf32>
    %231 = vector.extract_strided_slice %169 {offsets = [10, 0], sizes = [1, 8], strides = [1, 1]} : vector<16x8xf32> to vector<1x8xf32>
    %232 = arith.truncf %231 : vector<1x8xf32> to vector<1x8xbf16>
    %c10 = arith.constant 10 : index
    %c0_195 = arith.constant 0 : index
    %c0_196 = arith.constant 0 : index
    %233 = vector.load %arg6[%c10, %c0_195, %c0_196] : memref<16x8x128xbf16, #tpu.memory_space<vmem>>, vector<1x8x128xbf16>
    %234 = vector.shape_cast %233 : vector<1x8x128xbf16> to vector<8x128xbf16>
    %cst_197 = arith.constant dense<0.000000e+00> : vector<1x128xf32>
    %235 = tpu.matmul %232, %234, %cst_197 {dimension_numbers = #tpu.dot_dimension_numbers<[1], [0], [0], [1], [0, 0, 1, 1], [], []>} : vector<1x8xbf16>, vector<8x128xbf16>, vector<1x128xf32> -> vector<1x128xf32>
    %236 = arith.addf %230, %235 : vector<1x128xf32>
    %237 = vector.extract_strided_slice %169 {offsets = [11, 0], sizes = [1, 8], strides = [1, 1]} : vector<16x8xf32> to vector<1x8xf32>
    %238 = arith.truncf %237 : vector<1x8xf32> to vector<1x8xbf16>
    %c11 = arith.constant 11 : index
    %c0_198 = arith.constant 0 : index
    %c0_199 = arith.constant 0 : index
    %239 = vector.load %arg6[%c11, %c0_198, %c0_199] : memref<16x8x128xbf16, #tpu.memory_space<vmem>>, vector<1x8x128xbf16>
    %240 = vector.shape_cast %239 : vector<1x8x128xbf16> to vector<8x128xbf16>
    %cst_200 = arith.constant dense<0.000000e+00> : vector<1x128xf32>
    %241 = tpu.matmul %238, %240, %cst_200 {dimension_numbers = #tpu.dot_dimension_numbers<[1], [0], [0], [1], [0, 0, 1, 1], [], []>} : vector<1x8xbf16>, vector<8x128xbf16>, vector<1x128xf32> -> vector<1x128xf32>
    %242 = arith.addf %236, %241 : vector<1x128xf32>
    %243 = vector.extract_strided_slice %169 {offsets = [12, 0], sizes = [1, 8], strides = [1, 1]} : vector<16x8xf32> to vector<1x8xf32>
    %244 = arith.truncf %243 : vector<1x8xf32> to vector<1x8xbf16>
    %c12 = arith.constant 12 : index
    %c0_201 = arith.constant 0 : index
    %c0_202 = arith.constant 0 : index
    %245 = vector.load %arg6[%c12, %c0_201, %c0_202] : memref<16x8x128xbf16, #tpu.memory_space<vmem>>, vector<1x8x128xbf16>
    %246 = vector.shape_cast %245 : vector<1x8x128xbf16> to vector<8x128xbf16>
    %cst_203 = arith.constant dense<0.000000e+00> : vector<1x128xf32>
    %247 = tpu.matmul %244, %246, %cst_203 {dimension_numbers = #tpu.dot_dimension_numbers<[1], [0], [0], [1], [0, 0, 1, 1], [], []>} : vector<1x8xbf16>, vector<8x128xbf16>, vector<1x128xf32> -> vector<1x128xf32>
    %248 = arith.addf %242, %247 : vector<1x128xf32>
    %249 = vector.extract_strided_slice %169 {offsets = [13, 0], sizes = [1, 8], strides = [1, 1]} : vector<16x8xf32> to vector<1x8xf32>
    %250 = arith.truncf %249 : vector<1x8xf32> to vector<1x8xbf16>
    %c13 = arith.constant 13 : index
    %c0_204 = arith.constant 0 : index
    %c0_205 = arith.constant 0 : index
    %251 = vector.load %arg6[%c13, %c0_204, %c0_205] : memref<16x8x128xbf16, #tpu.memory_space<vmem>>, vector<1x8x128xbf16>
    %252 = vector.shape_cast %251 : vector<1x8x128xbf16> to vector<8x128xbf16>
    %cst_206 = arith.constant dense<0.000000e+00> : vector<1x128xf32>
    %253 = tpu.matmul %250, %252, %cst_206 {dimension_numbers = #tpu.dot_dimension_numbers<[1], [0], [0], [1], [0, 0, 1, 1], [], []>} : vector<1x8xbf16>, vector<8x128xbf16>, vector<1x128xf32> -> vector<1x128xf32>
    %254 = arith.addf %248, %253 : vector<1x128xf32>
    %255 = vector.extract_strided_slice %169 {offsets = [14, 0], sizes = [1, 8], strides = [1, 1]} : vector<16x8xf32> to vector<1x8xf32>
    %256 = arith.truncf %255 : vector<1x8xf32> to vector<1x8xbf16>
    %c14 = arith.constant 14 : index
    %c0_207 = arith.constant 0 : index
    %c0_208 = arith.constant 0 : index
    %257 = vector.load %arg6[%c14, %c0_207, %c0_208] : memref<16x8x128xbf16, #tpu.memory_space<vmem>>, vector<1x8x128xbf16>
    %258 = vector.shape_cast %257 : vector<1x8x128xbf16> to vector<8x128xbf16>
    %cst_209 = arith.constant dense<0.000000e+00> : vector<1x128xf32>
    %259 = tpu.matmul %256, %258, %cst_209 {dimension_numbers = #tpu.dot_dimension_numbers<[1], [0], [0], [1], [0, 0, 1, 1], [], []>} : vector<1x8xbf16>, vector<8x128xbf16>, vector<1x128xf32> -> vector<1x128xf32>
    %260 = arith.addf %254, %259 : vector<1x128xf32>
    %261 = vector.extract_strided_slice %169 {offsets = [15, 0], sizes = [1, 8], strides = [1, 1]} : vector<16x8xf32> to vector<1x8xf32>
    %262 = arith.truncf %261 : vector<1x8xf32> to vector<1x8xbf16>
    %c15 = arith.constant 15 : index
    %c0_210 = arith.constant 0 : index
    %c0_211 = arith.constant 0 : index
    %263 = vector.load %arg6[%c15, %c0_210, %c0_211] : memref<16x8x128xbf16, #tpu.memory_space<vmem>>, vector<1x8x128xbf16>
    %264 = vector.shape_cast %263 : vector<1x8x128xbf16> to vector<8x128xbf16>
    %cst_212 = arith.constant dense<0.000000e+00> : vector<1x128xf32>
    %265 = tpu.matmul %262, %264, %cst_212 {dimension_numbers = #tpu.dot_dimension_numbers<[1], [0], [0], [1], [0, 0, 1, 1], [], []>} : vector<1x8xbf16>, vector<8x128xbf16>, vector<1x128xf32> -> vector<1x128xf32>
    %266 = arith.addf %260, %265 : vector<1x128xf32>
    %cst_213 = arith.constant 0.000000e+00 : f32
    %267 = vector.broadcast %cst_213 : f32 to vector<1x128xf32>
    %268 = arith.maximumf %266, %267 : vector<1x128xf32>
    %269 = arith.truncf %268 : vector<1x128xf32> to vector<1x128xbf16>
    %c0_214 = arith.constant 0 : index
    %c0_215 = arith.constant 0 : index
    %270 = vector.load %arg8[%c0_214, %c0_215] : memref<128x10xbf16, #tpu.memory_space<vmem>>, vector<128x10xbf16>
    %cst_216 = arith.constant dense<0.000000e+00> : vector<1x10xf32>
    %271 = tpu.matmul %269, %270, %cst_216 {dimension_numbers = #tpu.dot_dimension_numbers<[1], [0], [0], [1], [0, 0, 1, 1], [], []>} : vector<1x128xbf16>, vector<128x10xbf16>, vector<1x10xf32> -> vector<1x10xf32>
    %c0_217 = arith.constant 0 : index
    %c0_218 = arith.constant 0 : index
    %272 = vector.load %arg9[%c0_217, %c0_218] : memref<1x10xf32, #tpu.memory_space<vmem>>, vector<1x10xf32>
    %273 = arith.addf %271, %272 : vector<1x10xf32>
    %c0_219 = arith.constant 0 : index
    %c0_220 = arith.constant 0 : index
    %c0_221 = arith.constant 0 : index
    %274 = vector.load %arg10[%c0_219, %c0_220, %c0_221] : memref<1x1x10xf32, #tpu.memory_space<vmem>>, vector<1x1x10xf32>
    %275 = vector.shape_cast %274 : vector<1x1x10xf32> to vector<1x10xf32>
    %276 = vector.shape_cast %273 : vector<1x10xf32> to vector<1x1x10xf32>
    tpu.vector_store %arg10[%c0_219, %c0_220, %c0_221], %276 {strides = array<i32>} : memref<1x1x10xf32, #tpu.memory_space<vmem>>, vector<1x1x10xf32>,
    return
  }
  func.func @transform_0(%arg0: i32) -> (i32, i32, i32, i32) {
    %c0_i32 = arith.constant 0 : i32
    %c0_i32_0 = arith.constant 0 : i32
    %c0_i32_1 = arith.constant 0 : i32
    %c0_i32_2 = arith.constant 0 : i32
    return %arg0, %c0_i32, %c0_i32_0, %c0_i32_1 : i32, i32, i32, i32
  }
  func.func @transform_1(%arg0: i32) -> (i32, i32, i32) {
    %c0_i32 = arith.constant 0 : i32
    %c0_i32_0 = arith.constant 0 : i32
    %c0_i32_1 = arith.constant 0 : i32
    %c0_i32_2 = arith.constant 0 : i32
    return %c0_i32, %c0_i32_0, %c0_i32_1 : i32, i32, i32
  }
  func.func @transform_2(%arg0: i32) -> (i32, i32) {
    %c0_i32 = arith.constant 0 : i32
    %c0_i32_0 = arith.constant 0 : i32
    %c0_i32_1 = arith.constant 0 : i32
    return %c0_i32, %c0_i32_0 : i32, i32
  }
  func.func @transform_3(%arg0: i32) -> (i32, i32, i32) {
    %c0_i32 = arith.constant 0 : i32
    %c0_i32_0 = arith.constant 0 : i32
    %c0_i32_1 = arith.constant 0 : i32
    %c0_i32_2 = arith.constant 0 : i32
    return %c0_i32, %c0_i32_0, %c0_i32_1 : i32, i32, i32
  }
  func.func @transform_4(%arg0: i32) -> (i32, i32) {
    %c0_i32 = arith.constant 0 : i32
    %c0_i32_0 = arith.constant 0 : i32
    %c0_i32_1 = arith.constant 0 : i32
    return %c0_i32, %c0_i32_0 : i32, i32
  }
  func.func @transform_5(%arg0: i32) -> (i32, i32, i32) {
    %c0_i32 = arith.constant 0 : i32
    %c0_i32_0 = arith.constant 0 : i32
    %c0_i32_1 = arith.constant 0 : i32
    %c0_i32_2 = arith.constant 0 : i32
    return %c0_i32, %c0_i32_0, %c0_i32_1 : i32, i32, i32
  }
  func.func @transform_6(%arg0: i32) -> (i32, i32) {
    %c0_i32 = arith.constant 0 : i32
    %c0_i32_0 = arith.constant 0 : i32
    %c0_i32_1 = arith.constant 0 : i32
    return %c0_i32, %c0_i32_0 : i32, i32
  }
  func.func @transform_7(%arg0: i32) -> (i32, i32) {
    %c0_i32 = arith.constant 0 : i32
    %c0_i32_0 = arith.constant 0 : i32
    %c0_i32_1 = arith.constant 0 : i32
    return %c0_i32, %c0_i32_0 : i32, i32
  }
  func.func @transform_8(%arg0: i32) -> (i32, i32) {
    %c0_i32 = arith.constant 0 : i32
    %c0_i32_0 = arith.constant 0 : i32
    %c0_i32_1 = arith.constant 0 : i32
    return %c0_i32, %c0_i32_0 : i32, i32
  }
  func.func @transform_9(%arg0: i32) -> (i32, i32, i32) {
    %c0_i32 = arith.constant 0 : i32
    %c0_i32_0 = arith.constant 0 : i32
    %c0_i32_1 = arith.constant 0 : i32
    return %arg0, %c0_i32, %c0_i32_0 : i32, i32, i32
  }
}

</mosaic_0001>

<llo_original>
// kernel: cnn_forward.1
$region0: #{cnn_forward.1}
  #allocation0 [shape = 'u32[]', space=smem, size = 0x4, offset = 0x4, fixed_abs, tag = 'smem constant byte address 0x4 - core index']
  #allocation1 [shape = 'u32[144,128]{1,0:T(1,128)}', space=vmem, size = 0x12000, scoped, tag = 'internal scratch']
  #allocation2 [shape = 'f32[18,18,4]{2,1,0:T(8,128)}', space=vmem, size = 0x36000, scoped, tag = 'scratch operand']
  #allocation3 [shape = 'f32[10,10,8]{2,1,0:T(8,128)}', space=vmem, size = 0x14000, scoped, tag = 'scratch operand']
  #allocation4 [shape = 'f32[136,8]{1,0:T(8,128)}', space=vmem, size = 0x11000, scoped, tag = 'scratch operand']
  #allocation5 [shape = 'f32[40,8]{1,0:T(8,128)}', space=vmem, size = 0x5000, scoped, tag = 'scratch operand']
  %s0 = inlined_call_operand.vmem [shape: bf16[2,16,16,4], index: 0, kind: input, shape index: {}]
  %s1 = inlined_call_operand.vmem [shape: bf16[9,4,8], index: 1, kind: input, shape index: {}]
  %s2 = inlined_call_operand.vmem [shape: f32[1,8], index: 2, kind: input, shape index: {}]
  %s3 = inlined_call_operand.vmem [shape: bf16[9,8,8], index: 3, kind: input, shape index: {}]
  %s4 = inlined_call_operand.vmem [shape: f32[1,8], index: 4, kind: input, shape index: {}]
  %s5 = inlined_call_operand.vmem [shape: bf16[16,8,128], index: 5, kind: input, shape index: {}]
  %s6 = inlined_call_operand.vmem [shape: f32[1,128], index: 6, kind: input, shape index: {}]
  %s7 = inlined_call_operand.vmem [shape: bf16[128,10], index: 7, kind: input, shape index: {}]
  %s8 = inlined_call_operand.vmem [shape: f32[1,10], index: 8, kind: input, shape index: {}]
  %s9 = inlined_call_operand.hbm [shape: f32[2,1,10], index: 9, kind: output, shape index: {}]
  %s10 = sld [smem:[#allocation0]]
  $region69: #{cnn_forward.1} parent=0
    _
  %s12 = ssub.s32 1, %s10
  %s13 = scalar_select 0, %s12, %s10
  $region1: #{cnn_forward.1} parent=0
    #allocation6 [shape = 'u8[1024]{0}', space=vmem, size = 0x400, scoped, tag = 'output window, operand 0']
    #allocation7 [shape = 's32[2]{0}', space=sflag, size = 0x8, scoped, tag = 'scoped memory for cnn_forward.1']
    %14 = vsyncpa [#allocation7], 0
    %s15 = scalar_lea.sflag [#allocation7], 1
    %16 = vsyncpa %s15, 0
    loop: start=0, step=1, limit=4
    $region2: #{cnn_forward.1} parent=1 // loop_pre_header
      _
    $region3: #{cnn_forward.1} parent=1 // loop_header
      %s18 = sphi 0, %s22
      %p19 = scmp.ge.s32.totalorder %s18, 4
      %s28 = sphi 0, %s30
      %s31 = sphi 0, %s28
      %s32 = sphi 0, %s31
      %s48 = sphi 0, %s32
      %s52 = sphi 0, %s52
      %s54 = sphi 0, %s52
      %s55 = sphi 0, %s54
      %s69 = sphi 0, %s55
      %s73 = sphi 0, %s73
      %s75 = sphi 0, %s73
      %s76 = sphi 0, %s75
      %s90 = sphi 0, %s76
      %s94 = sphi 0, %s94
      %s96 = sphi 0, %s94
      %s97 = sphi 0, %s96
      %s111 = sphi 0, %s97
      %s115 = sphi 0, %s115
      %s117 = sphi 0, %s115
      %s118 = sphi 0, %s117
      %s132 = sphi 0, %s118
      %s136 = sphi 0, %s136
      %s138 = sphi 0, %s136
      %s139 = sphi 0, %s138
      %s153 = sphi 0, %s139
      %s157 = sphi 0, %s157
      %s159 = sphi 0, %s157
      %s160 = sphi 0, %s159
      %s174 = sphi 0, %s160
      %s178 = sphi 0, %s178
      %s180 = sphi 0, %s178
      %s181 = sphi 0, %s180
      %s195 = sphi 0, %s181
      %s199 = sphi 0, %s199
      %s201 = sphi 0, %s199
      %s202 = sphi 0, %s201
      %s216 = sphi 0, %s202
      %s222 = sphi 0, %s224
      %s225 = sphi 0, %s222
      %s226 = sphi 0, %s225
      %s242 = sphi 0, %s226
    $region4: #{cnn_forward.1} parent=1 // loop_header_branch
      %21 = sbr.rel (%p19) target = $region8
    $region5: #{cnn_forward.1} parent=1 // loop_body
      %s23 = ssub.s32 %s18, 1
      %s24 = ssub.s32 %s18, 2
      %s25 = sadd.s32 %s18, 1
      %s26 = ssub.s32 %s18, %s25
      %p27 = scmp.eq.s32.totalorder %s26, 0
      %s29 = sadd.s32 %s28, 1
      %s30 = scalar_select %p27, %s28, %s29
      %p33 = pneg %p27
      %p34 = scmp.eq.s32.totalorder %s18, 1
      %p35 = por %p33, %p34
      %p36 = scmp.ne.s32.totalorder %s28, %s31
      %p37 = scmp.eq.s32.totalorder %s18, 0
      %p38 = por %p36, %p37
      %p39 = scmp.ne.s32.totalorder %s28, %s31
      %p40 = scmp.eq.s32.totalorder %s23, 1
      %p41 = por %p39, %p40
      %p42 = scmp.ne.s32.totalorder %s31, %s32
      %p43 = scmp.eq.s32.totalorder %s23, 0
      %p44 = por %p42, %p43
      %p45 = scmp.ne.s32.totalorder %s31, %s32
      %p46 = scmp.eq.s32.totalorder %s24, 1
      %p47 = por %p45, %p46
      %p49 = scmp.ne.s32.totalorder %s32, %s48
      %p50 = scmp.eq.s32.totalorder %s24, 0
      %p51 = por %p49, %p50
      %s53 = sadd.s32 %s52, 1
      %p56 = scmp.eq.s32.totalorder %s18, 1
      %p57 = scmp.ne.s32.totalorder %s52, %s54
      %p58 = scmp.eq.s32.totalorder %s18, 0
      %p59 = por %p57, %p58
      %p60 = scmp.ne.s32.totalorder %s52, %s54
      %p61 = scmp.eq.s32.totalorder %s23, 1
      %p62 = por %p60, %p61
      %p63 = scmp.ne.s32.totalorder %s54, %s55
      %p64 = scmp.eq.s32.totalorder %s23, 0
      %p65 = por %p63, %p64
      %p66 = scmp.ne.s32.totalorder %s54, %s55
      %p67 = scmp.eq.s32.totalorder %s24, 1
      %p68 = por %p66, %p67
      %p70 = scmp.ne.s32.totalorder %s55, %s69
      %p71 = scmp.eq.s32.totalorder %s24, 0
      %p72 = por %p70, %p71
      %s74 = sadd.s32 %s73, 1
      %p77 = scmp.eq.s32.totalorder %s18, 1
      %p78 = scmp.ne.s32.totalorder %s73, %s75
      %p79 = scmp.eq.s32.totalorder %s18, 0
      %p80 = por %p78, %p79
      %p81 = scmp.ne.s32.totalorder %s73, %s75
      %p82 = scmp.eq.s32.totalorder %s23, 1
      %p83 = por %p81, %p82
      %p84 = scmp.ne.s32.totalorder %s75, %s76
      %p85 = scmp.eq.s32.totalorder %s23, 0
      %p86 = por %p84, %p85
      %p87 = scmp.ne.s32.totalorder %s75, %s76
      %p88 = scmp.eq.s32.totalorder %s24, 1
      %p89 = por %p87, %p88
      %p91 = scmp.ne.s32.totalorder %s76, %s90
      %p92 = scmp.eq.s32.totalorder %s24, 0
      %p93 = por %p91, %p92
      %s95 = sadd.s32 %s94, 1
      %p98 = scmp.eq.s32.totalorder %s18, 1
      %p99 = scmp.ne.s32.totalorder %s94, %s96
      %p100 = scmp.eq.s32.totalorder %s18, 0
      %p101 = por %p99, %p100
      %p102 = scmp.ne.s32.totalorder %s94, %s96
      %p103 = scmp.eq.s32.totalorder %s23, 1
      %p104 = por %p102, %p103
      %p105 = scmp.ne.s32.totalorder %s96, %s97
      %p106 = scmp.eq.s32.totalorder %s23, 0
      %p107 = por %p105, %p106
      %p108 = scmp.ne.s32.totalorder %s96, %s97
      %p109 = scmp.eq.s32.totalorder %s24, 1
      %p110 = por %p108, %p109
      %p112 = scmp.ne.s32.totalorder %s97, %s111
      %p113 = scmp.eq.s32.totalorder %s24, 0
      %p114 = por %p112, %p113
      %s116 = sadd.s32 %s115, 1
      %p119 = scmp.eq.s32.totalorder %s18, 1
      %p120 = scmp.ne.s32.totalorder %s115, %s117
      %p121 = scmp.eq.s32.totalorder %s18, 0
      %p122 = por %p120, %p121
      %p123 = scmp.ne.s32.totalorder %s115, %s117
      %p124 = scmp.eq.s32.totalorder %s23, 1
      %p125 = por %p123, %p124
      %p126 = scmp.ne.s32.totalorder %s117, %s118
      %p127 = scmp.eq.s32.totalorder %s23, 0
      %p128 = por %p126, %p127
      %p129 = scmp.ne.s32.totalorder %s117, %s118
      %p130 = scmp.eq.s32.totalorder %s24, 1
      %p131 = por %p129, %p130
      %p133 = scmp.ne.s32.totalorder %s118, %s132
      %p134 = scmp.eq.s32.totalorder %s24, 0
      %p135 = por %p133, %p134
      %s137 = sadd.s32 %s136, 1
      %p140 = scmp.eq.s32.totalorder %s18, 1
      %p141 = scmp.ne.s32.totalorder %s136, %s138
      %p142 = scmp.eq.s32.totalorder %s18, 0
      %p143 = por %p141, %p142
      %p144 = scmp.ne.s32.totalorder %s136, %s138
      %p145 = scmp.eq.s32.totalorder %s23, 1
      %p146 = por %p144, %p145
      %p147 = scmp.ne.s32.totalorder %s138, %s139
      %p148 = scmp.eq.s32.totalorder %s23, 0
      %p149 = por %p147, %p148
      %p150 = scmp.ne.s32.totalorder %s138, %s139
      %p151 = scmp.eq.s32.totalorder %s24, 1
      %p152 = por %p150, %p151
      %p154 = scmp.ne.s32.totalorder %s139, %s153
      %p155 = scmp.eq.s32.totalorder %s24, 0
      %p156 = por %p154, %p155
      %s158 = sadd.s32 %s157, 1
      %p161 = scmp.eq.s32.totalorder %s18, 1
      %p162 = scmp.ne.s32.totalorder %s157, %s159
      %p163 = scmp.eq.s32.totalorder %s18, 0
      %p164 = por %p162, %p163
      %p165 = scmp.ne.s32.totalorder %s157, %s159
      %p166 = scmp.eq.s32.totalorder %s23, 1
      %p167 = por %p165, %p166
      %p168 = scmp.ne.s32.totalorder %s159, %s160
      %p169 = scmp.eq.s32.totalorder %s23, 0
      %p170 = por %p168, %p169
      %p171 = scmp.ne.s32.totalorder %s159, %s160
      %p172 = scmp.eq.s32.totalorder %s24, 1
      %p173 = por %p171, %p172
      %p175 = scmp.ne.s32.totalorder %s160, %s174
      %p176 = scmp.eq.s32.totalorder %s24, 0
      %p177 = por %p175, %p176
      %s179 = sadd.s32 %s178, 1
      %p182 = scmp.eq.s32.totalorder %s18, 1
      %p183 = scmp.ne.s32.totalorder %s178, %s180
      %p184 = scmp.eq.s32.totalorder %s18, 0
      %p185 = por %p183, %p184
      %p186 = scmp.ne.s32.totalorder %s178, %s180
      %p187 = scmp.eq.s32.totalorder %s23, 1
      %p188 = por %p186, %p187
      %p189 = scmp.ne.s32.totalorder %s180, %s181
      %p190 = scmp.eq.s32.totalorder %s23, 0
      %p191 = por %p189, %p190
      %p192 = scmp.ne.s32.totalorder %s180, %s181
      %p193 = scmp.eq.s32.totalorder %s24, 1
      %p194 = por %p192, %p193
      %p196 = scmp.ne.s32.totalorder %s181, %s195
      %p197 = scmp.eq.s32.totalorder %s24, 0
      %p198 = por %p196, %p197
      %s200 = sadd.s32 %s199, 1
      %p203 = scmp.eq.s32.totalorder %s18, 1
      %p204 = scmp.ne.s32.totalorder %s199, %s201
      %p205 = scmp.eq.s32.totalorder %s18, 0
      %p206 = por %p204, %p205
      %p207 = scmp.ne.s32.totalorder %s199, %s201
      %p208 = scmp.eq.s32.totalorder %s23, 1
      %p209 = por %p207, %p208
      %p210 = scmp.ne.s32.totalorder %s201, %s202
      %p211 = scmp.eq.s32.totalorder %s23, 0
      %p212 = por %p210, %p211
      %p213 = scmp.ne.s32.totalorder %s201, %s202
      %p214 = scmp.eq.s32.totalorder %s24, 1
      %p215 = por %p213, %p214
      %p217 = scmp.ne.s32.totalorder %s202, %s216
      %p218 = scmp.eq.s32.totalorder %s24, 0
      %p219 = por %p217, %p218
      %s220 = ssub.s32 %s18, %s25
      %p221 = scmp.eq.s32.totalorder %s220, 0
      %s223 = sadd.s32 %s222, 1
      %s224 = scalar_select %p221, %s222, %s223
      %p227 = pneg %p221
      %p228 = scmp.eq.s32.totalorder %s18, 1
      %p229 = por %p227, %p228
      %p230 = scmp.ne.s32.totalorder %s222, %s225
      %p231 = scmp.eq.s32.totalorder %s18, 0
      %p232 = por %p230, %p231
      %p233 = scmp.ne.s32.totalorder %s222, %s225
      %p234 = scmp.eq.s32.totalorder %s23, 1
      %p235 = por %p233, %p234
      %p236 = scmp.ne.s32.totalorder %s225, %s226
      %p237 = scmp.eq.s32.totalorder %s23, 0
      %p238 = por %p236, %p237
      %p239 = scmp.ne.s32.totalorder %s225, %s226
      %p240 = scmp.eq.s32.totalorder %s24, 1
      %p241 = por %p239, %p240
      %p243 = scmp.ne.s32.totalorder %s226, %s242
      %p244 = scmp.eq.s32.totalorder %s24, 0
      %p245 = por %p243, %p244
      %p246 = scmp.le.s32.totalorder 1, %s18
      %p247 = scmp.lt.s32.totalorder %s18, 3
      %p248 = pnand %p246, %p247
      %p249 = pneg %p248
      // Predicated region
      $region9: #{cnn_forward.1} parent=5 // pred_check
        _
      $region10: #{cnn_forward.1} parent=5 // pred_check_branch
        %251 = sbr.rel (%p248) target = $region12
      $region11: #{cnn_forward.1} parent=5 // pred_region
        %s252 = ssub.s32 %s18, 1
        // Predicated region
        $region13: #{cnn_forward.1} parent=11 // pred_check
          %p253 = pneg %p65
        $region14: #{cnn_forward.1} parent=11 // pred_check_branch
          %255 = sbr.rel (%p253) target = $region16
        $region15: #{cnn_forward.1} parent=11 // pred_region
          _
        $region16: #{cnn_forward.1} parent=11 // pred_fallthru
          _
        // Predicated region
        $region17: #{cnn_forward.1} parent=11 // pred_check
          %p256 = pneg %p86
        $region18: #{cnn_forward.1} parent=11 // pred_check_branch
          %258 = sbr.rel (%p256) target = $region20
        $region19: #{cnn_forward.1} parent=11 // pred_region
          _
        $region20: #{cnn_forward.1} parent=11 // pred_fallthru
          _
        // Predicated region
        $region21: #{cnn_forward.1} parent=11 // pred_check
          %p259 = pneg %p107
        $region22: #{cnn_forward.1} parent=11 // pred_check_branch
          %261 = sbr.rel (%p259) target = $region24
        $region23: #{cnn_forward.1} parent=11 // pred_region
          _
        $region24: #{cnn_forward.1} parent=11 // pred_fallthru
          _
        // Predicated region
        $region25: #{cnn_forward.1} parent=11 // pred_check
          %p262 = pneg %p128
        $region26: #{cnn_forward.1} parent=11 // pred_check_branch
          %264 = sbr.rel (%p262) target = $region28
        $region27: #{cnn_forward.1} parent=11 // pred_region
          _
        $region28: #{cnn_forward.1} parent=11 // pred_fallthru
          _
        // Predicated region
        $region29: #{cnn_forward.1} parent=11 // pred_check
          %p265 = pneg %p149
        $region30: #{cnn_forward.1} parent=11 // pred_check_branch
          %267 = sbr.rel (%p265) target = $region32
        $region31: #{cnn_forward.1} parent=11 // pred_region
          _
        $region32: #{cnn_forward.1} parent=11 // pred_fallthru
          _
        // Predicated region
        $region33: #{cnn_forward.1} parent=11 // pred_check
          %p268 = pneg %p170
        $region34: #{cnn_forward.1} parent=11 // pred_check_branch
          %270 = sbr.rel (%p268) target = $region36
        $region35: #{cnn_forward.1} parent=11 // pred_region
          _
        $region36: #{cnn_forward.1} parent=11 // pred_fallthru
          _
        // Predicated region
        $region37: #{cnn_forward.1} parent=11 // pred_check
          %p271 = pneg %p191
        $region38: #{cnn_forward.1} parent=11 // pred_check_branch
          %273 = sbr.rel (%p271) target = $region40
        $region39: #{cnn_forward.1} parent=11 // pred_region
          _
        $region40: #{cnn_forward.1} parent=11 // pred_fallthru
          _
        // Predicated region
        $region41: #{cnn_forward.1} parent=11 // pred_check
          %p274 = pneg %p212
        $region42: #{cnn_forward.1} parent=11 // pred_check_branch
          %276 = sbr.rel (%p274) target = $region44
        $region43: #{cnn_forward.1} parent=11 // pred_region
          _
        $region44: #{cnn_forward.1} parent=11 // pred_fallthru
          _
      $region12: #{cnn_forward.1} parent=5 // pred_fallthru
        _
      %p277 = scmp.lt.s32.totalorder %s18, 2
      // Predicated region
      $region45: #{cnn_forward.1} parent=5 // pred_check
        %p278 = pneg %p277
      $region46: #{cnn_forward.1} parent=5 // pred_check_branch
        %280 = sbr.rel (%p278) target = $region48
      $region47: #{cnn_forward.1} parent=5 // pred_region
        // Predicated region
        $region49: #{cnn_forward.1} parent=47 // pred_check
          %p281 = pneg %p38
        $region50: #{cnn_forward.1} parent=47 // pred_check_branch
          %283 = sbr.rel (%p281) target = $region52
        $region51: #{cnn_forward.1} parent=47 // pred_region
          %p284 = scmp.lt.s32.totalorder %s18, 1
          %s285 = scalar_select %p284, %s18, 1
          %s286 = smul.addr %s285, 32
          %s287 = smul.addr %s286, 4
          %s288 = scalar_lea.vmem %s0, %s287
        $region52: #{cnn_forward.1} parent=47 // pred_fallthru
          _
      $region48: #{cnn_forward.1} parent=5 // pred_fallthru
        _
      %p289 = scmp.le.s32.totalorder 1, %s18
      %p290 = scmp.lt.s32.totalorder %s18, 3
      %p291 = pnand %p289, %p290
      %p292 = pneg %p291
      // Predicated region
      $region53: #{cnn_forward.1} parent=5 // pred_check
        _
      $region54: #{cnn_forward.1} parent=5 // pred_check_branch
        %294 = sbr.rel (%p291) target = $region56
      $region55: #{cnn_forward.1} parent=5 // pred_region
        %s295 = ssub.s32 %s18, 1
        %p296 = scmp.lt.s32.totalorder %s23, 1
        %s297 = scalar_select %p296, %s23, 1
        %s298 = smul.addr %s297, 32
        %s299 = smul.addr %s298, 4
        %s300 = scalar_lea.vmem %s0, %s299
        %p301 = pneg %p44
        %p302 = pneg %p41
        %p303 = pneg %p65
        %p304 = pneg %p62
        %p305 = pneg %p86
        %p306 = pneg %p83
        %p307 = pneg %p107
        %p308 = pneg %p104
        %p309 = pneg %p128
        %p310 = pneg %p125
        %p311 = pneg %p149
        %p312 = pneg %p146
        %p313 = pneg %p170
        %p314 = pneg %p167
        %p315 = pneg %p191
        %p316 = pneg %p188
        %p317 = pneg %p212
        %p318 = pneg %p209
        %p319 = pneg %p238
        %p320 = pneg %p235
        %s321 = sand.u32 %s225, 1
        %s322 = scalar_lea.sflag [#allocation7], %s321
        %s323 = sand.u32 %s225, 1
        %s324 = scalar_lea.vmem [#allocation6], %s323
        %p325 = scmp.lt.s32.totalorder %s23, 1
        %s326 = scalar_select %p325, %s23, 1
        %s327 = smul.addr %s326, 32
        %s328 = smul.addr %s327, 4
        %s329 = scalar_lea.vmem %s0, %s328
        %vm331 = vcmask 31744
        %332 = vst.msk [vmem:[#allocation2] sm:$0xff] %vm331, 0.0
        %333 = vst.msk [vmem:[#allocation2 + $0x8] sm:$0xff] %vm331, 0.0
        %vm334 = vcmask 25600
        %335 = vst.msk [vmem:[#allocation2 + $0x10] sm:$0x3] %vm334, 0.0
        %336 = vst.msk [vmem:[#allocation2 + $0x18] sm:$0xff] %vm331, 0.0
        %337 = vst.msk [vmem:[#allocation2 + $0x20] sm:$0xff] %vm331, 0.0
        %338 = vst.msk [vmem:[#allocation2 + $0x28] sm:$0x3] %vm334, 0.0
        %339 = vst.msk [vmem:[#allocation2 + $0x30] sm:$0xff] %vm331, 0.0
        %340 = vst.msk [vmem:[#allocation2 + $0x38] sm:$0xff] %vm331, 0.0
        %341 = vst.msk [vmem:[#allocation2 + $0x40] sm:$0x3] %vm334, 0.0
        %342 = vst.msk [vmem:[#allocation2 + $0x48] sm:$0xff] %vm331, 0.0
        %343 = vst.msk [vmem:[#allocation2 + $0x50] sm:$0xff] %vm331, 0.0
        %344 = vst.msk [vmem:[#allocation2 + $0x58] sm:$0x3] %vm334, 0.0
        %345 = vst.msk [vmem:[#allocation2 + $0x60] sm:$0xff] %vm331, 0.0
        %346 = vst.msk [vmem:[#allocation2 + $0x68] sm:$0xff] %vm331, 0.0
        %347 = vst.msk [vmem:[#allocation2 + $0x70] sm:$0x3] %vm334, 0.0
        %348 = vst.msk [vmem:[#allocation2 + $0x78] sm:$0xff] %vm331, 0.0
        %349 = vst.msk [vmem:[#allocation2 + $0x80] sm:$0xff] %vm331, 0.0
        %350 = vst.msk [vmem:[#allocation2 + $0x88] sm:$0x3] %vm334, 0.0
        %351 = vst.msk [vmem:[#allocation2 + $0x90] sm:$0xff] %vm331, 0.0
        %352 = vst.msk [vmem:[#allocation2 + $0x98] sm:$0xff] %vm331, 0.0
        %353 = vst.msk [vmem:[#allocation2 + $0xa0] sm:$0x3] %vm334, 0.0
        %354 = vst.msk [vmem:[#allocation2 + $0xa8] sm:$0xff] %vm331, 0.0
        %355 = vst.msk [vmem:[#allocation2 + $0xb0] sm:$0xff] %vm331, 0.0
        %356 = vst.msk [vmem:[#allocation2 + $0xb8] sm:$0x3] %vm334, 0.0
        %357 = vst.msk [vmem:[#allocation2 + $0xc0] sm:$0xff] %vm331, 0.0
        %358 = vst.msk [vmem:[#allocation2 + $0xc8] sm:$0xff] %vm331, 0.0
        %359 = vst.msk [vmem:[#allocation2 + $0xd0] sm:$0x3] %vm334, 0.0
        %360 = vst.msk [vmem:[#allocation2 + $0xd8] sm:$0xff] %vm331, 0.0
        %361 = vst.msk [vmem:[#allocation2 + $0xe0] sm:$0xff] %vm331, 0.0
        %362 = vst.msk [vmem:[#allocation2 + $0xe8] sm:$0x3] %vm334, 0.0
        %363 = vst.msk [vmem:[#allocation2 + $0xf0] sm:$0xff] %vm331, 0.0
        %364 = vst.msk [vmem:[#allocation2 + $0xf8] sm:$0xff] %vm331, 0.0
        %365 = vst.msk [vmem:[#allocation2 + $0x100] sm:$0x3] %vm334, 0.0
        %366 = vst.msk [vmem:[#allocation2 + $0x108] sm:$0xff] %vm331, 0.0
        %367 = vst.msk [vmem:[#allocation2 + $0x110] sm:$0xff] %vm331, 0.0
        %368 = vst.msk [vmem:[#allocation2 + $0x118] sm:$0x3] %vm334, 0.0
        %369 = vst.msk [vmem:[#allocation2 + $0x120] sm:$0xff] %vm331, 0.0
        %370 = vst.msk [vmem:[#allocation2 + $0x128] sm:$0xff] %vm331, 0.0
        %371 = vst.msk [vmem:[#allocation2 + $0x130] sm:$0x3] %vm334, 0.0
        %372 = vst.msk [vmem:[#allocation2 + $0x138] sm:$0xff] %vm331, 0.0
        %373 = vst.msk [vmem:[#allocation2 + $0x140] sm:$0xff] %vm331, 0.0
        %374 = vst.msk [vmem:[#allocation2 + $0x148] sm:$0x3] %vm334, 0.0
        %375 = vst.msk [vmem:[#allocation2 + $0x150] sm:$0xff] %vm331, 0.0
        %376 = vst.msk [vmem:[#allocation2 + $0x158] sm:$0xff] %vm331, 0.0
        %377 = vst.msk [vmem:[#allocation2 + $0x160] sm:$0x3] %vm334, 0.0
        %378 = vst.msk [vmem:[#allocation2 + $0x168] sm:$0xff] %vm331, 0.0
        %379 = vst.msk [vmem:[#allocation2 + $0x170] sm:$0xff] %vm331, 0.0
        %380 = vst.msk [vmem:[#allocation2 + $0x178] sm:$0x3] %vm334, 0.0
        %381 = vst.msk [vmem:[#allocation2 + $0x180] sm:$0xff] %vm331, 0.0
        %382 = vst.msk [vmem:[#allocation2 + $0x188] sm:$0xff] %vm331, 0.0
        %383 = vst.msk [vmem:[#allocation2 + $0x190] sm:$0x3] %vm334, 0.0
        %384 = vst.msk [vmem:[#allocation2 + $0x198] sm:$0xff] %vm331, 0.0
        %385 = vst.msk [vmem:[#allocation2 + $0x1a0] sm:$0xff] %vm331, 0.0
        %386 = vst.msk [vmem:[#allocation2 + $0x1a8] sm:$0x3] %vm334, 0.0
        %v387 = vld [vmem:[%s329] sm:$0xf]
        %v388 = vld [vmem:[%s329 + $0x4] sm:$0xf]
        %v389 = vld [vmem:[%s329 + $0x8] sm:$0xf]
        %v390 = vld [vmem:[%s329 + $0xc] sm:$0xf]
        %v391 = vld [vmem:[%s329 + $0x10] sm:$0xf]
        %v392 = vld [vmem:[%s329 + $0x14] sm:$0xf]
        %v393 = vld [vmem:[%s329 + $0x18] sm:$0xf]
        %v394 = vld [vmem:[%s329 + $0x1c] sm:$0xf]
        %v395 = vld [vmem:[%s329 + $0x20] sm:$0xf]
        %v396 = vld [vmem:[%s329 + $0x24] sm:$0xf]
        %v397 = vld [vmem:[%s329 + $0x28] sm:$0xf]
        %v398 = vld [vmem:[%s329 + $0x2c] sm:$0xf]
        %v399 = vld [vmem:[%s329 + $0x30] sm:$0xf]
        %v400 = vld [vmem:[%s329 + $0x34] sm:$0xf]
        %v401 = vld [vmem:[%s329 + $0x38] sm:$0xf]
        %v402 = vld [vmem:[%s329 + $0x3c] sm:$0xf]
        %v403 = vld [vmem:[%s329 + $0x40] sm:$0xf]
        %v404 = vld [vmem:[%s329 + $0x44] sm:$0xf]
        %v405 = vld [vmem:[%s329 + $0x48] sm:$0xf]
        %v406 = vld [vmem:[%s329 + $0x4c] sm:$0xf]
        %v407 = vld [vmem:[%s329 + $0x50] sm:$0xf]
        %v408 = vld [vmem:[%s329 + $0x54] sm:$0xf]
        %v409 = vld [vmem:[%s329 + $0x58] sm:$0xf]
        %v410 = vld [vmem:[%s329 + $0x5c] sm:$0xf]
        %v411 = vld [vmem:[%s329 + $0x60] sm:$0xf]
        %v412 = vld [vmem:[%s329 + $0x64] sm:$0xf]
        %v413 = vld [vmem:[%s329 + $0x68] sm:$0xf]
        %v414 = vld [vmem:[%s329 + $0x6c] sm:$0xf]
        %v415 = vld [vmem:[%s329 + $0x70] sm:$0xf]
        %v416 = vld [vmem:[%s329 + $0x74] sm:$0xf]
        %v417 = vld [vmem:[%s329 + $0x78] sm:$0xf]
        %v418 = vld [vmem:[%s329 + $0x7c] sm:$0xf]
        %v419 = vunpack.c.l.bf16 %v387
        %v420 = vunpack.c.l.bf16 %v388
        %v421 = vunpack.c.l.bf16 %v389
        %v422 = vunpack.c.l.bf16 %v390
        %v423 = vunpack.c.l.bf16 %v391
        %v424 = vunpack.c.l.bf16 %v392
        %v425 = vunpack.c.l.bf16 %v393
        %v426 = vunpack.c.l.bf16 %v394
        %v427 = vunpack.c.l.bf16 %v395
        %v428 = vunpack.c.l.bf16 %v396
        %v429 = vunpack.c.l.bf16 %v397
        %v430 = vunpack.c.l.bf16 %v398
        %v431 = vunpack.c.l.bf16 %v399
        %v432 = vunpack.c.l.bf16 %v400
        %v433 = vunpack.c.l.bf16 %v401
        %v434 = vunpack.c.l.bf16 %v402
        %v435 = vunpack.c.l.bf16 %v403
        %v436 = vunpack.c.l.bf16 %v404
        %v437 = vunpack.c.l.bf16 %v405
        %v438 = vunpack.c.l.bf16 %v406
        %v439 = vunpack.c.l.bf16 %v407
        %v440 = vunpack.c.l.bf16 %v408
        %v441 = vunpack.c.l.bf16 %v409
        %v442 = vunpack.c.l.bf16 %v410
        %v443 = vunpack.c.l.bf16 %v411
        %v444 = vunpack.c.l.bf16 %v412
        %v445 = vunpack.c.l.bf16 %v413
        %v446 = vunpack.c.l.bf16 %v414
        %v447 = vunpack.c.l.bf16 %v415
        %v448 = vunpack.c.l.bf16 %v416
        %v449 = vunpack.c.l.bf16 %v417
        %v450 = vunpack.c.l.bf16 %v418
        %s451 = scalar_lea.vmem [#allocation2], 24
        %452 = vst.msk [vmem:[%s451 + $0x1] sm:$0xff] %vm331, %v419
        %453 = vst.msk [vmem:[%s451 + $0x9] sm:$0xff] %vm331, %v420
        %454 = vst.msk [vmem:[%s451 + $0x19] sm:$0xff] %vm331, %v421
        %455 = vst.msk [vmem:[%s451 + $0x21] sm:$0xff] %vm331, %v422
        %456 = vst.msk [vmem:[%s451 + $0x31] sm:$0xff] %vm331, %v423
        %457 = vst.msk [vmem:[%s451 + $0x39] sm:$0xff] %vm331, %v424
        %458 = vst.msk [vmem:[%s451 + $0x49] sm:$0xff] %vm331, %v425
        %459 = vst.msk [vmem:[%s451 + $0x51] sm:$0xff] %vm331, %v426
        %460 = vst.msk [vmem:[%s451 + $0x61] sm:$0xff] %vm331, %v427
        %461 = vst.msk [vmem:[%s451 + $0x69] sm:$0xff] %vm331, %v428
        %462 = vst.msk [vmem:[%s451 + $0x79] sm:$0xff] %vm331, %v429
        %463 = vst.msk [vmem:[%s451 + $0x81] sm:$0xff] %vm331, %v430
        %464 = vst.msk [vmem:[%s451 + $0x91] sm:$0xff] %vm331, %v431
        %465 = vst.msk [vmem:[%s451 + $0x99] sm:$0xff] %vm331, %v432
        %466 = vst.msk [vmem:[%s451 + $0xa9] sm:$0xff] %vm331, %v433
        %467 = vst.msk [vmem:[%s451 + $0xb1] sm:$0xff] %vm331, %v434
        %468 = vst.msk [vmem:[%s451 + $0xc1] sm:$0xff] %vm331, %v435
        %469 = vst.msk [vmem:[%s451 + $0xc9] sm:$0xff] %vm331, %v436
        %470 = vst.msk [vmem:[%s451 + $0xd9] sm:$0xff] %vm331, %v437
        %471 = vst.msk [vmem:[%s451 + $0xe1] sm:$0xff] %vm331, %v438
        %472 = vst.msk [vmem:[%s451 + $0xf1] sm:$0xff] %vm331, %v439
        %473 = vst.msk [vmem:[%s451 + $0xf9] sm:$0xff] %vm331, %v440
        %474 = vst.msk [vmem:[%s451 + $0x109] sm:$0xff] %vm331, %v441
        %475 = vst.msk [vmem:[%s451 + $0x111] sm:$0xff] %vm331, %v442
        %476 = vst.msk [vmem:[%s451 + $0x121] sm:$0xff] %vm331, %v443
        %477 = vst.msk [vmem:[%s451 + $0x129] sm:$0xff] %vm331, %v444
        %478 = vst.msk [vmem:[%s451 + $0x139] sm:$0xff] %vm331, %v445
        %479 = vst.msk [vmem:[%s451 + $0x141] sm:$0xff] %vm331, %v446
        %480 = vst.msk [vmem:[%s451 + $0x151] sm:$0xff] %vm331, %v447
        %481 = vst.msk [vmem:[%s451 + $0x159] sm:$0xff] %vm331, %v448
        %482 = vst.msk [vmem:[%s451 + $0x169] sm:$0xff] %vm331, %v449
        %483 = vst.msk [vmem:[%s451 + $0x171] sm:$0xff] %vm331, %v450
        %v484 = vld [vmem:[#allocation2] sm:$0xff]
        %v485 = vld [vmem:[#allocation2 + $0x8] sm:$0xff]
        %v486 = vld [vmem:[#allocation2 + $0x18] sm:$0xff]
        %v487 = vld [vmem:[#allocation2 + $0x20] sm:$0xff]
        %v488 = vld [vmem:[#allocation2 + $0x30] sm:$0xff]
        %v489 = vld [vmem:[#allocation2 + $0x38] sm:$0xff]
        %v490 = vld [vmem:[#allocation2 + $0x48] sm:$0xff]
        %v491 = vld [vmem:[#allocation2 + $0x50] sm:$0xff]
        %v492 = vld [vmem:[#allocation2 + $0x60] sm:$0xff]
        %v493 = vld [vmem:[#allocation2 + $0x68] sm:$0xff]
        %v494 = vld [vmem:[#allocation2 + $0x78] sm:$0xff]
        %v495 = vld [vmem:[#allocation2 + $0x80] sm:$0xff]
        %v496 = vld [vmem:[#allocation2 + $0x90] sm:$0xff]
        %v497 = vld [vmem:[#allocation2 + $0x98] sm:$0xff]
        %v498 = vld [vmem:[#allocation2 + $0xa8] sm:$0xff]
        %v499 = vld [vmem:[#allocation2 + $0xb0] sm:$0xff]
        %v500 = vld [vmem:[#allocation2 + $0xc0] sm:$0xff]
        %v501 = vld [vmem:[#allocation2 + $0xc8] sm:$0xff]
        %v502 = vld [vmem:[#allocation2 + $0xd8] sm:$0xff]
        %v503 = vld [vmem:[#allocation2 + $0xe0] sm:$0xff]
        %v504 = vld [vmem:[#allocation2 + $0xf0] sm:$0xff]
        %v505 = vld [vmem:[#allocation2 + $0xf8] sm:$0xff]
        %v506 = vld [vmem:[#allocation2 + $0x108] sm:$0xff]
        %v507 = vld [vmem:[#allocation2 + $0x110] sm:$0xff]
        %v508 = vld [vmem:[#allocation2 + $0x120] sm:$0xff]
        %v509 = vld [vmem:[#allocation2 + $0x128] sm:$0xff]
        %v510 = vld [vmem:[#allocation2 + $0x138] sm:$0xff]
        %v511 = vld [vmem:[#allocation2 + $0x140] sm:$0xff]
        %v512 = vld [vmem:[#allocation2 + $0x150] sm:$0xff]
        %v513 = vld [vmem:[#allocation2 + $0x158] sm:$0xff]
        %v514 = vld [vmem:[#allocation2 + $0x168] sm:$0xff]
        %v515 = vld [vmem:[#allocation2 + $0x170] sm:$0xff]
        %v516 = vpack.c.bf16 %v485, %v484
        %v517 = vpack.c.bf16 %v487, %v486
        %v518 = vpack.c.bf16 %v489, %v488
        %v519 = vpack.c.bf16 %v491, %v490
        %v520 = vpack.c.bf16 %v493, %v492
        %v521 = vpack.c.bf16 %v495, %v494
        %v522 = vpack.c.bf16 %v497, %v496
        %v523 = vpack.c.bf16 %v499, %v498
        %v524 = vpack.c.bf16 %v501, %v500
        %v525 = vpack.c.bf16 %v503, %v502
        %v526 = vpack.c.bf16 %v505, %v504
        %v527 = vpack.c.bf16 %v507, %v506
        %v528 = vpack.c.bf16 %v509, %v508
        %v529 = vpack.c.bf16 %v511, %v510
        %v530 = vpack.c.bf16 %v513, %v512
        %v531 = vpack.c.bf16 %v515, %v514
        %v532 = vld [vmem:[%s1] sm:$0x3]
        %v533 = vld [vmem:[#allocation2 + $0x1] sm:$0xff]
        %v534 = vld [vmem:[#allocation2 + $0x9] sm:$0xff]
        %v535 = vld [vmem:[#allocation2 + $0x19] sm:$0xff]
        %v536 = vld [vmem:[#allocation2 + $0x21] sm:$0xff]
        %v537 = vld [vmem:[#allocation2 + $0x31] sm:$0xff]
        %v538 = vld [vmem:[#allocation2 + $0x39] sm:$0xff]
        %v539 = vld [vmem:[#allocation2 + $0x49] sm:$0xff]
        %v540 = vld [vmem:[#allocation2 + $0x51] sm:$0xff]
        %v541 = vld [vmem:[#allocation2 + $0x61] sm:$0xff]
        %v542 = vld [vmem:[#allocation2 + $0x69] sm:$0xff]
        %v543 = vld [vmem:[#allocation2 + $0x79] sm:$0xff]
        %v544 = vld [vmem:[#allocation2 + $0x81] sm:$0xff]
        %v545 = vld [vmem:[#allocation2 + $0x91] sm:$0xff]
        %v546 = vld [vmem:[#allocation2 + $0x99] sm:$0xff]
        %v547 = vld [vmem:[#allocation2 + $0xa9] sm:$0xff]
        %v548 = vld [vmem:[#allocation2 + $0xb1] sm:$0xff]
        %v549 = vld [vmem:[#allocation2 + $0xc1] sm:$0xff]
        %v550 = vld [vmem:[#allocation2 + $0xc9] sm:$0xff]
        %v551 = vld [vmem:[#allocation2 + $0xd9] sm:$0xff]
        %v552 = vld [vmem:[#allocation2 + $0xe1] sm:$0xff]
        %v553 = vld [vmem:[#allocation2 + $0xf1] sm:$0xff]
        %v554 = vld [vmem:[#allocation2 + $0xf9] sm:$0xff]
        %v555 = vld [vmem:[#allocation2 + $0x109] sm:$0xff]
        %v556 = vld [vmem:[#allocation2 + $0x111] sm:$0xff]
        %v557 = vld [vmem:[#allocation2 + $0x121] sm:$0xff]
        %v558 = vld [vmem:[#allocation2 + $0x129] sm:$0xff]
        %v559 = vld [vmem:[#allocation2 + $0x139] sm:$0xff]
        %v560 = vld [vmem:[#allocation2 + $0x141] sm:$0xff]
        %v561 = vld [vmem:[#allocation2 + $0x151] sm:$0xff]
        %v562 = vld [vmem:[#allocation2 + $0x159] sm:$0xff]
        %v563 = vld [vmem:[#allocation2 + $0x169] sm:$0xff]
        %v564 = vld [vmem:[#allocation2 + $0x171] sm:$0xff]
        %v565 = vpack.c.bf16 %v534, %v533
        %v566 = vpack.c.bf16 %v536, %v535
        %v567 = vpack.c.bf16 %v538, %v537
        %v568 = vpack.c.bf16 %v540, %v539
        %v569 = vpack.c.bf16 %v542, %v541
        %v570 = vpack.c.bf16 %v544, %v543
        %v571 = vpack.c.bf16 %v546, %v545
        %v572 = vpack.c.bf16 %v548, %v547
        %v573 = vpack.c.bf16 %v550, %v549
        %v574 = vpack.c.bf16 %v552, %v551
        %v575 = vpack.c.bf16 %v554, %v553
        %v576 = vpack.c.bf16 %v556, %v555
        %v577 = vpack.c.bf16 %v558, %v557
        %v578 = vpack.c.bf16 %v560, %v559
        %v579 = vpack.c.bf16 %v562, %v561
        %v580 = vpack.c.bf16 %v564, %v563
        %s581 = scalar_lea.vmem %s1, 2
        %v582 = vld [vmem:[%s581] sm:$0x3]
        %v584 = vsel %vm331, %v565, 0
        %v587 = vsel %vm331, %v566, 0
        %v590 = vsel %vm331, %v567, 0
        %v593 = vsel %vm331, %v568, 0
        %v596 = vsel %vm331, %v569, 0
        %v599 = vsel %vm331, %v570, 0
        %v602 = vsel %vm331, %v571, 0
        %v605 = vsel %vm331, %v572, 0
        %v608 = vsel %vm331, %v573, 0
        %v611 = vsel %vm331, %v574, 0
        %v614 = vsel %vm331, %v575, 0
        %v617 = vsel %vm331, %v576, 0
        %v620 = vsel %vm331, %v577, 0
        %v623 = vsel %vm331, %v578, 0
        %v626 = vsel %vm331, %v579, 0
        %v629 = vsel %vm331, %v580, 0
        %vm631 = vcmask 1041408
        %v633 = vsel %vm631, %v582, 0
        %635 = vmatprep.subr.bf16.mxu0 0
        %636 = vmatpush1.bf16.msra.mxu0 0
        %637 = vmatprep.subr.bf16.mxu0 0
        %638 = vmatpush1.bf16.msra.mxu0 0
        %639 = vmatprep.subr.bf16.mxu0 0
        %640 = vmatpush1.bf16.msra.mxu0 0
        %641 = vmatprep.subr.bf16.mxu0 0
        %642 = vmatpush1.bf16.msra.mxu0 0
        %643 = vmatprep.subr.bf16.mxu0 0
        %644 = vmatpush1.bf16.msra.mxu0 0
        %645 = vmatprep.subr.bf16.mxu0 0
        %646 = vmatpush1.bf16.msra.mxu0 0
        %647 = vmatprep.subr.bf16.mxu0 0
        %648 = vmatpush1.bf16.msra.mxu0 0
        %649 = vmatprep.subr.bf16.mxu0 0
        %650 = vmatpush1.bf16.msra.mxu0 %v633
        %651 = vmatprep.subr.bf16.mxu0 0
        %652 = vmatpush2.bf16.msra.mxu0 0
        %653 = vmatprep.subr.bf16.mxu0 0
        %654 = vmatpush2.bf16.msra.mxu0 0
        %655 = vmatprep.subr.bf16.mxu0 0
        %656 = vmatpush2.bf16.msra.mxu0 0
        %657 = vmatprep.subr.bf16.mxu0 0
        %658 = vmatpush2.bf16.msra.mxu0 0
        %659 = vmatprep.subr.bf16.mxu0 0
        %660 = vmatpush2.bf16.msra.mxu0 0
        %661 = vmatprep.subr.bf16.mxu0 0
        %662 = vmatpush2.bf16.msra.mxu0 0
        %663 = vmatprep.subr.bf16.mxu0 0
        %664 = vmatpush2.bf16.msra.mxu0 0
        %665 = vmatprep.subr.bf16.mxu0 0
        %666 = vmatpush2.bf16.msra.mxu0 0
        %667 = vmatprep.mubr.bf16.mxu0 0
        %668 = vmatmul.mubr.bf16.gmra.mxu0 %v584
        %v669 = vpop.f32.mrf.mxu0
        %v670 = vadd.f32 0.0, %v669
        %v671 = vpop.f32.mrf.mxu0
        %v672 = vpop.f32.mrf.mxu0
        %v673 = vadd.f32 0.0, %v672
        %v674 = vpop.f32.mrf.mxu0
        %675 = vmatprep.mubr.bf16.mxu0 0
        %676 = vmatmul.mubr.bf16.gmra.mxu0 %v587
        %v677 = vpop.f32.mrf.mxu0
        %v678 = vadd.f32 0.0, %v677
        %v679 = vpop.f32.mrf.mxu0
        %v680 = vpop.f32.mrf.mxu0
        %v681 = vadd.f32 0.0, %v680
        %v682 = vpop.f32.mrf.mxu0
        %683 = vmatprep.mubr.bf16.mxu0 0
        %684 = vmatmul.mubr.bf16.gmra.mxu0 %v590
        %v685 = vpop.f32.mrf.mxu0
        %v686 = vadd.f32 0.0, %v685
        %v687 = vpop.f32.mrf.mxu0
        %v688 = vpop.f32.mrf.mxu0
        %v689 = vadd.f32 0.0, %v688
        %v690 = vpop.f32.mrf.mxu0
        %691 = vmatprep.mubr.bf16.mxu0 0
        %692 = vmatmul.mubr.bf16.gmra.mxu0 %v593
        %v693 = vpop.f32.mrf.mxu0
        %v694 = vadd.f32 0.0, %v693
        %v695 = vpop.f32.mrf.mxu0
        %v696 = vpop.f32.mrf.mxu0
        %v697 = vadd.f32 0.0, %v696
        %v698 = vpop.f32.mrf.mxu0
        %699 = vmatprep.mubr.bf16.mxu0 0
        %700 = vmatmul.mubr.bf16.gmra.mxu0 %v596
        %v701 = vpop.f32.mrf.mxu0
        %v702 = vadd.f32 0.0, %v701
        %v703 = vpop.f32.mrf.mxu0
        %v704 = vpop.f32.mrf.mxu0
        %v705 = vadd.f32 0.0, %v704
        %v706 = vpop.f32.mrf.mxu0
        %707 = vmatprep.mubr.bf16.mxu0 0
        %708 = vmatmul.mubr.bf16.gmra.mxu0 %v599
        %v709 = vpop.f32.mrf.mxu0
        %v710 = vadd.f32 0.0, %v709
        %v711 = vpop.f32.mrf.mxu0
        %v712 = vpop.f32.mrf.mxu0
        %v713 = vadd.f32 0.0, %v712
        %v714 = vpop.f32.mrf.mxu0
        %715 = vmatprep.mubr.bf16.mxu0 0
        %716 = vmatmul.mubr.bf16.gmra.mxu0 %v602
        %v717 = vpop.f32.mrf.mxu0
        %v718 = vadd.f32 0.0, %v717
        %v719 = vpop.f32.mrf.mxu0
        %v720 = vpop.f32.mrf.mxu0
        %v721 = vadd.f32 0.0, %v720
        %v722 = vpop.f32.mrf.mxu0
        %723 = vmatprep.mubr.bf16.mxu0 0
        %724 = vmatmul.mubr.bf16.gmra.mxu0 %v605
        %v725 = vpop.f32.mrf.mxu0
        %v726 = vadd.f32 0.0, %v725
        %v727 = vpop.f32.mrf.mxu0
        %v728 = vpop.f32.mrf.mxu0
        %v729 = vadd.f32 0.0, %v728
        %v730 = vpop.f32.mrf.mxu0
        %731 = vmatprep.mubr.bf16.mxu0 0
        %732 = vmatmul.mubr.bf16.gmra.mxu0 %v608
        %v733 = vpop.f32.mrf.mxu0
        %v734 = vadd.f32 0.0, %v733
        %v735 = vpop.f32.mrf.mxu0
        %v736 = vpop.f32.mrf.mxu0
        %v737 = vadd.f32 0.0, %v736
        %v738 = vpop.f32.mrf.mxu0
        %739 = vmatprep.mubr.bf16.mxu0 0
        %740 = vmatmul.mubr.bf16.gmra.mxu0 %v611
        %v741 = vpop.f32.mrf.mxu0
        %v742 = vadd.f32 0.0, %v741
        %v743 = vpop.f32.mrf.mxu0
        %v744 = vpop.f32.mrf.mxu0
        %v745 = vadd.f32 0.0, %v744
        %v746 = vpop.f32.mrf.mxu0
        %747 = vmatprep.mubr.bf16.mxu0 0
        %748 = vmatmul.mubr.bf16.gmra.mxu0 %v614
        %v749 = vpop.f32.mrf.mxu0
        %v750 = vadd.f32 0.0, %v749
        %v751 = vpop.f32.mrf.mxu0
        %v752 = vpop.f32.mrf.mxu0
        %v753 = vadd.f32 0.0, %v752
        %v754 = vpop.f32.mrf.mxu0
        %755 = vmatprep.mubr.bf16.mxu0 0
        %756 = vmatmul.mubr.bf16.gmra.mxu0 %v617
        %v757 = vpop.f32.mrf.mxu0
        %v758 = vadd.f32 0.0, %v757
        %v759 = vpop.f32.mrf.mxu0
        %v760 = vpop.f32.mrf.mxu0
        %v761 = vadd.f32 0.0, %v760
        %v762 = vpop.f32.mrf.mxu0
        %763 = vmatprep.mubr.bf16.mxu0 0
        %764 = vmatmul.mubr.bf16.gmra.mxu0 %v620
        %v765 = vpop.f32.mrf.mxu0
        %v766 = vadd.f32 0.0, %v765
        %v767 = vpop.f32.mrf.mxu0
        %v768 = vpop.f32.mrf.mxu0
        %v769 = vadd.f32 0.0, %v768
        %v770 = vpop.f32.mrf.mxu0
        %771 = vmatprep.mubr.bf16.mxu0 0
        %772 = vmatmul.mubr.bf16.gmra.mxu0 %v623
        %v773 = vpop.f32.mrf.mxu0
        %v774 = vadd.f32 0.0, %v773
        %v775 = vpop.f32.mrf.mxu0
        %v776 = vpop.f32.mrf.mxu0
        %v777 = vadd.f32 0.0, %v776
        %v778 = vpop.f32.mrf.mxu0
        %779 = vmatprep.mubr.bf16.mxu0 0
        %780 = vmatmul.mubr.bf16.gmra.mxu0 %v626
        %v781 = vpop.f32.mrf.mxu0
        %v782 = vadd.f32 0.0, %v781
        %v783 = vpop.f32.mrf.mxu0
        %v784 = vpop.f32.mrf.mxu0
        %v785 = vadd.f32 0.0, %v784
        %v786 = vpop.f32.mrf.mxu0
        %787 = vmatprep.mubr.bf16.mxu0 0
        %788 = vmatmul.mubr.bf16.gmra.mxu0 %v629
        %v789 = vpop.f32.mrf.mxu0
        %v790 = vadd.f32 0.0, %v789
        %v791 = vpop.f32.mrf.mxu0
        %v792 = vpop.f32.mrf.mxu0
        %v793 = vadd.f32 0.0, %v792
        %v794 = vpop.f32.mrf.mxu0
        %795 = vdwg.mxu0
        %v797 = vsel %vm331, %v516, 0
        %v800 = vsel %vm331, %v517, 0
        %v803 = vsel %vm331, %v518, 0
        %v806 = vsel %vm331, %v519, 0
        %v809 = vsel %vm331, %v520, 0
        %v812 = vsel %vm331, %v521, 0
        %v815 = vsel %vm331, %v522, 0
        %v818 = vsel %vm331, %v523, 0
        %v821 = vsel %vm331, %v524, 0
        %v824 = vsel %vm331, %v525, 0
        %v827 = vsel %vm331, %v526, 0
        %v830 = vsel %vm331, %v527, 0
        %v833 = vsel %vm331, %v528, 0
        %v836 = vsel %vm331, %v529, 0
        %v839 = vsel %vm331, %v530, 0
        %v842 = vsel %vm331, %v531, 0
        %v845 = vsel %vm631, %v532, 0
        %847 = vmatprep.subr.bf16.mxu0 0
        %848 = vmatpush1.bf16.msra.mxu0 0
        %849 = vmatprep.subr.bf16.mxu0 0
        %850 = vmatpush1.bf16.msra.mxu0 0
        %851 = vmatprep.subr.bf16.mxu0 0
        %852 = vmatpush1.bf16.msra.mxu0 0
        %853 = vmatprep.subr.bf16.mxu0 0
        %854 = vmatpush1.bf16.msra.mxu0 0
        %855 = vmatprep.subr.bf16.mxu0 0
        %856 = vmatpush1.bf16.msra.mxu0 0
        %857 = vmatprep.subr.bf16.mxu0 0
        %858 = vmatpush1.bf16.msra.mxu0 0
        %859 = vmatprep.subr.bf16.mxu0 0
        %860 = vmatpush1.bf16.msra.mxu0 0
        %861 = vmatprep.subr.bf16.mxu0 0
        %862 = vmatpush1.bf16.msra.mxu0 %v845
        %863 = vmatprep.subr.bf16.mxu0 0
        %864 = vmatpush2.bf16.msra.mxu0 0
        %865 = vmatprep.subr.bf16.mxu0 0
        %866 = vmatpush2.bf16.msra.mxu0 0
        %867 = vmatprep.subr.bf16.mxu0 0
        %868 = vmatpush2.bf16.msra.mxu0 0
        %869 = vmatprep.subr.bf16.mxu0 0
        %870 = vmatpush2.bf16.msra.mxu0 0
        %871 = vmatprep.subr.bf16.mxu0 0
        %872 = vmatpush2.bf16.msra.mxu0 0
        %873 = vmatprep.subr.bf16.mxu0 0
        %874 = vmatpush2.bf16.msra.mxu0 0
        %875 = vmatprep.subr.bf16.mxu0 0
        %876 = vmatpush2.bf16.msra.mxu0 0
        %877 = vmatprep.subr.bf16.mxu0 0
        %878 = vmatpush2.bf16.msra.mxu0 0
        %879 = vmatprep.mubr.bf16.mxu0 0
        %880 = vmatmul.mubr.bf16.gmra.mxu0 %v797
        %v881 = vpop.f32.mrf.mxu0
        %v882 = vadd.f32 %v670, %v881
        %v883 = vpop.f32.mrf.mxu0
        %v884 = vpop.f32.mrf.mxu0
        %v885 = vadd.f32 %v673, %v884
        %v886 = vpop.f32.mrf.mxu0
        %887 = vmatprep.mubr.bf16.mxu0 0
        %888 = vmatmul.mubr.bf16.gmra.mxu0 %v800
        %v889 = vpop.f32.mrf.mxu0
        %v890 = vadd.f32 %v678, %v889
        %v891 = vpop.f32.mrf.mxu0
        %v892 = vpop.f32.mrf.mxu0
        %v893 = vadd.f32 %v681, %v892
        %v894 = vpop.f32.mrf.mxu0
        %895 = vmatprep.mubr.bf16.mxu0 0
        %896 = vmatmul.mubr.bf16.gmra.mxu0 %v803
        %v897 = vpop.f32.mrf.mxu0
        %v898 = vadd.f32 %v686, %v897
        %v899 = vpop.f32.mrf.mxu0
        %v900 = vpop.f32.mrf.mxu0
        %v901 = vadd.f32 %v689, %v900
        %v902 = vpop.f32.mrf.mxu0
        %903 = vmatprep.mubr.bf16.mxu0 0
        %904 = vmatmul.mubr.bf16.gmra.mxu0 %v806
        %v905 = vpop.f32.mrf.mxu0
        %v906 = vadd.f32 %v694, %v905
        %v907 = vpop.f32.mrf.mxu0
        %v908 = vpop.f32.mrf.mxu0
        %v909 = vadd.f32 %v697, %v908
        %v910 = vpop.f32.mrf.mxu0
        %911 = vmatprep.mubr.bf16.mxu0 0
        %912 = vmatmul.mubr.bf16.gmra.mxu0 %v809
        %v913 = vpop.f32.mrf.mxu0
        %v914 = vadd.f32 %v702, %v913
        %v915 = vpop.f32.mrf.mxu0
        %v916 = vpop.f32.mrf.mxu0
        %v917 = vadd.f32 %v705, %v916
        %v918 = vpop.f32.mrf.mxu0
        %919 = vmatprep.mubr.bf16.mxu0 0
        %920 = vmatmul.mubr.bf16.gmra.mxu0 %v812
        %v921 = vpop.f32.mrf.mxu0
        %v922 = vadd.f32 %v710, %v921
        %v923 = vpop.f32.mrf.mxu0
        %v924 = vpop.f32.mrf.mxu0
        %v925 = vadd.f32 %v713, %v924
        %v926 = vpop.f32.mrf.mxu0
        %927 = vmatprep.mubr.bf16.mxu0 0
        %928 = vmatmul.mubr.bf16.gmra.mxu0 %v815
        %v929 = vpop.f32.mrf.mxu0
        %v930 = vadd.f32 %v718, %v929
        %v931 = vpop.f32.mrf.mxu0
        %v932 = vpop.f32.mrf.mxu0
        %v933 = vadd.f32 %v721, %v932
        %v934 = vpop.f32.mrf.mxu0
        %935 = vmatprep.mubr.bf16.mxu0 0
        %936 = vmatmul.mubr.bf16.gmra.mxu0 %v818
        %v937 = vpop.f32.mrf.mxu0
        %v938 = vadd.f32 %v726, %v937
        %v939 = vpop.f32.mrf.mxu0
        %v940 = vpop.f32.mrf.mxu0
        %v941 = vadd.f32 %v729, %v940
        %v942 = vpop.f32.mrf.mxu0
        %943 = vmatprep.mubr.bf16.mxu0 0
        %944 = vmatmul.mubr.bf16.gmra.mxu0 %v821
        %v945 = vpop.f32.mrf.mxu0
        %v946 = vadd.f32 %v734, %v945
        %v947 = vpop.f32.mrf.mxu0
        %v948 = vpop.f32.mrf.mxu0
        %v949 = vadd.f32 %v737, %v948
        %v950 = vpop.f32.mrf.mxu0
        %951 = vmatprep.mubr.bf16.mxu0 0
        %952 = vmatmul.mubr.bf16.gmra.mxu0 %v824
        %v953 = vpop.f32.mrf.mxu0
        %v954 = vadd.f32 %v742, %v953
        %v955 = vpop.f32.mrf.mxu0
        %v956 = vpop.f32.mrf.mxu0
        %v957 = vadd.f32 %v745, %v956
        %v958 = vpop.f32.mrf.mxu0
        %959 = vmatprep.mubr.bf16.mxu0 0
        %960 = vmatmul.mubr.bf16.gmra.mxu0 %v827
        %v961 = vpop.f32.mrf.mxu0
        %v962 = vadd.f32 %v750, %v961
        %v963 = vpop.f32.mrf.mxu0
        %v964 = vpop.f32.mrf.mxu0
        %v965 = vadd.f32 %v753, %v964
        %v966 = vpop.f32.mrf.mxu0
        %967 = vmatprep.mubr.bf16.mxu0 0
        %968 = vmatmul.mubr.bf16.gmra.mxu0 %v830
        %v969 = vpop.f32.mrf.mxu0
        %v970 = vadd.f32 %v758, %v969
        %v971 = vpop.f32.mrf.mxu0
        %v972 = vpop.f32.mrf.mxu0
        %v973 = vadd.f32 %v761, %v972
        %v974 = vpop.f32.mrf.mxu0
        %975 = vmatprep.mubr.bf16.mxu0 0
        %976 = vmatmul.mubr.bf16.gmra.mxu0 %v833
        %v977 = vpop.f32.mrf.mxu0
        %v978 = vadd.f32 %v766, %v977
        %v979 = vpop.f32.mrf.mxu0
        %v980 = vpop.f32.mrf.mxu0
        %v981 = vadd.f32 %v769, %v980
        %v982 = vpop.f32.mrf.mxu0
        %983 = vmatprep.mubr.bf16.mxu0 0
        %984 = vmatmul.mubr.bf16.gmra.mxu0 %v836
        %v985 = vpop.f32.mrf.mxu0
        %v986 = vadd.f32 %v774, %v985
        %v987 = vpop.f32.mrf.mxu0
        %v988 = vpop.f32.mrf.mxu0
        %v989 = vadd.f32 %v777, %v988
        %v990 = vpop.f32.mrf.mxu0
        %991 = vmatprep.mubr.bf16.mxu0 0
        %992 = vmatmul.mubr.bf16.gmra.mxu0 %v839
        %v993 = vpop.f32.mrf.mxu0
        %v994 = vadd.f32 %v782, %v993
        %v995 = vpop.f32.mrf.mxu0
        %v996 = vpop.f32.mrf.mxu0
        %v997 = vadd.f32 %v785, %v996
        %v998 = vpop.f32.mrf.mxu0
        %999 = vmatprep.mubr.bf16.mxu0 0
        %1000 = vmatmul.mubr.bf16.gmra.mxu0 %v842
        %v1001 = vpop.f32.mrf.mxu0
        %v1002 = vadd.f32 %v790, %v1001
        %v1003 = vpop.f32.mrf.mxu0
        %v1004 = vpop.f32.mrf.mxu0
        %v1005 = vadd.f32 %v793, %v1004
        %v1006 = vpop.f32.mrf.mxu0
        %1007 = vdwg.mxu0
        %v1008 = vld [vmem:[#allocation2 + $0x2] sm:$0xff]
        %v1009 = vld [vmem:[#allocation2 + $0xa] sm:$0xff]
        %v1010 = vld [vmem:[#allocation2 + $0x1a] sm:$0xff]
        %v1011 = vld [vmem:[#allocation2 + $0x22] sm:$0xff]
        %v1012 = vld [vmem:[#allocation2 + $0x32] sm:$0xff]
        %v1013 = vld [vmem:[#allocation2 + $0x3a] sm:$0xff]
        %v1014 = vld [vmem:[#allocation2 + $0x4a] sm:$0xff]
        %v1015 = vld [vmem:[#allocation2 + $0x52] sm:$0xff]
        %v1016 = vld [vmem:[#allocation2 + $0x62] sm:$0xff]
        %v1017 = vld [vmem:[#allocation2 + $0x6a] sm:$0xff]
        %v1018 = vld [vmem:[#allocation2 + $0x7a] sm:$0xff]
        %v1019 = vld [vmem:[#allocation2 + $0x82] sm:$0xff]
        %v1020 = vld [vmem:[#allocation2 + $0x92] sm:$0xff]
        %v1021 = vld [vmem:[#allocation2 + $0x9a] sm:$0xff]
        %v1022 = vld [vmem:[#allocation2 + $0xaa] sm:$0xff]
        %v1023 = vld [vmem:[#allocation2 + $0xb2] sm:$0xff]
        %v1024 = vld [vmem:[#allocation2 + $0xc2] sm:$0xff]
        %v1025 = vld [vmem:[#allocation2 + $0xca] sm:$0xff]
        %v1026 = vld [vmem:[#allocation2 + $0xda] sm:$0xff]
        %v1027 = vld [vmem:[#allocation2 + $0xe2] sm:$0xff]
        %v1028 = vld [vmem:[#allocation2 + $0xf2] sm:$0xff]
        %v1029 = vld [vmem:[#allocation2 + $0xfa] sm:$0xff]
        %v1030 = vld [vmem:[#allocation2 + $0x10a] sm:$0xff]
        %v1031 = vld [vmem:[#allocation2 + $0x112] sm:$0xff]
        %v1032 = vld [vmem:[#allocation2 + $0x122] sm:$0xff]
        %v1033 = vld [vmem:[#allocation2 + $0x12a] sm:$0xff]
        %v1034 = vld [vmem:[#allocation2 + $0x13a] sm:$0xff]
        %v1035 = vld [vmem:[#allocation2 + $0x142] sm:$0xff]
        %v1036 = vld [vmem:[#allocation2 + $0x152] sm:$0xff]
        %v1037 = vld [vmem:[#allocation2 + $0x15a] sm:$0xff]
        %v1038 = vld [vmem:[#allocation2 + $0x16a] sm:$0xff]
        %v1039 = vld [vmem:[#allocation2 + $0x172] sm:$0xff]
        %v1040 = vpack.c.bf16 %v1009, %v1008
        %v1041 = vpack.c.bf16 %v1011, %v1010
        %v1042 = vpack.c.bf16 %v1013, %v1012
        %v1043 = vpack.c.bf16 %v1015, %v1014
        %v1044 = vpack.c.bf16 %v1017, %v1016
        %v1045 = vpack.c.bf16 %v1019, %v1018
        %v1046 = vpack.c.bf16 %v1021, %v1020
        %v1047 = vpack.c.bf16 %v1023, %v1022
        %v1048 = vpack.c.bf16 %v1025, %v1024
        %v1049 = vpack.c.bf16 %v1027, %v1026
        %v1050 = vpack.c.bf16 %v1029, %v1028
        %v1051 = vpack.c.bf16 %v1031, %v1030
        %v1052 = vpack.c.bf16 %v1033, %v1032
        %v1053 = vpack.c.bf16 %v1035, %v1034
        %v1054 = vpack.c.bf16 %v1037, %v1036
        %v1055 = vpack.c.bf16 %v1039, %v1038
        %s1056 = scalar_lea.vmem %s1, 4
        %v1057 = vld [vmem:[%s1056] sm:$0x3]
        %v1059 = vsel %vm331, %v1040, 0
        %v1062 = vsel %vm331, %v1041, 0
        %v1065 = vsel %vm331, %v1042, 0
        %v1068 = vsel %vm331, %v1043, 0
        %v1071 = vsel %vm331, %v1044, 0
        %v1074 = vsel %vm331, %v1045, 0
        %v1077 = vsel %vm331, %v1046, 0
        %v1080 = vsel %vm331, %v1047, 0
        %v1083 = vsel %vm331, %v1048, 0
        %v1086 = vsel %vm331, %v1049, 0
        %v1089 = vsel %vm331, %v1050, 0
        %v1092 = vsel %vm331, %v1051, 0
        %v1095 = vsel %vm331, %v1052, 0
        %v1098 = vsel %vm331, %v1053, 0
        %v1101 = vsel %vm331, %v1054, 0
        %v1104 = vsel %vm331, %v1055, 0
        %v1107 = vsel %vm631, %v1057, 0
        %1109 = vmatprep.subr.bf16.mxu0 0
        %1110 = vmatpush1.bf16.msra.mxu0 0
        %1111 = vmatprep.subr.bf16.mxu0 0
        %1112 = vmatpush1.bf16.msra.mxu0 0
        %1113 = vmatprep.subr.bf16.mxu0 0
        %1114 = vmatpush1.bf16.msra.mxu0 0
        %1115 = vmatprep.subr.bf16.mxu0 0
        %1116 = vmatpush1.bf16.msra.mxu0 0
        %1117 = vmatprep.subr.bf16.mxu0 0
        %1118 = vmatpush1.bf16.msra.mxu0 0
        %1119 = vmatprep.subr.bf16.mxu0 0
        %1120 = vmatpush1.bf16.msra.mxu0 0
        %1121 = vmatprep.subr.bf16.mxu0 0
        %1122 = vmatpush1.bf16.msra.mxu0 0
        %1123 = vmatprep.subr.bf16.mxu0 0
        %1124 = vmatpush1.bf16.msra.mxu0 %v1107
        %1125 = vmatprep.subr.bf16.mxu0 0
        %1126 = vmatpush2.bf16.msra.mxu0 0
        %1127 = vmatprep.subr.bf16.mxu0 0
        %1128 = vmatpush2.bf16.msra.mxu0 0
        %1129 = vmatprep.subr.bf16.mxu0 0
        %1130 = vmatpush2.bf16.msra.mxu0 0
        %1131 = vmatprep.subr.bf16.mxu0 0
        %1132 = vmatpush2.bf16.msra.mxu0 0
        %1133 = vmatprep.subr.bf16.mxu0 0
        %1134 = vmatpush2.bf16.msra.mxu0 0
        %1135 = vmatprep.subr.bf16.mxu0 0
        %1136 = vmatpush2.bf16.msra.mxu0 0
        %1137 = vmatprep.subr.bf16.mxu0 0
        %1138 = vmatpush2.bf16.msra.mxu0 0
        %1139 = vmatprep.subr.bf16.mxu0 0
        %1140 = vmatpush2.bf16.msra.mxu0 0
        %1141 = vmatprep.mubr.bf16.mxu0 0
        %1142 = vmatmul.mubr.bf16.gmra.mxu0 %v1059
        %v1143 = vpop.f32.mrf.mxu0
        %v1144 = vadd.f32 0.0, %v1143
        %v1145 = vpop.f32.mrf.mxu0
        %v1146 = vpop.f32.mrf.mxu0
        %v1147 = vadd.f32 0.0, %v1146
        %v1148 = vpop.f32.mrf.mxu0
        %1149 = vmatprep.mubr.bf16.mxu0 0
        %1150 = vmatmul.mubr.bf16.gmra.mxu0 %v1062
        %v1151 = vpop.f32.mrf.mxu0
        %v1152 = vadd.f32 0.0, %v1151
        %v1153 = vpop.f32.mrf.mxu0
        %v1154 = vpop.f32.mrf.mxu0
        %v1155 = vadd.f32 0.0, %v1154
        %v1156 = vpop.f32.mrf.mxu0
        %1157 = vmatprep.mubr.bf16.mxu0 0
        %1158 = vmatmul.mubr.bf16.gmra.mxu0 %v1065
        %v1159 = vpop.f32.mrf.mxu0
        %v1160 = vadd.f32 0.0, %v1159
        %v1161 = vpop.f32.mrf.mxu0
        %v1162 = vpop.f32.mrf.mxu0
        %v1163 = vadd.f32 0.0, %v1162
        %v1164 = vpop.f32.mrf.mxu0
        %1165 = vmatprep.mubr.bf16.mxu0 0
        %1166 = vmatmul.mubr.bf16.gmra.mxu0 %v1068
        %v1167 = vpop.f32.mrf.mxu0
        %v1168 = vadd.f32 0.0, %v1167
        %v1169 = vpop.f32.mrf.mxu0
        %v1170 = vpop.f32.mrf.mxu0
        %v1171 = vadd.f32 0.0, %v1170
        %v1172 = vpop.f32.mrf.mxu0
        %1173 = vmatprep.mubr.bf16.mxu0 0
        %1174 = vmatmul.mubr.bf16.gmra.mxu0 %v1071
        %v1175 = vpop.f32.mrf.mxu0
        %v1176 = vadd.f32 0.0, %v1175
        %v1177 = vpop.f32.mrf.mxu0
        %v1178 = vpop.f32.mrf.mxu0
        %v1179 = vadd.f32 0.0, %v1178
        %v1180 = vpop.f32.mrf.mxu0
        %1181 = vmatprep.mubr.bf16.mxu0 0
        %1182 = vmatmul.mubr.bf16.gmra.mxu0 %v1074
        %v1183 = vpop.f32.mrf.mxu0
        %v1184 = vadd.f32 0.0, %v1183
        %v1185 = vpop.f32.mrf.mxu0
        %v1186 = vpop.f32.mrf.mxu0
        %v1187 = vadd.f32 0.0, %v1186
        %v1188 = vpop.f32.mrf.mxu0
        %1189 = vmatprep.mubr.bf16.mxu0 0
        %1190 = vmatmul.mubr.bf16.gmra.mxu0 %v1077
        %v1191 = vpop.f32.mrf.mxu0
        %v1192 = vadd.f32 0.0, %v1191
        %v1193 = vpop.f32.mrf.mxu0
        %v1194 = vpop.f32.mrf.mxu0
        %v1195 = vadd.f32 0.0, %v1194
        %v1196 = vpop.f32.mrf.mxu0
        %1197 = vmatprep.mubr.bf16.mxu0 0
        %1198 = vmatmul.mubr.bf16.gmra.mxu0 %v1080
        %v1199 = vpop.f32.mrf.mxu0
        %v1200 = vadd.f32 0.0, %v1199
        %v1201 = vpop.f32.mrf.mxu0
        %v1202 = vpop.f32.mrf.mxu0
        %v1203 = vadd.f32 0.0, %v1202
        %v1204 = vpop.f32.mrf.mxu0
        %1205 = vmatprep.mubr.bf16.mxu0 0
        %1206 = vmatmul.mubr.bf16.gmra.mxu0 %v1083
        %v1207 = vpop.f32.mrf.mxu0
        %v1208 = vadd.f32 0.0, %v1207
        %v1209 = vpop.f32.mrf.mxu0
        %v1210 = vpop.f32.mrf.mxu0
        %v1211 = vadd.f32 0.0, %v1210
        %v1212 = vpop.f32.mrf.mxu0
        %1213 = vmatprep.mubr.bf16.mxu0 0
        %1214 = vmatmul.mubr.bf16.gmra.mxu0 %v1086
        %v1215 = vpop.f32.mrf.mxu0
        %v1216 = vadd.f32 0.0, %v1215
        %v1217 = vpop.f32.mrf.mxu0
        %v1218 = vpop.f32.mrf.mxu0
        %v1219 = vadd.f32 0.0, %v1218
        %v1220 = vpop.f32.mrf.mxu0
        %1221 = vmatprep.mubr.bf16.mxu0 0
        %1222 = vmatmul.mubr.bf16.gmra.mxu0 %v1089
        %v1223 = vpop.f32.mrf.mxu0
        %v1224 = vadd.f32 0.0, %v1223
        %v1225 = vpop.f32.mrf.mxu0
        %v1226 = vpop.f32.mrf.mxu0
        %v1227 = vadd.f32 0.0, %v1226
        %v1228 = vpop.f32.mrf.mxu0
        %1229 = vmatprep.mubr.bf16.mxu0 0
        %1230 = vmatmul.mubr.bf16.gmra.mxu0 %v1092
        %v1231 = vpop.f32.mrf.mxu0
        %v1232 = vadd.f32 0.0, %v1231
        %v1233 = vpop.f32.mrf.mxu0
        %v1234 = vpop.f32.mrf.mxu0
        %v1235 = vadd.f32 0.0, %v1234
        %v1236 = vpop.f32.mrf.mxu0
        %1237 = vmatprep.mubr.bf16.mxu0 0
        %1238 = vmatmul.mubr.bf16.gmra.mxu0 %v1095
        %v1239 = vpop.f32.mrf.mxu0
        %v1240 = vadd.f32 0.0, %v1239
        %v1241 = vpop.f32.mrf.mxu0
        %v1242 = vpop.f32.mrf.mxu0
        %v1243 = vadd.f32 0.0, %v1242
        %v1244 = vpop.f32.mrf.mxu0
        %1245 = vmatprep.mubr.bf16.mxu0 0
        %1246 = vmatmul.mubr.bf16.gmra.mxu0 %v1098
        %v1247 = vpop.f32.mrf.mxu0
        %v1248 = vadd.f32 0.0, %v1247
        %v1249 = vpop.f32.mrf.mxu0
        %v1250 = vpop.f32.mrf.mxu0
        %v1251 = vadd.f32 0.0, %v1250
        %v1252 = vpop.f32.mrf.mxu0
        %1253 = vmatprep.mubr.bf16.mxu0 0
        %1254 = vmatmul.mubr.bf16.gmra.mxu0 %v1101
        %v1255 = vpop.f32.mrf.mxu0
        %v1256 = vadd.f32 0.0, %v1255
        %v1257 = vpop.f32.mrf.mxu0
        %v1258 = vpop.f32.mrf.mxu0
        %v1259 = vadd.f32 0.0, %v1258
        %v1260 = vpop.f32.mrf.mxu0
        %1261 = vmatprep.mubr.bf16.mxu0 0
        %1262 = vmatmul.mubr.bf16.gmra.mxu0 %v1104
        %v1263 = vpop.f32.mrf.mxu0
        %v1264 = vadd.f32 0.0, %v1263
        %v1265 = vpop.f32.mrf.mxu0
        %v1266 = vpop.f32.mrf.mxu0
        %v1267 = vadd.f32 0.0, %v1266
        %v1268 = vpop.f32.mrf.mxu0
        %1269 = vdwg.mxu0
        %v1270 = vadd.f32 %v882, %v1144
        %v1271 = vadd.f32 %v885, %v1147
        %v1272 = vadd.f32 %v890, %v1152
        %v1273 = vadd.f32 %v893, %v1155
        %v1274 = vadd.f32 %v898, %v1160
        %v1275 = vadd.f32 %v901, %v1163
        %v1276 = vadd.f32 %v906, %v1168
        %v1277 = vadd.f32 %v909, %v1171
        %v1278 = vadd.f32 %v914, %v1176
        %v1279 = vadd.f32 %v917, %v1179
        %v1280 = vadd.f32 %v922, %v1184
        %v1281 = vadd.f32 %v925, %v1187
        %v1282 = vadd.f32 %v930, %v1192
        %v1283 = vadd.f32 %v933, %v1195
        %v1284 = vadd.f32 %v938, %v1200
        %v1285 = vadd.f32 %v941, %v1203
        %v1286 = vadd.f32 %v946, %v1208
        %v1287 = vadd.f32 %v949, %v1211
        %v1288 = vadd.f32 %v954, %v1216
        %v1289 = vadd.f32 %v957, %v1219
        %v1290 = vadd.f32 %v962, %v1224
        %v1291 = vadd.f32 %v965, %v1227
        %v1292 = vadd.f32 %v970, %v1232
        %v1293 = vadd.f32 %v973, %v1235
        %v1294 = vadd.f32 %v978, %v1240
        %v1295 = vadd.f32 %v981, %v1243
        %v1296 = vadd.f32 %v986, %v1248
        %v1297 = vadd.f32 %v989, %v1251
        %v1298 = vadd.f32 %v994, %v1256
        %v1299 = vadd.f32 %v997, %v1259
        %v1300 = vadd.f32 %v1002, %v1264
        %v1301 = vadd.f32 %v1005, %v1267
        %v1302 = vld [vmem:[%s451] sm:$0xff]
        %v1303 = vld [vmem:[%s451 + $0x8] sm:$0xff]
        %v1304 = vld [vmem:[%s451 + $0x18] sm:$0xff]
        %v1305 = vld [vmem:[%s451 + $0x20] sm:$0xff]
        %v1306 = vld [vmem:[%s451 + $0x30] sm:$0xff]
        %v1307 = vld [vmem:[%s451 + $0x38] sm:$0xff]
        %v1308 = vld [vmem:[%s451 + $0x48] sm:$0xff]
        %v1309 = vld [vmem:[%s451 + $0x50] sm:$0xff]
        %v1310 = vld [vmem:[%s451 + $0x60] sm:$0xff]
        %v1311 = vld [vmem:[%s451 + $0x68] sm:$0xff]
        %v1312 = vld [vmem:[%s451 + $0x78] sm:$0xff]
        %v1313 = vld [vmem:[%s451 + $0x80] sm:$0xff]
        %v1314 = vld [vmem:[%s451 + $0x90] sm:$0xff]
        %v1315 = vld [vmem:[%s451 + $0x98] sm:$0xff]
        %v1316 = vld [vmem:[%s451 + $0xa8] sm:$0xff]
        %v1317 = vld [vmem:[%s451 + $0xb0] sm:$0xff]
        %v1318 = vld [vmem:[%s451 + $0xc0] sm:$0xff]
        %v1319 = vld [vmem:[%s451 + $0xc8] sm:$0xff]
        %v1320 = vld [vmem:[%s451 + $0xd8] sm:$0xff]
        %v1321 = vld [vmem:[%s451 + $0xe0] sm:$0xff]
        %v1322 = vld [vmem:[%s451 + $0xf0] sm:$0xff]
        %v1323 = vld [vmem:[%s451 + $0xf8] sm:$0xff]
        %v1324 = vld [vmem:[%s451 + $0x108] sm:$0xff]
        %v1325 = vld [vmem:[%s451 + $0x110] sm:$0xff]
        %v1326 = vld [vmem:[%s451 + $0x120] sm:$0xff]
        %v1327 = vld [vmem:[%s451 + $0x128] sm:$0xff]
        %v1328 = vld [vmem:[%s451 + $0x138] sm:$0xff]
        %v1329 = vld [vmem:[%s451 + $0x140] sm:$0xff]
        %v1330 = vld [vmem:[%s451 + $0x150] sm:$0xff]
        %v1331 = vld [vmem:[%s451 + $0x158] sm:$0xff]
        %v1332 = vld [vmem:[%s451 + $0x168] sm:$0xff]
        %v1333 = vld [vmem:[%s451 + $0x170] sm:$0xff]
        %v1334 = vpack.c.bf16 %v1303, %v1302
        %v1335 = vpack.c.bf16 %v1305, %v1304
        %v1336 = vpack.c.bf16 %v1307, %v1306
        %v1337 = vpack.c.bf16 %v1309, %v1308
        %v1338 = vpack.c.bf16 %v1311, %v1310
        %v1339 = vpack.c.bf16 %v1313, %v1312
        %v1340 = vpack.c.bf16 %v1315, %v1314
        %v1341 = vpack.c.bf16 %v1317, %v1316
        %v1342 = vpack.c.bf16 %v1319, %v1318
        %v1343 = vpack.c.bf16 %v1321, %v1320
        %v1344 = vpack.c.bf16 %v1323, %v1322
        %v1345 = vpack.c.bf16 %v1325, %v1324
        %v1346 = vpack.c.bf16 %v1327, %v1326
        %v1347 = vpack.c.bf16 %v1329, %v1328
        %v1348 = vpack.c.bf16 %v1331, %v1330
        %v1349 = vpack.c.bf16 %v1333, %v1332
        %s1350 = scalar_lea.vmem %s1, 6
        %v1351 = vld [vmem:[%s1350] sm:$0x3]
        %v1353 = vsel %vm331, %v1334, 0
        %v1356 = vsel %vm331, %v1335, 0
        %v1359 = vsel %vm331, %v1336, 0
        %v1362 = vsel %vm331, %v1337, 0
        %v1365 = vsel %vm331, %v1338, 0
        %v1368 = vsel %vm331, %v1339, 0
        %v1371 = vsel %vm331, %v1340, 0
        %v1374 = vsel %vm331, %v1341, 0
        %v1377 = vsel %vm331, %v1342, 0
        %v1380 = vsel %vm331, %v1343, 0
        %v1383 = vsel %vm331, %v1344, 0
        %v1386 = vsel %vm331, %v1345, 0
        %v1389 = vsel %vm331, %v1346, 0
        %v1392 = vsel %vm331, %v1347, 0
        %v1395 = vsel %vm331, %v1348, 0
        %v1398 = vsel %vm331, %v1349, 0
        %v1401 = vsel %vm631, %v1351, 0
        %1403 = vmatprep.subr.bf16.mxu0 0
        %1404 = vmatpush1.bf16.msra.mxu0 0
        %1405 = vmatprep.subr.bf16.mxu0 0
        %1406 = vmatpush1.bf16.msra.mxu0 0
        %1407 = vmatprep.subr.bf16.mxu0 0
        %1408 = vmatpush1.bf16.msra.mxu0 0
        %1409 = vmatprep.subr.bf16.mxu0 0
        %1410 = vmatpush1.bf16.msra.mxu0 0
        %1411 = vmatprep.subr.bf16.mxu0 0
        %1412 = vmatpush1.bf16.msra.mxu0 0
        %1413 = vmatprep.subr.bf16.mxu0 0
        %1414 = vmatpush1.bf16.msra.mxu0 0
        %1415 = vmatprep.subr.bf16.mxu0 0
        %1416 = vmatpush1.bf16.msra.mxu0 0
        %1417 = vmatprep.subr.bf16.mxu0 0
        %1418 = vmatpush1.bf16.msra.mxu0 %v1401
        %1419 = vmatprep.subr.bf16.mxu0 0
        %1420 = vmatpush2.bf16.msra.mxu0 0
        %1421 = vmatprep.subr.bf16.mxu0 0
        %1422 = vmatpush2.bf16.msra.mxu0 0
        %1423 = vmatprep.subr.bf16.mxu0 0
        %1424 = vmatpush2.bf16.msra.mxu0 0
        %1425 = vmatprep.subr.bf16.mxu0 0
        %1426 = vmatpush2.bf16.msra.mxu0 0
        %1427 = vmatprep.subr.bf16.mxu0 0
        %1428 = vmatpush2.bf16.msra.mxu0 0
        %1429 = vmatprep.subr.bf16.mxu0 0
        %1430 = vmatpush2.bf16.msra.mxu0 0
        %1431 = vmatprep.subr.bf16.mxu0 0
        %1432 = vmatpush2.bf16.msra.mxu0 0
        %1433 = vmatprep.subr.bf16.mxu0 0
        %1434 = vmatpush2.bf16.msra.mxu0 0
        %1435 = vmatprep.mubr.bf16.mxu0 0
        %1436 = vmatmul.mubr.bf16.gmra.mxu0 %v1353
        %v1437 = vpop.f32.mrf.mxu0
        %v1438 = vadd.f32 0.0, %v1437
        %v1439 = vpop.f32.mrf.mxu0
        %v1440 = vpop.f32.mrf.mxu0
        %v1441 = vadd.f32 0.0, %v1440
        %v1442 = vpop.f32.mrf.mxu0
        %1443 = vmatprep.mubr.bf16.mxu0 0
        %1444 = vmatmul.mubr.bf16.gmra.mxu0 %v1356
        %v1445 = vpop.f32.mrf.mxu0
        %v1446 = vadd.f32 0.0, %v1445
        %v1447 = vpop.f32.mrf.mxu0
        %v1448 = vpop.f32.mrf.mxu0
        %v1449 = vadd.f32 0.0, %v1448
        %v1450 = vpop.f32.mrf.mxu0
        %1451 = vmatprep.mubr.bf16.mxu0 0
        %1452 = vmatmul.mubr.bf16.gmra.mxu0 %v1359
        %v1453 = vpop.f32.mrf.mxu0
        %v1454 = vadd.f32 0.0, %v1453
        %v1455 = vpop.f32.mrf.mxu0
        %v1456 = vpop.f32.mrf.mxu0
        %v1457 = vadd.f32 0.0, %v1456
        %v1458 = vpop.f32.mrf.mxu0
        %1459 = vmatprep.mubr.bf16.mxu0 0
        %1460 = vmatmul.mubr.bf16.gmra.mxu0 %v1362
        %v1461 = vpop.f32.mrf.mxu0
        %v1462 = vadd.f32 0.0, %v1461
        %v1463 = vpop.f32.mrf.mxu0
        %v1464 = vpop.f32.mrf.mxu0
        %v1465 = vadd.f32 0.0, %v1464
        %v1466 = vpop.f32.mrf.mxu0
        %1467 = vmatprep.mubr.bf16.mxu0 0
        %1468 = vmatmul.mubr.bf16.gmra.mxu0 %v1365
        %v1469 = vpop.f32.mrf.mxu0
        %v1470 = vadd.f32 0.0, %v1469
        %v1471 = vpop.f32.mrf.mxu0
        %v1472 = vpop.f32.mrf.mxu0
        %v1473 = vadd.f32 0.0, %v1472
        %v1474 = vpop.f32.mrf.mxu0
        %1475 = vmatprep.mubr.bf16.mxu0 0
        %1476 = vmatmul.mubr.bf16.gmra.mxu0 %v1368
        %v1477 = vpop.f32.mrf.mxu0
        %v1478 = vadd.f32 0.0, %v1477
        %v1479 = vpop.f32.mrf.mxu0
        %v1480 = vpop.f32.mrf.mxu0
        %v1481 = vadd.f32 0.0, %v1480
        %v1482 = vpop.f32.mrf.mxu0
        %1483 = vmatprep.mubr.bf16.mxu0 0
        %1484 = vmatmul.mubr.bf16.gmra.mxu0 %v1371
        %v1485 = vpop.f32.mrf.mxu0
        %v1486 = vadd.f32 0.0, %v1485
        %v1487 = vpop.f32.mrf.mxu0
        %v1488 = vpop.f32.mrf.mxu0
        %v1489 = vadd.f32 0.0, %v1488
        %v1490 = vpop.f32.mrf.mxu0
        %1491 = vmatprep.mubr.bf16.mxu0 0
        %1492 = vmatmul.mubr.bf16.gmra.mxu0 %v1374
        %v1493 = vpop.f32.mrf.mxu0
        %v1494 = vadd.f32 0.0, %v1493
        %v1495 = vpop.f32.mrf.mxu0
        %v1496 = vpop.f32.mrf.mxu0
        %v1497 = vadd.f32 0.0, %v1496
        %v1498 = vpop.f32.mrf.mxu0
        %1499 = vmatprep.mubr.bf16.mxu0 0
        %1500 = vmatmul.mubr.bf16.gmra.mxu0 %v1377
        %v1501 = vpop.f32.mrf.mxu0
        %v1502 = vadd.f32 0.0, %v1501
        %v1503 = vpop.f32.mrf.mxu0
        %v1504 = vpop.f32.mrf.mxu0
        %v1505 = vadd.f32 0.0, %v1504
        %v1506 = vpop.f32.mrf.mxu0
        %1507 = vmatprep.mubr.bf16.mxu0 0
        %1508 = vmatmul.mubr.bf16.gmra.mxu0 %v1380
        %v1509 = vpop.f32.mrf.mxu0
        %v1510 = vadd.f32 0.0, %v1509
        %v1511 = vpop.f32.mrf.mxu0
        %v1512 = vpop.f32.mrf.mxu0
        %v1513 = vadd.f32 0.0, %v1512
        %v1514 = vpop.f32.mrf.mxu0
        %1515 = vmatprep.mubr.bf16.mxu0 0
        %1516 = vmatmul.mubr.bf16.gmra.mxu0 %v1383
        %v1517 = vpop.f32.mrf.mxu0
        %v1518 = vadd.f32 0.0, %v1517
        %v1519 = vpop.f32.mrf.mxu0
        %v1520 = vpop.f32.mrf.mxu0
        %v1521 = vadd.f32 0.0, %v1520
        %v1522 = vpop.f32.mrf.mxu0
        %1523 = vmatprep.mubr.bf16.mxu0 0
        %1524 = vmatmul.mubr.bf16.gmra.mxu0 %v1386
        %v1525 = vpop.f32.mrf.mxu0
        %v1526 = vadd.f32 0.0, %v1525
        %v1527 = vpop.f32.mrf.mxu0
        %v1528 = vpop.f32.mrf.mxu0
        %v1529 = vadd.f32 0.0, %v1528
        %v1530 = vpop.f32.mrf.mxu0
        %1531 = vmatprep.mubr.bf16.mxu0 0
        %1532 = vmatmul.mubr.bf16.gmra.mxu0 %v1389
        %v1533 = vpop.f32.mrf.mxu0
        %v1534 = vadd.f32 0.0, %v1533
        %v1535 = vpop.f32.mrf.mxu0
        %v1536 = vpop.f32.mrf.mxu0
        %v1537 = vadd.f32 0.0, %v1536
        %v1538 = vpop.f32.mrf.mxu0
        %1539 = vmatprep.mubr.bf16.mxu0 0
        %1540 = vmatmul.mubr.bf16.gmra.mxu0 %v1392
        %v1541 = vpop.f32.mrf.mxu0
        %v1542 = vadd.f32 0.0, %v1541
        %v1543 = vpop.f32.mrf.mxu0
        %v1544 = vpop.f32.mrf.mxu0
        %v1545 = vadd.f32 0.0, %v1544
        %v1546 = vpop.f32.mrf.mxu0
        %1547 = vmatprep.mubr.bf16.mxu0 0
        %1548 = vmatmul.mubr.bf16.gmra.mxu0 %v1395
        %v1549 = vpop.f32.mrf.mxu0
        %v1550 = vadd.f32 0.0, %v1549
        %v1551 = vpop.f32.mrf.mxu0
        %v1552 = vpop.f32.mrf.mxu0
        %v1553 = vadd.f32 0.0, %v1552
        %v1554 = vpop.f32.mrf.mxu0
        %1555 = vmatprep.mubr.bf16.mxu0 0
        %1556 = vmatmul.mubr.bf16.gmra.mxu0 %v1398
        %v1557 = vpop.f32.mrf.mxu0
        %v1558 = vadd.f32 0.0, %v1557
        %v1559 = vpop.f32.mrf.mxu0
        %v1560 = vpop.f32.mrf.mxu0
        %v1561 = vadd.f32 0.0, %v1560
        %v1562 = vpop.f32.mrf.mxu0
        %1563 = vdwg.mxu0
        %v1564 = vadd.f32 %v1270, %v1438
        %v1565 = vadd.f32 %v1271, %v1441
        %v1566 = vadd.f32 %v1272, %v1446
        %v1567 = vadd.f32 %v1273, %v1449
        %v1568 = vadd.f32 %v1274, %v1454
        %v1569 = vadd.f32 %v1275, %v1457
        %v1570 = vadd.f32 %v1276, %v1462
        %v1571 = vadd.f32 %v1277, %v1465
        %v1572 = vadd.f32 %v1278, %v1470
        %v1573 = vadd.f32 %v1279, %v1473
        %v1574 = vadd.f32 %v1280, %v1478
        %v1575 = vadd.f32 %v1281, %v1481
        %v1576 = vadd.f32 %v1282, %v1486
        %v1577 = vadd.f32 %v1283, %v1489
        %v1578 = vadd.f32 %v1284, %v1494
        %v1579 = vadd.f32 %v1285, %v1497
        %v1580 = vadd.f32 %v1286, %v1502
        %v1581 = vadd.f32 %v1287, %v1505
        %v1582 = vadd.f32 %v1288, %v1510
        %v1583 = vadd.f32 %v1289, %v1513
        %v1584 = vadd.f32 %v1290, %v1518
        %v1585 = vadd.f32 %v1291, %v1521
        %v1586 = vadd.f32 %v1292, %v1526
        %v1587 = vadd.f32 %v1293, %v1529
        %v1588 = vadd.f32 %v1294, %v1534
        %v1589 = vadd.f32 %v1295, %v1537
        %v1590 = vadd.f32 %v1296, %v1542
        %v1591 = vadd.f32 %v1297, %v1545
        %v1592 = vadd.f32 %v1298, %v1550
        %v1593 = vadd.f32 %v1299, %v1553
        %v1594 = vadd.f32 %v1300, %v1558
        %v1595 = vadd.f32 %v1301, %v1561
        %v1596 = vld [vmem:[%s451 + $0x1] sm:$0xff]
        %v1597 = vld [vmem:[%s451 + $0x9] sm:$0xff]
        %v1598 = vld [vmem:[%s451 + $0x19] sm:$0xff]
        %v1599 = vld [vmem:[%s451 + $0x21] sm:$0xff]
        %v1600 = vld [vmem:[%s451 + $0x31] sm:$0xff]
        %v1601 = vld [vmem:[%s451 + $0x39] sm:$0xff]
        %v1602 = vld [vmem:[%s451 + $0x49] sm:$0xff]
        %v1603 = vld [vmem:[%s451 + $0x51] sm:$0xff]
        %v1604 = vld [vmem:[%s451 + $0x61] sm:$0xff]
        %v1605 = vld [vmem:[%s451 + $0x69] sm:$0xff]
        %v1606 = vld [vmem:[%s451 + $0x79] sm:$0xff]
        %v1607 = vld [vmem:[%s451 + $0x81] sm:$0xff]
        %v1608 = vld [vmem:[%s451 + $0x91] sm:$0xff]
        %v1609 = vld [vmem:[%s451 + $0x99] sm:$0xff]
        %v1610 = vld [vmem:[%s451 + $0xa9] sm:$0xff]
        %v1611 = vld [vmem:[%s451 + $0xb1] sm:$0xff]
        %v1612 = vld [vmem:[%s451 + $0xc1] sm:$0xff]
        %v1613 = vld [vmem:[%s451 + $0xc9] sm:$0xff]
        %v1614 = vld [vmem:[%s451 + $0xd9] sm:$0xff]
        %v1615 = vld [vmem:[%s451 + $0xe1] sm:$0xff]
        %v1616 = vld [vmem:[%s451 + $0xf1] sm:$0xff]
        %v1617 = vld [vmem:[%s451 + $0xf9] sm:$0xff]
        %v1618 = vld [vmem:[%s451 + $0x109] sm:$0xff]
        %v1619 = vld [vmem:[%s451 + $0x111] sm:$0xff]
        %v1620 = vld [vmem:[%s451 + $0x121] sm:$0xff]
        %v1621 = vld [vmem:[%s451 + $0x129] sm:$0xff]
        %v1622 = vld [vmem:[%s451 + $0x139] sm:$0xff]
        %v1623 = vld [vmem:[%s451 + $0x141] sm:$0xff]
        %v1624 = vld [vmem:[%s451 + $0x151] sm:$0xff]
        %v1625 = vld [vmem:[%s451 + $0x159] sm:$0xff]
        %v1626 = vld [vmem:[%s451 + $0x169] sm:$0xff]
        %v1627 = vld [vmem:[%s451 + $0x171] sm:$0xff]
        %v1628 = vpack.c.bf16 %v1597, %v1596
        %v1629 = vpack.c.bf16 %v1599, %v1598
        %v1630 = vpack.c.bf16 %v1601, %v1600
        %v1631 = vpack.c.bf16 %v1603, %v1602
        %v1632 = vpack.c.bf16 %v1605, %v1604
        %v1633 = vpack.c.bf16 %v1607, %v1606
        %v1634 = vpack.c.bf16 %v1609, %v1608
        %v1635 = vpack.c.bf16 %v1611, %v1610
        %v1636 = vpack.c.bf16 %v1613, %v1612
        %v1637 = vpack.c.bf16 %v1615, %v1614
        %v1638 = vpack.c.bf16 %v1617, %v1616
        %v1639 = vpack.c.bf16 %v1619, %v1618
        %v1640 = vpack.c.bf16 %v1621, %v1620
        %v1641 = vpack.c.bf16 %v1623, %v1622
        %v1642 = vpack.c.bf16 %v1625, %v1624
        %v1643 = vpack.c.bf16 %v1627, %v1626
        %s1644 = scalar_lea.vmem %s1, 8
        %v1645 = vld [vmem:[%s1644] sm:$0x3]
        %v1647 = vsel %vm331, %v1628, 0
        %v1650 = vsel %vm331, %v1629, 0
        %v1653 = vsel %vm331, %v1630, 0
        %v1656 = vsel %vm331, %v1631, 0
        %v1659 = vsel %vm331, %v1632, 0
        %v1662 = vsel %vm331, %v1633, 0
        %v1665 = vsel %vm331, %v1634, 0
        %v1668 = vsel %vm331, %v1635, 0
        %v1671 = vsel %vm331, %v1636, 0
        %v1674 = vsel %vm331, %v1637, 0
        %v1677 = vsel %vm331, %v1638, 0
        %v1680 = vsel %vm331, %v1639, 0
        %v1683 = vsel %vm331, %v1640, 0
        %v1686 = vsel %vm331, %v1641, 0
        %v1689 = vsel %vm331, %v1642, 0
        %v1692 = vsel %vm331, %v1643, 0
        %v1695 = vsel %vm631, %v1645, 0
        %1697 = vmatprep.subr.bf16.mxu0 0
        %1698 = vmatpush1.bf16.msra.mxu0 0
        %1699 = vmatprep.subr.bf16.mxu0 0
        %1700 = vmatpush1.bf16.msra.mxu0 0
        %1701 = vmatprep.subr.bf16.mxu0 0
        %1702 = vmatpush1.bf16.msra.mxu0 0
        %1703 = vmatprep.subr.bf16.mxu0 0
        %1704 = vmatpush1.bf16.msra.mxu0 0
        %1705 = vmatprep.subr.bf16.mxu0 0
        %1706 = vmatpush1.bf16.msra.mxu0 0
        %1707 = vmatprep.subr.bf16.mxu0 0
        %1708 = vmatpush1.bf16.msra.mxu0 0
        %1709 = vmatprep.subr.bf16.mxu0 0
        %1710 = vmatpush1.bf16.msra.mxu0 0
        %1711 = vmatprep.subr.bf16.mxu0 0
        %1712 = vmatpush1.bf16.msra.mxu0 %v1695
        %1713 = vmatprep.subr.bf16.mxu0 0
        %1714 = vmatpush2.bf16.msra.mxu0 0
        %1715 = vmatprep.subr.bf16.mxu0 0
        %1716 = vmatpush2.bf16.msra.mxu0 0
        %1717 = vmatprep.subr.bf16.mxu0 0
        %1718 = vmatpush2.bf16.msra.mxu0 0
        %1719 = vmatprep.subr.bf16.mxu0 0
        %1720 = vmatpush2.bf16.msra.mxu0 0
        %1721 = vmatprep.subr.bf16.mxu0 0
        %1722 = vmatpush2.bf16.msra.mxu0 0
        %1723 = vmatprep.subr.bf16.mxu0 0
        %1724 = vmatpush2.bf16.msra.mxu0 0
        %1725 = vmatprep.subr.bf16.mxu0 0
        %1726 = vmatpush2.bf16.msra.mxu0 0
        %1727 = vmatprep.subr.bf16.mxu0 0
        %1728 = vmatpush2.bf16.msra.mxu0 0
        %1729 = vmatprep.mubr.bf16.mxu0 0
        %1730 = vmatmul.mubr.bf16.gmra.mxu0 %v1647
        %v1731 = vpop.f32.mrf.mxu0
        %v1732 = vadd.f32 0.0, %v1731
        %v1733 = vpop.f32.mrf.mxu0
        %v1734 = vpop.f32.mrf.mxu0
        %v1735 = vadd.f32 0.0, %v1734
        %v1736 = vpop.f32.mrf.mxu0
        %1737 = vmatprep.mubr.bf16.mxu0 0
        %1738 = vmatmul.mubr.bf16.gmra.mxu0 %v1650
        %v1739 = vpop.f32.mrf.mxu0
        %v1740 = vadd.f32 0.0, %v1739
        %v1741 = vpop.f32.mrf.mxu0
        %v1742 = vpop.f32.mrf.mxu0
        %v1743 = vadd.f32 0.0, %v1742
        %v1744 = vpop.f32.mrf.mxu0
        %1745 = vmatprep.mubr.bf16.mxu0 0
        %1746 = vmatmul.mubr.bf16.gmra.mxu0 %v1653
        %v1747 = vpop.f32.mrf.mxu0
        %v1748 = vadd.f32 0.0, %v1747
        %v1749 = vpop.f32.mrf.mxu0
        %v1750 = vpop.f32.mrf.mxu0
        %v1751 = vadd.f32 0.0, %v1750
        %v1752 = vpop.f32.mrf.mxu0
        %1753 = vmatprep.mubr.bf16.mxu0 0
        %1754 = vmatmul.mubr.bf16.gmra.mxu0 %v1656
        %v1755 = vpop.f32.mrf.mxu0
        %v1756 = vadd.f32 0.0, %v1755
        %v1757 = vpop.f32.mrf.mxu0
        %v1758 = vpop.f32.mrf.mxu0
        %v1759 = vadd.f32 0.0, %v1758
        %v1760 = vpop.f32.mrf.mxu0
        %1761 = vmatprep.mubr.bf16.mxu0 0
        %1762 = vmatmul.mubr.bf16.gmra.mxu0 %v1659
        %v1763 = vpop.f32.mrf.mxu0
        %v1764 = vadd.f32 0.0, %v1763
        %v1765 = vpop.f32.mrf.mxu0
        %v1766 = vpop.f32.mrf.mxu0
        %v1767 = vadd.f32 0.0, %v1766
        %v1768 = vpop.f32.mrf.mxu0
        %1769 = vmatprep.mubr.bf16.mxu0 0
        %1770 = vmatmul.mubr.bf16.gmra.mxu0 %v1662
        %v1771 = vpop.f32.mrf.mxu0
        %v1772 = vadd.f32 0.0, %v1771
        %v1773 = vpop.f32.mrf.mxu0
        %v1774 = vpop.f32.mrf.mxu0
        %v1775 = vadd.f32 0.0, %v1774
        %v1776 = vpop.f32.mrf.mxu0
        %1777 = vmatprep.mubr.bf16.mxu0 0
        %1778 = vmatmul.mubr.bf16.gmra.mxu0 %v1665
        %v1779 = vpop.f32.mrf.mxu0
        %v1780 = vadd.f32 0.0, %v1779
        %v1781 = vpop.f32.mrf.mxu0
        %v1782 = vpop.f32.mrf.mxu0
        %v1783 = vadd.f32 0.0, %v1782
        %v1784 = vpop.f32.mrf.mxu0
        %1785 = vmatprep.mubr.bf16.mxu0 0
        %1786 = vmatmul.mubr.bf16.gmra.mxu0 %v1668
        %v1787 = vpop.f32.mrf.mxu0
        %v1788 = vadd.f32 0.0, %v1787
        %v1789 = vpop.f32.mrf.mxu0
        %v1790 = vpop.f32.mrf.mxu0
        %v1791 = vadd.f32 0.0, %v1790
        %v1792 = vpop.f32.mrf.mxu0
        %1793 = vmatprep.mubr.bf16.mxu0 0
        %1794 = vmatmul.mubr.bf16.gmra.mxu0 %v1671
        %v1795 = vpop.f32.mrf.mxu0
        %v1796 = vadd.f32 0.0, %v1795
        %v1797 = vpop.f32.mrf.mxu0
        %v1798 = vpop.f32.mrf.mxu0
        %v1799 = vadd.f32 0.0, %v1798
        %v1800 = vpop.f32.mrf.mxu0
        %1801 = vmatprep.mubr.bf16.mxu0 0
        %1802 = vmatmul.mubr.bf16.gmra.mxu0 %v1674
        %v1803 = vpop.f32.mrf.mxu0
        %v1804 = vadd.f32 0.0, %v1803
        %v1805 = vpop.f32.mrf.mxu0
        %v1806 = vpop.f32.mrf.mxu0
        %v1807 = vadd.f32 0.0, %v1806
        %v1808 = vpop.f32.mrf.mxu0
        %1809 = vmatprep.mubr.bf16.mxu0 0
        %1810 = vmatmul.mubr.bf16.gmra.mxu0 %v1677
        %v1811 = vpop.f32.mrf.mxu0
        %v1812 = vadd.f32 0.0, %v1811
        %v1813 = vpop.f32.mrf.mxu0
        %v1814 = vpop.f32.mrf.mxu0
        %v1815 = vadd.f32 0.0, %v1814
        %v1816 = vpop.f32.mrf.mxu0
        %1817 = vmatprep.mubr.bf16.mxu0 0
        %1818 = vmatmul.mubr.bf16.gmra.mxu0 %v1680
        %v1819 = vpop.f32.mrf.mxu0
        %v1820 = vadd.f32 0.0, %v1819
        %v1821 = vpop.f32.mrf.mxu0
        %v1822 = vpop.f32.mrf.mxu0
        %v1823 = vadd.f32 0.0, %v1822
        %v1824 = vpop.f32.mrf.mxu0
        %1825 = vmatprep.mubr.bf16.mxu0 0
        %1826 = vmatmul.mubr.bf16.gmra.mxu0 %v1683
        %v1827 = vpop.f32.mrf.mxu0
        %v1828 = vadd.f32 0.0, %v1827
        %v1829 = vpop.f32.mrf.mxu0
        %v1830 = vpop.f32.mrf.mxu0
        %v1831 = vadd.f32 0.0, %v1830
        %v1832 = vpop.f32.mrf.mxu0
        %1833 = vmatprep.mubr.bf16.mxu0 0
        %1834 = vmatmul.mubr.bf16.gmra.mxu0 %v1686
        %v1835 = vpop.f32.mrf.mxu0
        %v1836 = vadd.f32 0.0, %v1835
        %v1837 = vpop.f32.mrf.mxu0
        %v1838 = vpop.f32.mrf.mxu0
        %v1839 = vadd.f32 0.0, %v1838
        %v1840 = vpop.f32.mrf.mxu0
        %1841 = vmatprep.mubr.bf16.mxu0 0
        %1842 = vmatmul.mubr.bf16.gmra.mxu0 %v1689
        %v1843 = vpop.f32.mrf.mxu0
        %v1844 = vadd.f32 0.0, %v1843
        %v1845 = vpop.f32.mrf.mxu0
        %v1846 = vpop.f32.mrf.mxu0
        %v1847 = vadd.f32 0.0, %v1846
        %v1848 = vpop.f32.mrf.mxu0
        %1849 = vmatprep.mubr.bf16.mxu0 0
        %1850 = vmatmul.mubr.bf16.gmra.mxu0 %v1692
        %v1851 = vpop.f32.mrf.mxu0
        %v1852 = vadd.f32 0.0, %v1851
        %v1853 = vpop.f32.mrf.mxu0
        %v1854 = vpop.f32.mrf.mxu0
        %v1855 = vadd.f32 0.0, %v1854
        %v1856 = vpop.f32.mrf.mxu0
        %1857 = vdwg.mxu0
        %v1858 = vadd.f32 %v1564, %v1732
        %v1859 = vadd.f32 %v1565, %v1735
        %v1860 = vadd.f32 %v1566, %v1740
        %v1861 = vadd.f32 %v1567, %v1743
        %v1862 = vadd.f32 %v1568, %v1748
        %v1863 = vadd.f32 %v1569, %v1751
        %v1864 = vadd.f32 %v1570, %v1756
        %v1865 = vadd.f32 %v1571, %v1759
        %v1866 = vadd.f32 %v1572, %v1764
        %v1867 = vadd.f32 %v1573, %v1767
        %v1868 = vadd.f32 %v1574, %v1772
        %v1869 = vadd.f32 %v1575, %v1775
        %v1870 = vadd.f32 %v1576, %v1780
        %v1871 = vadd.f32 %v1577, %v1783
        %v1872 = vadd.f32 %v1578, %v1788
        %v1873 = vadd.f32 %v1579, %v1791
        %v1874 = vadd.f32 %v1580, %v1796
        %v1875 = vadd.f32 %v1581, %v1799
        %v1876 = vadd.f32 %v1582, %v1804
        %v1877 = vadd.f32 %v1583, %v1807
        %v1878 = vadd.f32 %v1584, %v1812
        %v1879 = vadd.f32 %v1585, %v1815
        %v1880 = vadd.f32 %v1586, %v1820
        %v1881 = vadd.f32 %v1587, %v1823
        %v1882 = vadd.f32 %v1588, %v1828
        %v1883 = vadd.f32 %v1589, %v1831
        %v1884 = vadd.f32 %v1590, %v1836
        %v1885 = vadd.f32 %v1591, %v1839
        %v1886 = vadd.f32 %v1592, %v1844
        %v1887 = vadd.f32 %v1593, %v1847
        %v1888 = vadd.f32 %v1594, %v1852
        %v1889 = vadd.f32 %v1595, %v1855
        %v1890 = vld [vmem:[%s451 + $0x2] sm:$0xff]
        %v1891 = vld [vmem:[%s451 + $0xa] sm:$0xff]
        %v1892 = vld [vmem:[%s451 + $0x1a] sm:$0xff]
        %v1893 = vld [vmem:[%s451 + $0x22] sm:$0xff]
        %v1894 = vld [vmem:[%s451 + $0x32] sm:$0xff]
        %v1895 = vld [vmem:[%s451 + $0x3a] sm:$0xff]
        %v1896 = vld [vmem:[%s451 + $0x4a] sm:$0xff]
        %v1897 = vld [vmem:[%s451 + $0x52] sm:$0xff]
        %v1898 = vld [vmem:[%s451 + $0x62] sm:$0xff]
        %v1899 = vld [vmem:[%s451 + $0x6a] sm:$0xff]
        %v1900 = vld [vmem:[%s451 + $0x7a] sm:$0xff]
        %v1901 = vld [vmem:[%s451 + $0x82] sm:$0xff]
        %v1902 = vld [vmem:[%s451 + $0x92] sm:$0xff]
        %v1903 = vld [vmem:[%s451 + $0x9a] sm:$0xff]
        %v1904 = vld [vmem:[%s451 + $0xaa] sm:$0xff]
        %v1905 = vld [vmem:[%s451 + $0xb2] sm:$0xff]
        %v1906 = vld [vmem:[%s451 + $0xc2] sm:$0xff]
        %v1907 = vld [vmem:[%s451 + $0xca] sm:$0xff]
        %v1908 = vld [vmem:[%s451 + $0xda] sm:$0xff]
        %v1909 = vld [vmem:[%s451 + $0xe2] sm:$0xff]
        %v1910 = vld [vmem:[%s451 + $0xf2] sm:$0xff]
        %v1911 = vld [vmem:[%s451 + $0xfa] sm:$0xff]
        %v1912 = vld [vmem:[%s451 + $0x10a] sm:$0xff]
        %v1913 = vld [vmem:[%s451 + $0x112] sm:$0xff]
        %v1914 = vld [vmem:[%s451 + $0x122] sm:$0xff]
        %v1915 = vld [vmem:[%s451 + $0x12a] sm:$0xff]
        %v1916 = vld [vmem:[%s451 + $0x13a] sm:$0xff]
        %v1917 = vld [vmem:[%s451 + $0x142] sm:$0xff]
        %v1918 = vld [vmem:[%s451 + $0x152] sm:$0xff]
        %v1919 = vld [vmem:[%s451 + $0x15a] sm:$0xff]
        %v1920 = vld [vmem:[%s451 + $0x16a] sm:$0xff]
        %v1921 = vld [vmem:[%s451 + $0x172] sm:$0xff]
        %v1922 = vpack.c.bf16 %v1891, %v1890
        %v1923 = vpack.c.bf16 %v1893, %v1892
        %v1924 = vpack.c.bf16 %v1895, %v1894
        %v1925 = vpack.c.bf16 %v1897, %v1896
        %v1926 = vpack.c.bf16 %v1899, %v1898
        %v1927 = vpack.c.bf16 %v1901, %v1900
        %v1928 = vpack.c.bf16 %v1903, %v1902
        %v1929 = vpack.c.bf16 %v1905, %v1904
        %v1930 = vpack.c.bf16 %v1907, %v1906
        %v1931 = vpack.c.bf16 %v1909, %v1908
        %v1932 = vpack.c.bf16 %v1911, %v1910
        %v1933 = vpack.c.bf16 %v1913, %v1912
        %v1934 = vpack.c.bf16 %v1915, %v1914
        %v1935 = vpack.c.bf16 %v1917, %v1916
        %v1936 = vpack.c.bf16 %v1919, %v1918
        %v1937 = vpack.c.bf16 %v1921, %v1920
        %s1938 = scalar_lea.vmem %s1, 10
        %v1939 = vld [vmem:[%s1938] sm:$0x3]
        %v1941 = vsel %vm331, %v1922, 0
        %v1944 = vsel %vm331, %v1923, 0
        %v1947 = vsel %vm331, %v1924, 0
        %v1950 = vsel %vm331, %v1925, 0
        %v1953 = vsel %vm331, %v1926, 0
        %v1956 = vsel %vm331, %v1927, 0
        %v1959 = vsel %vm331, %v1928, 0
        %v1962 = vsel %vm331, %v1929, 0
        %v1965 = vsel %vm331, %v1930, 0
        %v1968 = vsel %vm331, %v1931, 0
        %v1971 = vsel %vm331, %v1932, 0
        %v1974 = vsel %vm331, %v1933, 0
        %v1977 = vsel %vm331, %v1934, 0
        %v1980 = vsel %vm331, %v1935, 0
        %v1983 = vsel %vm331, %v1936, 0
        %v1986 = vsel %vm331, %v1937, 0
        %v1989 = vsel %vm631, %v1939, 0
        %1991 = vmatprep.subr.bf16.mxu0 0
        %1992 = vmatpush1.bf16.msra.mxu0 0
        %1993 = vmatprep.subr.bf16.mxu0 0
        %1994 = vmatpush1.bf16.msra.mxu0 0
        %1995 = vmatprep.subr.bf16.mxu0 0
        %1996 = vmatpush1.bf16.msra.mxu0 0
        %1997 = vmatprep.subr.bf16.mxu0 0
        %1998 = vmatpush1.bf16.msra.mxu0 0
        %1999 = vmatprep.subr.bf16.mxu0 0
        %2000 = vmatpush1.bf16.msra.mxu0 0
        %2001 = vmatprep.subr.bf16.mxu0 0
        %2002 = vmatpush1.bf16.msra.mxu0 0
        %2003 = vmatprep.subr.bf16.mxu0 0
        %2004 = vmatpush1.bf16.msra.mxu0 0
        %2005 = vmatprep.subr.bf16.mxu0 0
        %2006 = vmatpush1.bf16.msra.mxu0 %v1989
        %2007 = vmatprep.subr.bf16.mxu0 0
        %2008 = vmatpush2.bf16.msra.mxu0 0
        %2009 = vmatprep.subr.bf16.mxu0 0
        %2010 = vmatpush2.bf16.msra.mxu0 0
        %2011 = vmatprep.subr.bf16.mxu0 0
        %2012 = vmatpush2.bf16.msra.mxu0 0
        %2013 = vmatprep.subr.bf16.mxu0 0
        %2014 = vmatpush2.bf16.msra.mxu0 0
        %2015 = vmatprep.subr.bf16.mxu0 0
        %2016 = vmatpush2.bf16.msra.mxu0 0
        %2017 = vmatprep.subr.bf16.mxu0 0
        %2018 = vmatpush2.bf16.msra.mxu0 0
        %2019 = vmatprep.subr.bf16.mxu0 0
        %2020 = vmatpush2.bf16.msra.mxu0 0
        %2021 = vmatprep.subr.bf16.mxu0 0
        %2022 = vmatpush2.bf16.msra.mxu0 0
        %2023 = vmatprep.mubr.bf16.mxu0 0
        %2024 = vmatmul.mubr.bf16.gmra.mxu0 %v1941
        %v2025 = vpop.f32.mrf.mxu0
        %v2026 = vadd.f32 0.0, %v2025
        %v2027 = vpop.f32.mrf.mxu0
        %v2028 = vpop.f32.mrf.mxu0
        %v2029 = vadd.f32 0.0, %v2028
        %v2030 = vpop.f32.mrf.mxu0
        %2031 = vmatprep.mubr.bf16.mxu0 0
        %2032 = vmatmul.mubr.bf16.gmra.mxu0 %v1944
        %v2033 = vpop.f32.mrf.mxu0
        %v2034 = vadd.f32 0.0, %v2033
        %v2035 = vpop.f32.mrf.mxu0
        %v2036 = vpop.f32.mrf.mxu0
        %v2037 = vadd.f32 0.0, %v2036
        %v2038 = vpop.f32.mrf.mxu0
        %2039 = vmatprep.mubr.bf16.mxu0 0
        %2040 = vmatmul.mubr.bf16.gmra.mxu0 %v1947
        %v2041 = vpop.f32.mrf.mxu0
        %v2042 = vadd.f32 0.0, %v2041
        %v2043 = vpop.f32.mrf.mxu0
        %v2044 = vpop.f32.mrf.mxu0
        %v2045 = vadd.f32 0.0, %v2044
        %v2046 = vpop.f32.mrf.mxu0
        %2047 = vmatprep.mubr.bf16.mxu0 0
        %2048 = vmatmul.mubr.bf16.gmra.mxu0 %v1950
        %v2049 = vpop.f32.mrf.mxu0
        %v2050 = vadd.f32 0.0, %v2049
        %v2051 = vpop.f32.mrf.mxu0
        %v2052 = vpop.f32.mrf.mxu0
        %v2053 = vadd.f32 0.0, %v2052
        %v2054 = vpop.f32.mrf.mxu0
        %2055 = vmatprep.mubr.bf16.mxu0 0
        %2056 = vmatmul.mubr.bf16.gmra.mxu0 %v1953
        %v2057 = vpop.f32.mrf.mxu0
        %v2058 = vadd.f32 0.0, %v2057
        %v2059 = vpop.f32.mrf.mxu0
        %v2060 = vpop.f32.mrf.mxu0
        %v2061 = vadd.f32 0.0, %v2060
        %v2062 = vpop.f32.mrf.mxu0
        %2063 = vmatprep.mubr.bf16.mxu0 0
        %2064 = vmatmul.mubr.bf16.gmra.mxu0 %v1956
        %v2065 = vpop.f32.mrf.mxu0
        %v2066 = vadd.f32 0.0, %v2065
        %v2067 = vpop.f32.mrf.mxu0
        %v2068 = vpop.f32.mrf.mxu0
        %v2069 = vadd.f32 0.0, %v2068
        %v2070 = vpop.f32.mrf.mxu0
        %2071 = vmatprep.mubr.bf16.mxu0 0
        %2072 = vmatmul.mubr.bf16.gmra.mxu0 %v1959
        %v2073 = vpop.f32.mrf.mxu0
        %v2074 = vadd.f32 0.0, %v2073
        %v2075 = vpop.f32.mrf.mxu0
        %v2076 = vpop.f32.mrf.mxu0
        %v2077 = vadd.f32 0.0, %v2076
        %v2078 = vpop.f32.mrf.mxu0
        %2079 = vmatprep.mubr.bf16.mxu0 0
        %2080 = vmatmul.mubr.bf16.gmra.mxu0 %v1962
        %v2081 = vpop.f32.mrf.mxu0
        %v2082 = vadd.f32 0.0, %v2081
        %v2083 = vpop.f32.mrf.mxu0
        %v2084 = vpop.f32.mrf.mxu0
        %v2085 = vadd.f32 0.0, %v2084
        %v2086 = vpop.f32.mrf.mxu0
        %2087 = vmatprep.mubr.bf16.mxu0 0
        %2088 = vmatmul.mubr.bf16.gmra.mxu0 %v1965
        %v2089 = vpop.f32.mrf.mxu0
        %v2090 = vadd.f32 0.0, %v2089
        %v2091 = vpop.f32.mrf.mxu0
        %v2092 = vpop.f32.mrf.mxu0
        %v2093 = vadd.f32 0.0, %v2092
        %v2094 = vpop.f32.mrf.mxu0
        %2095 = vmatprep.mubr.bf16.mxu0 0
        %2096 = vmatmul.mubr.bf16.gmra.mxu0 %v1968
        %v2097 = vpop.f32.mrf.mxu0
        %v2098 = vadd.f32 0.0, %v2097
        %v2099 = vpop.f32.mrf.mxu0
        %v2100 = vpop.f32.mrf.mxu0
        %v2101 = vadd.f32 0.0, %v2100
        %v2102 = vpop.f32.mrf.mxu0
        %2103 = vmatprep.mubr.bf16.mxu0 0
        %2104 = vmatmul.mubr.bf16.gmra.mxu0 %v1971
        %v2105 = vpop.f32.mrf.mxu0
        %v2106 = vadd.f32 0.0, %v2105
        %v2107 = vpop.f32.mrf.mxu0
        %v2108 = vpop.f32.mrf.mxu0
        %v2109 = vadd.f32 0.0, %v2108
        %v2110 = vpop.f32.mrf.mxu0
        %2111 = vmatprep.mubr.bf16.mxu0 0
        %2112 = vmatmul.mubr.bf16.gmra.mxu0 %v1974
        %v2113 = vpop.f32.mrf.mxu0
        %v2114 = vadd.f32 0.0, %v2113
        %v2115 = vpop.f32.mrf.mxu0
        %v2116 = vpop.f32.mrf.mxu0
        %v2117 = vadd.f32 0.0, %v2116
        %v2118 = vpop.f32.mrf.mxu0
        %2119 = vmatprep.mubr.bf16.mxu0 0
        %2120 = vmatmul.mubr.bf16.gmra.mxu0 %v1977
        %v2121 = vpop.f32.mrf.mxu0
        %v2122 = vadd.f32 0.0, %v2121
        %v2123 = vpop.f32.mrf.mxu0
        %v2124 = vpop.f32.mrf.mxu0
        %v2125 = vadd.f32 0.0, %v2124
        %v2126 = vpop.f32.mrf.mxu0
        %2127 = vmatprep.mubr.bf16.mxu0 0
        %2128 = vmatmul.mubr.bf16.gmra.mxu0 %v1980
        %v2129 = vpop.f32.mrf.mxu0
        %v2130 = vadd.f32 0.0, %v2129
        %v2131 = vpop.f32.mrf.mxu0
        %v2132 = vpop.f32.mrf.mxu0
        %v2133 = vadd.f32 0.0, %v2132
        %v2134 = vpop.f32.mrf.mxu0
        %2135 = vmatprep.mubr.bf16.mxu0 0
        %2136 = vmatmul.mubr.bf16.gmra.mxu0 %v1983
        %v2137 = vpop.f32.mrf.mxu0
        %v2138 = vadd.f32 0.0, %v2137
        %v2139 = vpop.f32.mrf.mxu0
        %v2140 = vpop.f32.mrf.mxu0
        %v2141 = vadd.f32 0.0, %v2140
        %v2142 = vpop.f32.mrf.mxu0
        %2143 = vmatprep.mubr.bf16.mxu0 0
        %2144 = vmatmul.mubr.bf16.gmra.mxu0 %v1986
        %v2145 = vpop.f32.mrf.mxu0
        %v2146 = vadd.f32 0.0, %v2145
        %v2147 = vpop.f32.mrf.mxu0
        %v2148 = vpop.f32.mrf.mxu0
        %v2149 = vadd.f32 0.0, %v2148
        %v2150 = vpop.f32.mrf.mxu0
        %2151 = vdwg.mxu0
        %v2152 = vadd.f32 %v1858, %v2026
        %v2153 = vadd.f32 %v1859, %v2029
        %v2154 = vadd.f32 %v1860, %v2034
        %v2155 = vadd.f32 %v1861, %v2037
        %v2156 = vadd.f32 %v1862, %v2042
        %v2157 = vadd.f32 %v1863, %v2045
        %v2158 = vadd.f32 %v1864, %v2050
        %v2159 = vadd.f32 %v1865, %v2053
        %v2160 = vadd.f32 %v1866, %v2058
        %v2161 = vadd.f32 %v1867, %v2061
        %v2162 = vadd.f32 %v1868, %v2066
        %v2163 = vadd.f32 %v1869, %v2069
        %v2164 = vadd.f32 %v1870, %v2074
        %v2165 = vadd.f32 %v1871, %v2077
        %v2166 = vadd.f32 %v1872, %v2082
        %v2167 = vadd.f32 %v1873, %v2085
        %v2168 = vadd.f32 %v1874, %v2090
        %v2169 = vadd.f32 %v1875, %v2093
        %v2170 = vadd.f32 %v1876, %v2098
        %v2171 = vadd.f32 %v1877, %v2101
        %v2172 = vadd.f32 %v1878, %v2106
        %v2173 = vadd.f32 %v1879, %v2109
        %v2174 = vadd.f32 %v1880, %v2114
        %v2175 = vadd.f32 %v1881, %v2117
        %v2176 = vadd.f32 %v1882, %v2122
        %v2177 = vadd.f32 %v1883, %v2125
        %v2178 = vadd.f32 %v1884, %v2130
        %v2179 = vadd.f32 %v1885, %v2133
        %v2180 = vadd.f32 %v1886, %v2138
        %v2181 = vadd.f32 %v1887, %v2141
        %v2182 = vadd.f32 %v1888, %v2146
        %v2183 = vadd.f32 %v1889, %v2149
        %s2184 = scalar_lea.vmem [#allocation2], 48
        %v2185 = vld [vmem:[%s2184] sm:$0xff]
        %v2186 = vld [vmem:[%s2184 + $0x8] sm:$0xff]
        %v2187 = vld [vmem:[%s2184 + $0x18] sm:$0xff]
        %v2188 = vld [vmem:[%s2184 + $0x20] sm:$0xff]
        %v2189 = vld [vmem:[%s2184 + $0x30] sm:$0xff]
        %v2190 = vld [vmem:[%s2184 + $0x38] sm:$0xff]
        %v2191 = vld [vmem:[%s2184 + $0x48] sm:$0xff]
        %v2192 = vld [vmem:[%s2184 + $0x50] sm:$0xff]
        %v2193 = vld [vmem:[%s2184 + $0x60] sm:$0xff]
        %v2194 = vld [vmem:[%s2184 + $0x68] sm:$0xff]
        %v2195 = vld [vmem:[%s2184 + $0x78] sm:$0xff]
        %v2196 = vld [vmem:[%s2184 + $0x80] sm:$0xff]
        %v2197 = vld [vmem:[%s2184 + $0x90] sm:$0xff]
        %v2198 = vld [vmem:[%s2184 + $0x98] sm:$0xff]
        %v2199 = vld [vmem:[%s2184 + $0xa8] sm:$0xff]
        %v2200 = vld [vmem:[%s2184 + $0xb0] sm:$0xff]
        %v2201 = vld [vmem:[%s2184 + $0xc0] sm:$0xff]
        %v2202 = vld [vmem:[%s2184 + $0xc8] sm:$0xff]
        %v2203 = vld [vmem:[%s2184 + $0xd8] sm:$0xff]
        %v2204 = vld [vmem:[%s2184 + $0xe0] sm:$0xff]
        %v2205 = vld [vmem:[%s2184 + $0xf0] sm:$0xff]
        %v2206 = vld [vmem:[%s2184 + $0xf8] sm:$0xff]
        %v2207 = vld [vmem:[%s2184 + $0x108] sm:$0xff]
        %v2208 = vld [vmem:[%s2184 + $0x110] sm:$0xff]
        %v2209 = vld [vmem:[%s2184 + $0x120] sm:$0xff]
        %v2210 = vld [vmem:[%s2184 + $0x128] sm:$0xff]
        %v2211 = vld [vmem:[%s2184 + $0x138] sm:$0xff]
        %v2212 = vld [vmem:[%s2184 + $0x140] sm:$0xff]
        %v2213 = vld [vmem:[%s2184 + $0x150] sm:$0xff]
        %v2214 = vld [vmem:[%s2184 + $0x158] sm:$0xff]
        %v2215 = vld [vmem:[%s2184 + $0x168] sm:$0xff]
        %v2216 = vld [vmem:[%s2184 + $0x170] sm:$0xff]
        %v2217 = vpack.c.bf16 %v2186, %v2185
        %v2218 = vpack.c.bf16 %v2188, %v2187
        %v2219 = vpack.c.bf16 %v2190, %v2189
        %v2220 = vpack.c.bf16 %v2192, %v2191
        %v2221 = vpack.c.bf16 %v2194, %v2193
        %v2222 = vpack.c.bf16 %v2196, %v2195
        %v2223 = vpack.c.bf16 %v2198, %v2197
        %v2224 = vpack.c.bf16 %v2200, %v2199
        %v2225 = vpack.c.bf16 %v2202, %v2201
        %v2226 = vpack.c.bf16 %v2204, %v2203
        %v2227 = vpack.c.bf16 %v2206, %v2205
        %v2228 = vpack.c.bf16 %v2208, %v2207
        %v2229 = vpack.c.bf16 %v2210, %v2209
        %v2230 = vpack.c.bf16 %v2212, %v2211
        %v2231 = vpack.c.bf16 %v2214, %v2213
        %v2232 = vpack.c.bf16 %v2216, %v2215
        %s2233 = scalar_lea.vmem %s1, 12
        %v2234 = vld [vmem:[%s2233] sm:$0x3]
        %v2236 = vsel %vm331, %v2217, 0
        %v2239 = vsel %vm331, %v2218, 0
        %v2242 = vsel %vm331, %v2219, 0
        %v2245 = vsel %vm331, %v2220, 0
        %v2248 = vsel %vm331, %v2221, 0
        %v2251 = vsel %vm331, %v2222, 0
        %v2254 = vsel %vm331, %v2223, 0
        %v2257 = vsel %vm331, %v2224, 0
        %v2260 = vsel %vm331, %v2225, 0
        %v2263 = vsel %vm331, %v2226, 0
        %v2266 = vsel %vm331, %v2227, 0
        %v2269 = vsel %vm331, %v2228, 0
        %v2272 = vsel %vm331, %v2229, 0
        %v2275 = vsel %vm331, %v2230, 0
        %v2278 = vsel %vm331, %v2231, 0
        %v2281 = vsel %vm331, %v2232, 0
        %v2284 = vsel %vm631, %v2234, 0
        %2286 = vmatprep.subr.bf16.mxu0 0
        %2287 = vmatpush1.bf16.msra.mxu0 0
        %2288 = vmatprep.subr.bf16.mxu0 0
        %2289 = vmatpush1.bf16.msra.mxu0 0
        %2290 = vmatprep.subr.bf16.mxu0 0
        %2291 = vmatpush1.bf16.msra.mxu0 0
        %2292 = vmatprep.subr.bf16.mxu0 0
        %2293 = vmatpush1.bf16.msra.mxu0 0
        %2294 = vmatprep.subr.bf16.mxu0 0
        %2295 = vmatpush1.bf16.msra.mxu0 0
        %2296 = vmatprep.subr.bf16.mxu0 0
        %2297 = vmatpush1.bf16.msra.mxu0 0
        %2298 = vmatprep.subr.bf16.mxu0 0
        %2299 = vmatpush1.bf16.msra.mxu0 0
        %2300 = vmatprep.subr.bf16.mxu0 0
        %2301 = vmatpush1.bf16.msra.mxu0 %v2284
        %2302 = vmatprep.subr.bf16.mxu0 0
        %2303 = vmatpush2.bf16.msra.mxu0 0
        %2304 = vmatprep.subr.bf16.mxu0 0
        %2305 = vmatpush2.bf16.msra.mxu0 0
        %2306 = vmatprep.subr.bf16.mxu0 0
        %2307 = vmatpush2.bf16.msra.mxu0 0
        %2308 = vmatprep.subr.bf16.mxu0 0
        %2309 = vmatpush2.bf16.msra.mxu0 0
        %2310 = vmatprep.subr.bf16.mxu0 0
        %2311 = vmatpush2.bf16.msra.mxu0 0
        %2312 = vmatprep.subr.bf16.mxu0 0
        %2313 = vmatpush2.bf16.msra.mxu0 0
        %2314 = vmatprep.subr.bf16.mxu0 0
        %2315 = vmatpush2.bf16.msra.mxu0 0
        %2316 = vmatprep.subr.bf16.mxu0 0
        %2317 = vmatpush2.bf16.msra.mxu0 0
        %2318 = vmatprep.mubr.bf16.mxu0 0
        %2319 = vmatmul.mubr.bf16.gmra.mxu0 %v2236
        %v2320 = vpop.f32.mrf.mxu0
        %v2321 = vadd.f32 0.0, %v2320
        %v2322 = vpop.f32.mrf.mxu0
        %v2323 = vpop.f32.mrf.mxu0
        %v2324 = vadd.f32 0.0, %v2323
        %v2325 = vpop.f32.mrf.mxu0
        %2326 = vmatprep.mubr.bf16.mxu0 0
        %2327 = vmatmul.mubr.bf16.gmra.mxu0 %v2239
        %v2328 = vpop.f32.mrf.mxu0
        %v2329 = vadd.f32 0.0, %v2328
        %v2330 = vpop.f32.mrf.mxu0
        %v2331 = vpop.f32.mrf.mxu0
        %v2332 = vadd.f32 0.0, %v2331
        %v2333 = vpop.f32.mrf.mxu0
        %2334 = vmatprep.mubr.bf16.mxu0 0
        %2335 = vmatmul.mubr.bf16.gmra.mxu0 %v2242
        %v2336 = vpop.f32.mrf.mxu0
        %v2337 = vadd.f32 0.0, %v2336
        %v2338 = vpop.f32.mrf.mxu0
        %v2339 = vpop.f32.mrf.mxu0
        %v2340 = vadd.f32 0.0, %v2339
        %v2341 = vpop.f32.mrf.mxu0
        %2342 = vmatprep.mubr.bf16.mxu0 0
        %2343 = vmatmul.mubr.bf16.gmra.mxu0 %v2245
        %v2344 = vpop.f32.mrf.mxu0
        %v2345 = vadd.f32 0.0, %v2344
        %v2346 = vpop.f32.mrf.mxu0
        %v2347 = vpop.f32.mrf.mxu0
        %v2348 = vadd.f32 0.0, %v2347
        %v2349 = vpop.f32.mrf.mxu0
        %2350 = vmatprep.mubr.bf16.mxu0 0
        %2351 = vmatmul.mubr.bf16.gmra.mxu0 %v2248
        %v2352 = vpop.f32.mrf.mxu0
        %v2353 = vadd.f32 0.0, %v2352
        %v2354 = vpop.f32.mrf.mxu0
        %v2355 = vpop.f32.mrf.mxu0
        %v2356 = vadd.f32 0.0, %v2355
        %v2357 = vpop.f32.mrf.mxu0
        %2358 = vmatprep.mubr.bf16.mxu0 0
        %2359 = vmatmul.mubr.bf16.gmra.mxu0 %v2251
        %v2360 = vpop.f32.mrf.mxu0
        %v2361 = vadd.f32 0.0, %v2360
        %v2362 = vpop.f32.mrf.mxu0
        %v2363 = vpop.f32.mrf.mxu0
        %v2364 = vadd.f32 0.0, %v2363
        %v2365 = vpop.f32.mrf.mxu0
        %2366 = vmatprep.mubr.bf16.mxu0 0
        %2367 = vmatmul.mubr.bf16.gmra.mxu0 %v2254
        %v2368 = vpop.f32.mrf.mxu0
        %v2369 = vadd.f32 0.0, %v2368
        %v2370 = vpop.f32.mrf.mxu0
        %v2371 = vpop.f32.mrf.mxu0
        %v2372 = vadd.f32 0.0, %v2371
        %v2373 = vpop.f32.mrf.mxu0
        %2374 = vmatprep.mubr.bf16.mxu0 0
        %2375 = vmatmul.mubr.bf16.gmra.mxu0 %v2257
        %v2376 = vpop.f32.mrf.mxu0
        %v2377 = vadd.f32 0.0, %v2376
        %v2378 = vpop.f32.mrf.mxu0
        %v2379 = vpop.f32.mrf.mxu0
        %v2380 = vadd.f32 0.0, %v2379
        %v2381 = vpop.f32.mrf.mxu0
        %2382 = vmatprep.mubr.bf16.mxu0 0
        %2383 = vmatmul.mubr.bf16.gmra.mxu0 %v2260
        %v2384 = vpop.f32.mrf.mxu0
        %v2385 = vadd.f32 0.0, %v2384
        %v2386 = vpop.f32.mrf.mxu0
        %v2387 = vpop.f32.mrf.mxu0
        %v2388 = vadd.f32 0.0, %v2387
        %v2389 = vpop.f32.mrf.mxu0
        %2390 = vmatprep.mubr.bf16.mxu0 0
        %2391 = vmatmul.mubr.bf16.gmra.mxu0 %v2263
        %v2392 = vpop.f32.mrf.mxu0
        %v2393 = vadd.f32 0.0, %v2392
        %v2394 = vpop.f32.mrf.mxu0
        %v2395 = vpop.f32.mrf.mxu0
        %v2396 = vadd.f32 0.0, %v2395
        %v2397 = vpop.f32.mrf.mxu0
        %2398 = vmatprep.mubr.bf16.mxu0 0
        %2399 = vmatmul.mubr.bf16.gmra.mxu0 %v2266
        %v2400 = vpop.f32.mrf.mxu0
        %v2401 = vadd.f32 0.0, %v2400
        %v2402 = vpop.f32.mrf.mxu0
        %v2403 = vpop.f32.mrf.mxu0
        %v2404 = vadd.f32 0.0, %v2403
        %v2405 = vpop.f32.mrf.mxu0
        %2406 = vmatprep.mubr.bf16.mxu0 0
        %2407 = vmatmul.mubr.bf16.gmra.mxu0 %v2269
        %v2408 = vpop.f32.mrf.mxu0
        %v2409 = vadd.f32 0.0, %v2408
        %v2410 = vpop.f32.mrf.mxu0
        %v2411 = vpop.f32.mrf.mxu0
        %v2412 = vadd.f32 0.0, %v2411
        %v2413 = vpop.f32.mrf.mxu0
        %2414 = vmatprep.mubr.bf16.mxu0 0
        %2415 = vmatmul.mubr.bf16.gmra.mxu0 %v2272
        %v2416 = vpop.f32.mrf.mxu0
        %v2417 = vadd.f32 0.0, %v2416
        %v2418 = vpop.f32.mrf.mxu0
        %v2419 = vpop.f32.mrf.mxu0
        %v2420 = vadd.f32 0.0, %v2419
        %v2421 = vpop.f32.mrf.mxu0
        %2422 = vmatprep.mubr.bf16.mxu0 0
        %2423 = vmatmul.mubr.bf16.gmra.mxu0 %v2275
        %v2424 = vpop.f32.mrf.mxu0
        %v2425 = vadd.f32 0.0, %v2424
        %v2426 = vpop.f32.mrf.mxu0
        %v2427 = vpop.f32.mrf.mxu0
        %v2428 = vadd.f32 0.0, %v2427
        %v2429 = vpop.f32.mrf.mxu0
        %2430 = vmatprep.mubr.bf16.mxu0 0
        %2431 = vmatmul.mubr.bf16.gmra.mxu0 %v2278
        %v2432 = vpop.f32.mrf.mxu0
        %v2433 = vadd.f32 0.0, %v2432
        %v2434 = vpop.f32.mrf.mxu0
        %v2435 = vpop.f32.mrf.mxu0
        %v2436 = vadd.f32 0.0, %v2435
        %v2437 = vpop.f32.mrf.mxu0
        %2438 = vmatprep.mubr.bf16.mxu0 0
        %2439 = vmatmul.mubr.bf16.gmra.mxu0 %v2281
        %v2440 = vpop.f32.mrf.mxu0
        %v2441 = vadd.f32 0.0, %v2440
        %v2442 = vpop.f32.mrf.mxu0
        %v2443 = vpop.f32.mrf.mxu0
        %v2444 = vadd.f32 0.0, %v2443
        %v2445 = vpop.f32.mrf.mxu0
        %2446 = vdwg.mxu0
        %v2447 = vadd.f32 %v2152, %v2321
        %v2448 = vadd.f32 %v2153, %v2324
        %v2449 = vadd.f32 %v2154, %v2329
        %v2450 = vadd.f32 %v2155, %v2332
        %v2451 = vadd.f32 %v2156, %v2337
        %v2452 = vadd.f32 %v2157, %v2340
        %v2453 = vadd.f32 %v2158, %v2345
        %v2454 = vadd.f32 %v2159, %v2348
        %v2455 = vadd.f32 %v2160, %v2353
        %v2456 = vadd.f32 %v2161, %v2356
        %v2457 = vadd.f32 %v2162, %v2361
        %v2458 = vadd.f32 %v2163, %v2364
        %v2459 = vadd.f32 %v2164, %v2369
        %v2460 = vadd.f32 %v2165, %v2372
        %v2461 = vadd.f32 %v2166, %v2377
        %v2462 = vadd.f32 %v2167, %v2380
        %v2463 = vadd.f32 %v2168, %v2385
        %v2464 = vadd.f32 %v2169, %v2388
        %v2465 = vadd.f32 %v2170, %v2393
        %v2466 = vadd.f32 %v2171, %v2396
        %v2467 = vadd.f32 %v2172, %v2401
        %v2468 = vadd.f32 %v2173, %v2404
        %v2469 = vadd.f32 %v2174, %v2409
        %v2470 = vadd.f32 %v2175, %v2412
        %v2471 = vadd.f32 %v2176, %v2417
        %v2472 = vadd.f32 %v2177, %v2420
        %v2473 = vadd.f32 %v2178, %v2425
        %v2474 = vadd.f32 %v2179, %v2428
        %v2475 = vadd.f32 %v2180, %v2433
        %v2476 = vadd.f32 %v2181, %v2436
        %v2477 = vadd.f32 %v2182, %v2441
        %v2478 = vadd.f32 %v2183, %v2444
        %v2479 = vld [vmem:[%s2184 + $0x1] sm:$0xff]
        %v2480 = vld [vmem:[%s2184 + $0x9] sm:$0xff]
        %v2481 = vld [vmem:[%s2184 + $0x19] sm:$0xff]
        %v2482 = vld [vmem:[%s2184 + $0x21] sm:$0xff]
        %v2483 = vld [vmem:[%s2184 + $0x31] sm:$0xff]
        %v2484 = vld [vmem:[%s2184 + $0x39] sm:$0xff]
        %v2485 = vld [vmem:[%s2184 + $0x49] sm:$0xff]
        %v2486 = vld [vmem:[%s2184 + $0x51] sm:$0xff]
        %v2487 = vld [vmem:[%s2184 + $0x61] sm:$0xff]
        %v2488 = vld [vmem:[%s2184 + $0x69] sm:$0xff]
        %v2489 = vld [vmem:[%s2184 + $0x79] sm:$0xff]
        %v2490 = vld [vmem:[%s2184 + $0x81] sm:$0xff]
        %v2491 = vld [vmem:[%s2184 + $0x91] sm:$0xff]
        %v2492 = vld [vmem:[%s2184 + $0x99] sm:$0xff]
        %v2493 = vld [vmem:[%s2184 + $0xa9] sm:$0xff]
        %v2494 = vld [vmem:[%s2184 + $0xb1] sm:$0xff]
        %v2495 = vld [vmem:[%s2184 + $0xc1] sm:$0xff]
        %v2496 = vld [vmem:[%s2184 + $0xc9] sm:$0xff]
        %v2497 = vld [vmem:[%s2184 + $0xd9] sm:$0xff]
        %v2498 = vld [vmem:[%s2184 + $0xe1] sm:$0xff]
        %v2499 = vld [vmem:[%s2184 + $0xf1] sm:$0xff]
        %v2500 = vld [vmem:[%s2184 + $0xf9] sm:$0xff]
        %v2501 = vld [vmem:[%s2184 + $0x109] sm:$0xff]
        %v2502 = vld [vmem:[%s2184 + $0x111] sm:$0xff]
        %v2503 = vld [vmem:[%s2184 + $0x121] sm:$0xff]
        %v2504 = vld [vmem:[%s2184 + $0x129] sm:$0xff]
        %v2505 = vld [vmem:[%s2184 + $0x139] sm:$0xff]
        %v2506 = vld [vmem:[%s2184 + $0x141] sm:$0xff]
        %v2507 = vld [vmem:[%s2184 + $0x151] sm:$0xff]
        %v2508 = vld [vmem:[%s2184 + $0x159] sm:$0xff]
        %v2509 = vld [vmem:[%s2184 + $0x169] sm:$0xff]
        %v2510 = vld [vmem:[%s2184 + $0x171] sm:$0xff]
        %v2511 = vpack.c.bf16 %v2480, %v2479
        %v2512 = vpack.c.bf16 %v2482, %v2481
        %v2513 = vpack.c.bf16 %v2484, %v2483
        %v2514 = vpack.c.bf16 %v2486, %v2485
        %v2515 = vpack.c.bf16 %v2488, %v2487
        %v2516 = vpack.c.bf16 %v2490, %v2489
        %v2517 = vpack.c.bf16 %v2492, %v2491
        %v2518 = vpack.c.bf16 %v2494, %v2493
        %v2519 = vpack.c.bf16 %v2496, %v2495
        %v2520 = vpack.c.bf16 %v2498, %v2497
        %v2521 = vpack.c.bf16 %v2500, %v2499
        %v2522 = vpack.c.bf16 %v2502, %v2501
        %v2523 = vpack.c.bf16 %v2504, %v2503
        %v2524 = vpack.c.bf16 %v2506, %v2505
        %v2525 = vpack.c.bf16 %v2508, %v2507
        %v2526 = vpack.c.bf16 %v2510, %v2509
        %s2527 = scalar_lea.vmem %s1, 14
        %v2528 = vld [vmem:[%s2527] sm:$0x3]
        %v2530 = vsel %vm331, %v2511, 0
        %v2533 = vsel %vm331, %v2512, 0
        %v2536 = vsel %vm331, %v2513, 0
        %v2539 = vsel %vm331, %v2514, 0
        %v2542 = vsel %vm331, %v2515, 0
        %v2545 = vsel %vm331, %v2516, 0
        %v2548 = vsel %vm331, %v2517, 0
        %v2551 = vsel %vm331, %v2518, 0
        %v2554 = vsel %vm331, %v2519, 0
        %v2557 = vsel %vm331, %v2520, 0
        %v2560 = vsel %vm331, %v2521, 0
        %v2563 = vsel %vm331, %v2522, 0
        %v2566 = vsel %vm331, %v2523, 0
        %v2569 = vsel %vm331, %v2524, 0
        %v2572 = vsel %vm331, %v2525, 0
        %v2575 = vsel %vm331, %v2526, 0
        %v2578 = vsel %vm631, %v2528, 0
        %2580 = vmatprep.subr.bf16.mxu0 0
        %2581 = vmatpush1.bf16.msra.mxu0 0
        %2582 = vmatprep.subr.bf16.mxu0 0
        %2583 = vmatpush1.bf16.msra.mxu0 0
        %2584 = vmatprep.subr.bf16.mxu0 0
        %2585 = vmatpush1.bf16.msra.mxu0 0
        %2586 = vmatprep.subr.bf16.mxu0 0
        %2587 = vmatpush1.bf16.msra.mxu0 0
        %2588 = vmatprep.subr.bf16.mxu0 0
        %2589 = vmatpush1.bf16.msra.mxu0 0
        %2590 = vmatprep.subr.bf16.mxu0 0
        %2591 = vmatpush1.bf16.msra.mxu0 0
        %2592 = vmatprep.subr.bf16.mxu0 0
        %2593 = vmatpush1.bf16.msra.mxu0 0
        %2594 = vmatprep.subr.bf16.mxu0 0
        %2595 = vmatpush1.bf16.msra.mxu0 %v2578
        %2596 = vmatprep.subr.bf16.mxu0 0
        %2597 = vmatpush2.bf16.msra.mxu0 0
        %2598 = vmatprep.subr.bf16.mxu0 0
        %2599 = vmatpush2.bf16.msra.mxu0 0
        %2600 = vmatprep.subr.bf16.mxu0 0
        %2601 = vmatpush2.bf16.msra.mxu0 0
        %2602 = vmatprep.subr.bf16.mxu0 0
        %2603 = vmatpush2.bf16.msra.mxu0 0
        %2604 = vmatprep.subr.bf16.mxu0 0
        %2605 = vmatpush2.bf16.msra.mxu0 0
        %2606 = vmatprep.subr.bf16.mxu0 0
        %2607 = vmatpush2.bf16.msra.mxu0 0
        %2608 = vmatprep.subr.bf16.mxu0 0
        %2609 = vmatpush2.bf16.msra.mxu0 0
        %2610 = vmatprep.subr.bf16.mxu0 0
        %2611 = vmatpush2.bf16.msra.mxu0 0
        %2612 = vmatprep.mubr.bf16.mxu0 0
        %2613 = vmatmul.mubr.bf16.gmra.mxu0 %v2530
        %v2614 = vpop.f32.mrf.mxu0
        %v2615 = vadd.f32 0.0, %v2614
        %v2616 = vpop.f32.mrf.mxu0
        %v2617 = vpop.f32.mrf.mxu0
        %v2618 = vadd.f32 0.0, %v2617
        %v2619 = vpop.f32.mrf.mxu0
        %2620 = vmatprep.mubr.bf16.mxu0 0
        %2621 = vmatmul.mubr.bf16.gmra.mxu0 %v2533
        %v2622 = vpop.f32.mrf.mxu0
        %v2623 = vadd.f32 0.0, %v2622
        %v2624 = vpop.f32.mrf.mxu0
        %v2625 = vpop.f32.mrf.mxu0
        %v2626 = vadd.f32 0.0, %v2625
        %v2627 = vpop.f32.mrf.mxu0
        %2628 = vmatprep.mubr.bf16.mxu0 0
        %2629 = vmatmul.mubr.bf16.gmra.mxu0 %v2536
        %v2630 = vpop.f32.mrf.mxu0
        %v2631 = vadd.f32 0.0, %v2630
        %v2632 = vpop.f32.mrf.mxu0
        %v2633 = vpop.f32.mrf.mxu0
        %v2634 = vadd.f32 0.0, %v2633
        %v2635 = vpop.f32.mrf.mxu0
        %2636 = vmatprep.mubr.bf16.mxu0 0
        %2637 = vmatmul.mubr.bf16.gmra.mxu0 %v2539
        %v2638 = vpop.f32.mrf.mxu0
        %v2639 = vadd.f32 0.0, %v2638
        %v2640 = vpop.f32.mrf.mxu0
        %v2641 = vpop.f32.mrf.mxu0
        %v2642 = vadd.f32 0.0, %v2641
        %v2643 = vpop.f32.mrf.mxu0
        %2644 = vmatprep.mubr.bf16.mxu0 0
        %2645 = vmatmul.mubr.bf16.gmra.mxu0 %v2542
        %v2646 = vpop.f32.mrf.mxu0
        %v2647 = vadd.f32 0.0, %v2646
        %v2648 = vpop.f32.mrf.mxu0
        %v2649 = vpop.f32.mrf.mxu0
        %v2650 = vadd.f32 0.0, %v2649
        %v2651 = vpop.f32.mrf.mxu0
        %2652 = vmatprep.mubr.bf16.mxu0 0
        %2653 = vmatmul.mubr.bf16.gmra.mxu0 %v2545
        %v2654 = vpop.f32.mrf.mxu0
        %v2655 = vadd.f32 0.0, %v2654
        %v2656 = vpop.f32.mrf.mxu0
        %v2657 = vpop.f32.mrf.mxu0
        %v2658 = vadd.f32 0.0, %v2657
        %v2659 = vpop.f32.mrf.mxu0
        %2660 = vmatprep.mubr.bf16.mxu0 0
        %2661 = vmatmul.mubr.bf16.gmra.mxu0 %v2548
        %v2662 = vpop.f32.mrf.mxu0
        %v2663 = vadd.f32 0.0, %v2662
        %v2664 = vpop.f32.mrf.mxu0
        %v2665 = vpop.f32.mrf.mxu0
        %v2666 = vadd.f32 0.0, %v2665
        %v2667 = vpop.f32.mrf.mxu0
        %2668 = vmatprep.mubr.bf16.mxu0 0
        %2669 = vmatmul.mubr.bf16.gmra.mxu0 %v2551
        %v2670 = vpop.f32.mrf.mxu0
        %v2671 = vadd.f32 0.0, %v2670
        %v2672 = vpop.f32.mrf.mxu0
        %v2673 = vpop.f32.mrf.mxu0
        %v2674 = vadd.f32 0.0, %v2673
        %v2675 = vpop.f32.mrf.mxu0
        %2676 = vmatprep.mubr.bf16.mxu0 0
        %2677 = vmatmul.mubr.bf16.gmra.mxu0 %v2554
        %v2678 = vpop.f32.mrf.mxu0
        %v2679 = vadd.f32 0.0, %v2678
        %v2680 = vpop.f32.mrf.mxu0
        %v2681 = vpop.f32.mrf.mxu0
        %v2682 = vadd.f32 0.0, %v2681
        %v2683 = vpop.f32.mrf.mxu0
        %2684 = vmatprep.mubr.bf16.mxu0 0
        %2685 = vmatmul.mubr.bf16.gmra.mxu0 %v2557
        %v2686 = vpop.f32.mrf.mxu0
        %v2687 = vadd.f32 0.0, %v2686
        %v2688 = vpop.f32.mrf.mxu0
        %v2689 = vpop.f32.mrf.mxu0
        %v2690 = vadd.f32 0.0, %v2689
        %v2691 = vpop.f32.mrf.mxu0
        %2692 = vmatprep.mubr.bf16.mxu0 0
        %2693 = vmatmul.mubr.bf16.gmra.mxu0 %v2560
        %v2694 = vpop.f32.mrf.mxu0
        %v2695 = vadd.f32 0.0, %v2694
        %v2696 = vpop.f32.mrf.mxu0
        %v2697 = vpop.f32.mrf.mxu0
        %v2698 = vadd.f32 0.0, %v2697
        %v2699 = vpop.f32.mrf.mxu0
        %2700 = vmatprep.mubr.bf16.mxu0 0
        %2701 = vmatmul.mubr.bf16.gmra.mxu0 %v2563
        %v2702 = vpop.f32.mrf.mxu0
        %v2703 = vadd.f32 0.0, %v2702
        %v2704 = vpop.f32.mrf.mxu0
        %v2705 = vpop.f32.mrf.mxu0
        %v2706 = vadd.f32 0.0, %v2705
        %v2707 = vpop.f32.mrf.mxu0
        %2708 = vmatprep.mubr.bf16.mxu0 0
        %2709 = vmatmul.mubr.bf16.gmra.mxu0 %v2566
        %v2710 = vpop.f32.mrf.mxu0
        %v2711 = vadd.f32 0.0, %v2710
        %v2712 = vpop.f32.mrf.mxu0
        %v2713 = vpop.f32.mrf.mxu0
        %v2714 = vadd.f32 0.0, %v2713
        %v2715 = vpop.f32.mrf.mxu0
        %2716 = vmatprep.mubr.bf16.mxu0 0
        %2717 = vmatmul.mubr.bf16.gmra.mxu0 %v2569
        %v2718 = vpop.f32.mrf.mxu0
        %v2719 = vadd.f32 0.0, %v2718
        %v2720 = vpop.f32.mrf.mxu0
        %v2721 = vpop.f32.mrf.mxu0
        %v2722 = vadd.f32 0.0, %v2721
        %v2723 = vpop.f32.mrf.mxu0
        %2724 = vmatprep.mubr.bf16.mxu0 0
        %2725 = vmatmul.mubr.bf16.gmra.mxu0 %v2572
        %v2726 = vpop.f32.mrf.mxu0
        %v2727 = vadd.f32 0.0, %v2726
        %v2728 = vpop.f32.mrf.mxu0
        %v2729 = vpop.f32.mrf.mxu0
        %v2730 = vadd.f32 0.0, %v2729
        %v2731 = vpop.f32.mrf.mxu0
        %2732 = vmatprep.mubr.bf16.mxu0 0
        %2733 = vmatmul.mubr.bf16.gmra.mxu0 %v2575
        %v2734 = vpop.f32.mrf.mxu0
        %v2735 = vadd.f32 0.0, %v2734
        %v2736 = vpop.f32.mrf.mxu0
        %v2737 = vpop.f32.mrf.mxu0
        %v2738 = vadd.f32 0.0, %v2737
        %v2739 = vpop.f32.mrf.mxu0
        %2740 = vdwg.mxu0
        %v2741 = vadd.f32 %v2447, %v2615
        %v2742 = vadd.f32 %v2448, %v2618
        %v2743 = vadd.f32 %v2449, %v2623
        %v2744 = vadd.f32 %v2450, %v2626
        %v2745 = vadd.f32 %v2451, %v2631
        %v2746 = vadd.f32 %v2452, %v2634
        %v2747 = vadd.f32 %v2453, %v2639
        %v2748 = vadd.f32 %v2454, %v2642
        %v2749 = vadd.f32 %v2455, %v2647
        %v2750 = vadd.f32 %v2456, %v2650
        %v2751 = vadd.f32 %v2457, %v2655
        %v2752 = vadd.f32 %v2458, %v2658
        %v2753 = vadd.f32 %v2459, %v2663
        %v2754 = vadd.f32 %v2460, %v2666
        %v2755 = vadd.f32 %v2461, %v2671
        %v2756 = vadd.f32 %v2462, %v2674
        %v2757 = vadd.f32 %v2463, %v2679
        %v2758 = vadd.f32 %v2464, %v2682
        %v2759 = vadd.f32 %v2465, %v2687
        %v2760 = vadd.f32 %v2466, %v2690
        %v2761 = vadd.f32 %v2467, %v2695
        %v2762 = vadd.f32 %v2468, %v2698
        %v2763 = vadd.f32 %v2469, %v2703
        %v2764 = vadd.f32 %v2470, %v2706
        %v2765 = vadd.f32 %v2471, %v2711
        %v2766 = vadd.f32 %v2472, %v2714
        %v2767 = vadd.f32 %v2473, %v2719
        %v2768 = vadd.f32 %v2474, %v2722
        %v2769 = vadd.f32 %v2475, %v2727
        %v2770 = vadd.f32 %v2476, %v2730
        %v2771 = vadd.f32 %v2477, %v2735
        %v2772 = vadd.f32 %v2478, %v2738
        %v2773 = vld [vmem:[%s2184 + $0x2] sm:$0xff]
        %v2774 = vld [vmem:[%s2184 + $0xa] sm:$0xff]
        %v2775 = vld [vmem:[%s2184 + $0x1a] sm:$0xff]
        %v2776 = vld [vmem:[%s2184 + $0x22] sm:$0xff]
        %v2777 = vld [vmem:[%s2184 + $0x32] sm:$0xff]
        %v2778 = vld [vmem:[%s2184 + $0x3a] sm:$0xff]
        %v2779 = vld [vmem:[%s2184 + $0x4a] sm:$0xff]
        %v2780 = vld [vmem:[%s2184 + $0x52] sm:$0xff]
        %v2781 = vld [vmem:[%s2184 + $0x62] sm:$0xff]
        %v2782 = vld [vmem:[%s2184 + $0x6a] sm:$0xff]
        %v2783 = vld [vmem:[%s2184 + $0x7a] sm:$0xff]
        %v2784 = vld [vmem:[%s2184 + $0x82] sm:$0xff]
        %v2785 = vld [vmem:[%s2184 + $0x92] sm:$0xff]
        %v2786 = vld [vmem:[%s2184 + $0x9a] sm:$0xff]
        %v2787 = vld [vmem:[%s2184 + $0xaa] sm:$0xff]
        %v2788 = vld [vmem:[%s2184 + $0xb2] sm:$0xff]
        %v2789 = vld [vmem:[%s2184 + $0xc2] sm:$0xff]
        %v2790 = vld [vmem:[%s2184 + $0xca] sm:$0xff]
        %v2791 = vld [vmem:[%s2184 + $0xda] sm:$0xff]
        %v2792 = vld [vmem:[%s2184 + $0xe2] sm:$0xff]
        %v2793 = vld [vmem:[%s2184 + $0xf2] sm:$0xff]
        %v2794 = vld [vmem:[%s2184 + $0xfa] sm:$0xff]
        %v2795 = vld [vmem:[%s2184 + $0x10a] sm:$0xff]
        %v2796 = vld [vmem:[%s2184 + $0x112] sm:$0xff]
        %v2797 = vld [vmem:[%s2184 + $0x122] sm:$0xff]
        %v2798 = vld [vmem:[%s2184 + $0x12a] sm:$0xff]
        %v2799 = vld [vmem:[%s2184 + $0x13a] sm:$0xff]
        %v2800 = vld [vmem:[%s2184 + $0x142] sm:$0xff]
        %v2801 = vld [vmem:[%s2184 + $0x152] sm:$0xff]
        %v2802 = vld [vmem:[%s2184 + $0x15a] sm:$0xff]
        %v2803 = vld [vmem:[%s2184 + $0x16a] sm:$0xff]
        %v2804 = vld [vmem:[%s2184 + $0x172] sm:$0xff]
        %v2805 = vpack.c.bf16 %v2774, %v2773
        %v2806 = vpack.c.bf16 %v2776, %v2775
        %v2807 = vpack.c.bf16 %v2778, %v2777
        %v2808 = vpack.c.bf16 %v2780, %v2779
        %v2809 = vpack.c.bf16 %v2782, %v2781
        %v2810 = vpack.c.bf16 %v2784, %v2783
        %v2811 = vpack.c.bf16 %v2786, %v2785
        %v2812 = vpack.c.bf16 %v2788, %v2787
        %v2813 = vpack.c.bf16 %v2790, %v2789
        %v2814 = vpack.c.bf16 %v2792, %v2791
        %v2815 = vpack.c.bf16 %v2794, %v2793
        %v2816 = vpack.c.bf16 %v2796, %v2795
        %v2817 = vpack.c.bf16 %v2798, %v2797
        %v2818 = vpack.c.bf16 %v2800, %v2799
        %v2819 = vpack.c.bf16 %v2802, %v2801
        %v2820 = vpack.c.bf16 %v2804, %v2803
        %s2821 = scalar_lea.vmem %s1, 16
        %v2822 = vld [vmem:[%s2821] sm:$0x3]
        %v2824 = vsel %vm331, %v2805, 0
        %v2827 = vsel %vm331, %v2806, 0
        %v2830 = vsel %vm331, %v2807, 0
        %v2833 = vsel %vm331, %v2808, 0
        %v2836 = vsel %vm331, %v2809, 0
        %v2839 = vsel %vm331, %v2810, 0
        %v2842 = vsel %vm331, %v2811, 0
        %v2845 = vsel %vm331, %v2812, 0
        %v2848 = vsel %vm331, %v2813, 0
        %v2851 = vsel %vm331, %v2814, 0
        %v2854 = vsel %vm331, %v2815, 0
        %v2857 = vsel %vm331, %v2816, 0
        %v2860 = vsel %vm331, %v2817, 0
        %v2863 = vsel %vm331, %v2818, 0
        %v2866 = vsel %vm331, %v2819, 0
        %v2869 = vsel %vm331, %v2820, 0
        %v2872 = vsel %vm631, %v2822, 0
        %2874 = vmatprep.subr.bf16.mxu0 0
        %2875 = vmatpush1.bf16.msra.mxu0 0
        %2876 = vmatprep.subr.bf16.mxu0 0
        %2877 = vmatpush1.bf16.msra.mxu0 0
        %2878 = vmatprep.subr.bf16.mxu0 0
        %2879 = vmatpush1.bf16.msra.mxu0 0
        %2880 = vmatprep.subr.bf16.mxu0 0
        %2881 = vmatpush1.bf16.msra.mxu0 0
        %2882 = vmatprep.subr.bf16.mxu0 0
        %2883 = vmatpush1.bf16.msra.mxu0 0
        %2884 = vmatprep.subr.bf16.mxu0 0
        %2885 = vmatpush1.bf16.msra.mxu0 0
        %2886 = vmatprep.subr.bf16.mxu0 0
        %2887 = vmatpush1.bf16.msra.mxu0 0
        %2888 = vmatprep.subr.bf16.mxu0 0
        %2889 = vmatpush1.bf16.msra.mxu0 %v2872
        %2890 = vmatprep.subr.bf16.mxu0 0
        %2891 = vmatpush2.bf16.msra.mxu0 0
        %2892 = vmatprep.subr.bf16.mxu0 0
        %2893 = vmatpush2.bf16.msra.mxu0 0
        %2894 = vmatprep.subr.bf16.mxu0 0
        %2895 = vmatpush2.bf16.msra.mxu0 0
        %2896 = vmatprep.subr.bf16.mxu0 0
        %2897 = vmatpush2.bf16.msra.mxu0 0
        %2898 = vmatprep.subr.bf16.mxu0 0
        %2899 = vmatpush2.bf16.msra.mxu0 0
        %2900 = vmatprep.subr.bf16.mxu0 0
        %2901 = vmatpush2.bf16.msra.mxu0 0
        %2902 = vmatprep.subr.bf16.mxu0 0
        %2903 = vmatpush2.bf16.msra.mxu0 0
        %2904 = vmatprep.subr.bf16.mxu0 0
        %2905 = vmatpush2.bf16.msra.mxu0 0
        %2906 = vmatprep.mubr.bf16.mxu0 0
        %2907 = vmatmul.mubr.bf16.gmra.mxu0 %v2824
        %v2908 = vpop.f32.mrf.mxu0
        %v2909 = vadd.f32 0.0, %v2908
        %v2910 = vpop.f32.mrf.mxu0
        %v2911 = vpop.f32.mrf.mxu0
        %v2912 = vadd.f32 0.0, %v2911
        %v2913 = vpop.f32.mrf.mxu0
        %2914 = vmatprep.mubr.bf16.mxu0 0
        %2915 = vmatmul.mubr.bf16.gmra.mxu0 %v2827
        %v2916 = vpop.f32.mrf.mxu0
        %v2917 = vadd.f32 0.0, %v2916
        %v2918 = vpop.f32.mrf.mxu0
        %v2919 = vpop.f32.mrf.mxu0
        %v2920 = vadd.f32 0.0, %v2919
        %v2921 = vpop.f32.mrf.mxu0
        %2922 = vmatprep.mubr.bf16.mxu0 0
        %2923 = vmatmul.mubr.bf16.gmra.mxu0 %v2830
        %v2924 = vpop.f32.mrf.mxu0
        %v2925 = vadd.f32 0.0, %v2924
        %v2926 = vpop.f32.mrf.mxu0
        %v2927 = vpop.f32.mrf.mxu0
        %v2928 = vadd.f32 0.0, %v2927
        %v2929 = vpop.f32.mrf.mxu0
        %2930 = vmatprep.mubr.bf16.mxu0 0
        %2931 = vmatmul.mubr.bf16.gmra.mxu0 %v2833
        %v2932 = vpop.f32.mrf.mxu0
        %v2933 = vadd.f32 0.0, %v2932
        %v2934 = vpop.f32.mrf.mxu0
        %v2935 = vpop.f32.mrf.mxu0
        %v2936 = vadd.f32 0.0, %v2935
        %v2937 = vpop.f32.mrf.mxu0
        %2938 = vmatprep.mubr.bf16.mxu0 0
        %2939 = vmatmul.mubr.bf16.gmra.mxu0 %v2836
        %v2940 = vpop.f32.mrf.mxu0
        %v2941 = vadd.f32 0.0, %v2940
        %v2942 = vpop.f32.mrf.mxu0
        %v2943 = vpop.f32.mrf.mxu0
        %v2944 = vadd.f32 0.0, %v2943
        %v2945 = vpop.f32.mrf.mxu0
        %2946 = vmatprep.mubr.bf16.mxu0 0
        %2947 = vmatmul.mubr.bf16.gmra.mxu0 %v2839
        %v2948 = vpop.f32.mrf.mxu0
        %v2949 = vadd.f32 0.0, %v2948
        %v2950 = vpop.f32.mrf.mxu0
        %v2951 = vpop.f32.mrf.mxu0
        %v2952 = vadd.f32 0.0, %v2951
        %v2953 = vpop.f32.mrf.mxu0
        %2954 = vmatprep.mubr.bf16.mxu0 0
        %2955 = vmatmul.mubr.bf16.gmra.mxu0 %v2842
        %v2956 = vpop.f32.mrf.mxu0
        %v2957 = vadd.f32 0.0, %v2956
        %v2958 = vpop.f32.mrf.mxu0
        %v2959 = vpop.f32.mrf.mxu0
        %v2960 = vadd.f32 0.0, %v2959
        %v2961 = vpop.f32.mrf.mxu0
        %2962 = vmatprep.mubr.bf16.mxu0 0
        %2963 = vmatmul.mubr.bf16.gmra.mxu0 %v2845
        %v2964 = vpop.f32.mrf.mxu0
        %v2965 = vadd.f32 0.0, %v2964
        %v2966 = vpop.f32.mrf.mxu0
        %v2967 = vpop.f32.mrf.mxu0
        %v2968 = vadd.f32 0.0, %v2967
        %v2969 = vpop.f32.mrf.mxu0
        %2970 = vmatprep.mubr.bf16.mxu0 0
        %2971 = vmatmul.mubr.bf16.gmra.mxu0 %v2848
        %v2972 = vpop.f32.mrf.mxu0
        %v2973 = vadd.f32 0.0, %v2972
        %v2974 = vpop.f32.mrf.mxu0
        %v2975 = vpop.f32.mrf.mxu0
        %v2976 = vadd.f32 0.0, %v2975
        %v2977 = vpop.f32.mrf.mxu0
        %2978 = vmatprep.mubr.bf16.mxu0 0
        %2979 = vmatmul.mubr.bf16.gmra.mxu0 %v2851
        %v2980 = vpop.f32.mrf.mxu0
        %v2981 = vadd.f32 0.0, %v2980
        %v2982 = vpop.f32.mrf.mxu0
        %v2983 = vpop.f32.mrf.mxu0
        %v2984 = vadd.f32 0.0, %v2983
        %v2985 = vpop.f32.mrf.mxu0
        %2986 = vmatprep.mubr.bf16.mxu0 0
        %2987 = vmatmul.mubr.bf16.gmra.mxu0 %v2854
        %v2988 = vpop.f32.mrf.mxu0
        %v2989 = vadd.f32 0.0, %v2988
        %v2990 = vpop.f32.mrf.mxu0
        %v2991 = vpop.f32.mrf.mxu0
        %v2992 = vadd.f32 0.0, %v2991
        %v2993 = vpop.f32.mrf.mxu0
        %2994 = vmatprep.mubr.bf16.mxu0 0
        %2995 = vmatmul.mubr.bf16.gmra.mxu0 %v2857
        %v2996 = vpop.f32.mrf.mxu0
        %v2997 = vadd.f32 0.0, %v2996
        %v2998 = vpop.f32.mrf.mxu0
        %v2999 = vpop.f32.mrf.mxu0
        %v3000 = vadd.f32 0.0, %v2999
        %v3001 = vpop.f32.mrf.mxu0
        %3002 = vmatprep.mubr.bf16.mxu0 0
        %3003 = vmatmul.mubr.bf16.gmra.mxu0 %v2860
        %v3004 = vpop.f32.mrf.mxu0
        %v3005 = vadd.f32 0.0, %v3004
        %v3006 = vpop.f32.mrf.mxu0
        %v3007 = vpop.f32.mrf.mxu0
        %v3008 = vadd.f32 0.0, %v3007
        %v3009 = vpop.f32.mrf.mxu0
        %3010 = vmatprep.mubr.bf16.mxu0 0
        %3011 = vmatmul.mubr.bf16.gmra.mxu0 %v2863
        %v3012 = vpop.f32.mrf.mxu0
        %v3013 = vadd.f32 0.0, %v3012
        %v3014 = vpop.f32.mrf.mxu0
        %v3015 = vpop.f32.mrf.mxu0
        %v3016 = vadd.f32 0.0, %v3015
        %v3017 = vpop.f32.mrf.mxu0
        %3018 = vmatprep.mubr.bf16.mxu0 0
        %3019 = vmatmul.mubr.bf16.gmra.mxu0 %v2866
        %v3020 = vpop.f32.mrf.mxu0
        %v3021 = vadd.f32 0.0, %v3020
        %v3022 = vpop.f32.mrf.mxu0
        %v3023 = vpop.f32.mrf.mxu0
        %v3024 = vadd.f32 0.0, %v3023
        %v3025 = vpop.f32.mrf.mxu0
        %3026 = vmatprep.mubr.bf16.mxu0 0
        %3027 = vmatmul.mubr.bf16.gmra.mxu0 %v2869
        %v3028 = vpop.f32.mrf.mxu0
        %v3029 = vadd.f32 0.0, %v3028
        %v3030 = vpop.f32.mrf.mxu0
        %v3031 = vpop.f32.mrf.mxu0
        %v3032 = vadd.f32 0.0, %v3031
        %v3033 = vpop.f32.mrf.mxu0
        %3034 = vdwg.mxu0
        %v3035 = vadd.f32 %v2741, %v2909
        %v3036 = vadd.f32 %v2742, %v2912
        %v3037 = vadd.f32 %v2743, %v2917
        %v3038 = vadd.f32 %v2744, %v2920
        %v3039 = vadd.f32 %v2745, %v2925
        %v3040 = vadd.f32 %v2746, %v2928
        %v3041 = vadd.f32 %v2747, %v2933
        %v3042 = vadd.f32 %v2748, %v2936
        %v3043 = vadd.f32 %v2749, %v2941
        %v3044 = vadd.f32 %v2750, %v2944
        %v3045 = vadd.f32 %v2751, %v2949
        %v3046 = vadd.f32 %v2752, %v2952
        %v3047 = vadd.f32 %v2753, %v2957
        %v3048 = vadd.f32 %v2754, %v2960
        %v3049 = vadd.f32 %v2755, %v2965
        %v3050 = vadd.f32 %v2756, %v2968
        %v3051 = vadd.f32 %v2757, %v2973
        %v3052 = vadd.f32 %v2758, %v2976
        %v3053 = vadd.f32 %v2759, %v2981
        %v3054 = vadd.f32 %v2760, %v2984
        %v3055 = vadd.f32 %v2761, %v2989
        %v3056 = vadd.f32 %v2762, %v2992
        %v3057 = vadd.f32 %v2763, %v2997
        %v3058 = vadd.f32 %v2764, %v3000
        %v3059 = vadd.f32 %v2765, %v3005
        %v3060 = vadd.f32 %v2766, %v3008
        %v3061 = vadd.f32 %v2767, %v3013
        %v3062 = vadd.f32 %v2768, %v3016
        %v3063 = vadd.f32 %v2769, %v3021
        %v3064 = vadd.f32 %v2770, %v3024
        %v3065 = vadd.f32 %v2771, %v3029
        %v3066 = vadd.f32 %v2772, %v3032
        %v3067 = vld [vmem:[%s2] sm:$0x1]
        %v3069 = vlaneseq
        %v3070 = vshrl.u32 %v3069, 7
        %v3071 = vsub.s32 0, %v3070
        %v3072 = vrot.slane %v3067, %v3071
        %v3074 = vadd.f32 %v3035, %v3072
        %v3075 = vadd.f32 %v3036, %v3072
        %v3076 = vadd.f32 %v3037, %v3072
        %v3077 = vadd.f32 %v3038, %v3072
        %v3078 = vadd.f32 %v3039, %v3072
        %v3079 = vadd.f32 %v3040, %v3072
        %v3080 = vadd.f32 %v3041, %v3072
        %v3081 = vadd.f32 %v3042, %v3072
        %v3082 = vadd.f32 %v3043, %v3072
        %v3083 = vadd.f32 %v3044, %v3072
        %v3084 = vadd.f32 %v3045, %v3072
        %v3085 = vadd.f32 %v3046, %v3072
        %v3086 = vadd.f32 %v3047, %v3072
        %v3087 = vadd.f32 %v3048, %v3072
        %v3088 = vadd.f32 %v3049, %v3072
        %v3089 = vadd.f32 %v3050, %v3072
        %v3090 = vadd.f32 %v3051, %v3072
        %v3091 = vadd.f32 %v3052, %v3072
        %v3092 = vadd.f32 %v3053, %v3072
        %v3093 = vadd.f32 %v3054, %v3072
        %v3094 = vadd.f32 %v3055, %v3072
        %v3095 = vadd.f32 %v3056, %v3072
        %v3096 = vadd.f32 %v3057, %v3072
        %v3097 = vadd.f32 %v3058, %v3072
        %v3098 = vadd.f32 %v3059, %v3072
        %v3099 = vadd.f32 %v3060, %v3072
        %v3100 = vadd.f32 %v3061, %v3072
        %v3101 = vadd.f32 %v3062, %v3072
        %v3102 = vadd.f32 %v3063, %v3072
        %v3103 = vadd.f32 %v3064, %v3072
        %v3104 = vadd.f32 %v3065, %v3072
        %v3105 = vadd.f32 %v3066, %v3072
        %v3106 = vmax.f32 %v3074, 0.0
        %v3107 = vmax.f32 %v3075, 0.0
        %v3108 = vmax.f32 %v3076, 0.0
        %v3109 = vmax.f32 %v3077, 0.0
        %v3110 = vmax.f32 %v3078, 0.0
        %v3111 = vmax.f32 %v3079, 0.0
        %v3112 = vmax.f32 %v3080, 0.0
        %v3113 = vmax.f32 %v3081, 0.0
        %v3114 = vmax.f32 %v3082, 0.0
        %v3115 = vmax.f32 %v3083, 0.0
        %v3116 = vmax.f32 %v3084, 0.0
        %v3117 = vmax.f32 %v3085, 0.0
        %v3118 = vmax.f32 %v3086, 0.0
        %v3119 = vmax.f32 %v3087, 0.0
        %v3120 = vmax.f32 %v3088, 0.0
        %v3121 = vmax.f32 %v3089, 0.0
        %v3122 = vmax.f32 %v3090, 0.0
        %v3123 = vmax.f32 %v3091, 0.0
        %v3124 = vmax.f32 %v3092, 0.0
        %v3125 = vmax.f32 %v3093, 0.0
        %v3126 = vmax.f32 %v3094, 0.0
        %v3127 = vmax.f32 %v3095, 0.0
        %v3128 = vmax.f32 %v3096, 0.0
        %v3129 = vmax.f32 %v3097, 0.0
        %v3130 = vmax.f32 %v3098, 0.0
        %v3131 = vmax.f32 %v3099, 0.0
        %v3132 = vmax.f32 %v3100, 0.0
        %v3133 = vmax.f32 %v3101, 0.0
        %v3134 = vmax.f32 %v3102, 0.0
        %v3135 = vmax.f32 %v3103, 0.0
        %v3136 = vmax.f32 %v3104, 0.0
        %v3137 = vmax.f32 %v3105, 0.0
        %v3138 = vmax.f32 %v3106, %v3108
        %v3139 = vmax.f32 %v3107, %v3109
        %v3140 = vmax.f32 %v3110, %v3112
        %v3141 = vmax.f32 %v3111, %v3113
        %v3142 = vmax.f32 %v3114, %v3116
        %v3143 = vmax.f32 %v3115, %v3117
        %v3144 = vmax.f32 %v3118, %v3120
        %v3145 = vmax.f32 %v3119, %v3121
        %v3146 = vmax.f32 %v3122, %v3124
        %v3147 = vmax.f32 %v3123, %v3125
        %v3148 = vmax.f32 %v3126, %v3128
        %v3149 = vmax.f32 %v3127, %v3129
        %v3150 = vmax.f32 %v3130, %v3132
        %v3151 = vmax.f32 %v3131, %v3133
        %v3152 = vmax.f32 %v3134, %v3136
        %v3153 = vmax.f32 %v3135, %v3137
        %vm3154 = vcmask 64512
        %3155 = vst.msk [vmem:[#allocation4] sm:$0xff] %vm3154, %v3138
        %3156 = vst.msk [vmem:[#allocation4 + $0x8] sm:$0xff] %vm3154, %v3139
        %3157 = vst.msk [vmem:[#allocation4 + $0x10] sm:$0xff] %vm3154, %v3140
        %3158 = vst.msk [vmem:[#allocation4 + $0x18] sm:$0xff] %vm3154, %v3141
        %3159 = vst.msk [vmem:[#allocation4 + $0x20] sm:$0xff] %vm3154, %v3142
        %3160 = vst.msk [vmem:[#allocation4 + $0x28] sm:$0xff] %vm3154, %v3143
        %3161 = vst.msk [vmem:[#allocation4 + $0x30] sm:$0xff] %vm3154, %v3144
        %3162 = vst.msk [vmem:[#allocation4 + $0x38] sm:$0xff] %vm3154, %v3145
        %3163 = vst.msk [vmem:[#allocation4 + $0x40] sm:$0xff] %vm3154, %v3146
        %3164 = vst.msk [vmem:[#allocation4 + $0x48] sm:$0xff] %vm3154, %v3147
        %3165 = vst.msk [vmem:[#allocation4 + $0x50] sm:$0xff] %vm3154, %v3148
        %3166 = vst.msk [vmem:[#allocation4 + $0x58] sm:$0xff] %vm3154, %v3149
        %3167 = vst.msk [vmem:[#allocation4 + $0x60] sm:$0xff] %vm3154, %v3150
        %3168 = vst.msk [vmem:[#allocation4 + $0x68] sm:$0xff] %vm3154, %v3151
        %3169 = vst.msk [vmem:[#allocation4 + $0x70] sm:$0xff] %vm3154, %v3152
        %3170 = vst.msk [vmem:[#allocation4 + $0x78] sm:$0xff] %vm3154, %v3153
        %v3171 = vld [vmem:[#allocation4] ss:$2 sm:$0xff]
        %s3172 = scalar_lea.vmem [#allocation4], 16
        %v3173 = vld [vmem:[%s3172] ss:$2 sm:$0xff]
        %s3174 = scalar_lea.vmem [#allocation4], 32
        %v3175 = vld [vmem:[%s3174] ss:$2 sm:$0xff]
        %s3176 = scalar_lea.vmem [#allocation4], 48
        %v3177 = vld [vmem:[%s3176] ss:$2 sm:$0xff]
        %s3178 = scalar_lea.vmem [#allocation4], 64
        %v3179 = vld [vmem:[%s3178] ss:$2 sm:$0xff]
        %s3180 = scalar_lea.vmem [#allocation4], 80
        %v3181 = vld [vmem:[%s3180] ss:$2 sm:$0xff]
        %s3182 = scalar_lea.vmem [#allocation4], 96
        %v3183 = vld [vmem:[%s3182] ss:$2 sm:$0xff]
        %s3184 = scalar_lea.vmem [#allocation4], 112
        %v3185 = vld [vmem:[%s3184] ss:$2 sm:$0xff]
        %s3186 = scalar_lea.vmem [#allocation4], 1
        %v3187 = vld [vmem:[%s3186] ss:$2 sm:$0xff]
        %s3188 = scalar_lea.vmem [#allocation4], 17
        %v3189 = vld [vmem:[%s3188] ss:$2 sm:$0xff]
        %s3190 = scalar_lea.vmem [#allocation4], 33
        %v3191 = vld [vmem:[%s3190] ss:$2 sm:$0xff]
        %s3192 = scalar_lea.vmem [#allocation4], 49
        %v3193 = vld [vmem:[%s3192] ss:$2 sm:$0xff]
        %s3194 = scalar_lea.vmem [#allocation4], 65
        %v3195 = vld [vmem:[%s3194] ss:$2 sm:$0xff]
        %s3196 = scalar_lea.vmem [#allocation4], 81
        %v3197 = vld [vmem:[%s3196] ss:$2 sm:$0xff]
        %s3198 = scalar_lea.vmem [#allocation4], 97
        %v3199 = vld [vmem:[%s3198] ss:$2 sm:$0xff]
        %s3200 = scalar_lea.vmem [#allocation4], 113
        %v3201 = vld [vmem:[%s3200] ss:$2 sm:$0xff]
        %v3202 = vmax.f32 %v3171, %v3187
        %v3203 = vmax.f32 %v3173, %v3189
        %v3204 = vmax.f32 %v3175, %v3191
        %v3205 = vmax.f32 %v3177, %v3193
        %v3206 = vmax.f32 %v3179, %v3195
        %v3207 = vmax.f32 %v3181, %v3197
        %v3208 = vmax.f32 %v3183, %v3199
        %v3209 = vmax.f32 %v3185, %v3201
        %3210 = vst.msk [vmem:[#allocation3] sm:$0xff] %vm3154, 0.0
        %vm3211 = vcmask 58368
        %3212 = vst.msk [vmem:[#allocation3 + $0x8] sm:$0x3] %vm3211, 0.0
        %3213 = vst.msk [vmem:[#allocation3 + $0x10] sm:$0xff] %vm3154, 0.0
        %3214 = vst.msk [vmem:[#allocation3 + $0x18] sm:$0x3] %vm3211, 0.0
        %3215 = vst.msk [vmem:[#allocation3 + $0x20] sm:$0xff] %vm3154, 0.0
        %3216 = vst.msk [vmem:[#allocation3 + $0x28] sm:$0x3] %vm3211, 0.0
        %3217 = vst.msk [vmem:[#allocation3 + $0x30] sm:$0xff] %vm3154, 0.0
        %3218 = vst.msk [vmem:[#allocation3 + $0x38] sm:$0x3] %vm3211, 0.0
        %3219 = vst.msk [vmem:[#allocation3 + $0x40] sm:$0xff] %vm3154, 0.0
        %3220 = vst.msk [vmem:[#allocation3 + $0x48] sm:$0x3] %vm3211, 0.0
        %3221 = vst.msk [vmem:[#allocation3 + $0x50] sm:$0xff] %vm3154, 0.0
        %3222 = vst.msk [vmem:[#allocation3 + $0x58] sm:$0x3] %vm3211, 0.0
        %3223 = vst.msk [vmem:[#allocation3 + $0x60] sm:$0xff] %vm3154, 0.0
        %3224 = vst.msk [vmem:[#allocation3 + $0x68] sm:$0x3] %vm3211, 0.0
        %3225 = vst.msk [vmem:[#allocation3 + $0x70] sm:$0xff] %vm3154, 0.0
        %3226 = vst.msk [vmem:[#allocation3 + $0x78] sm:$0x3] %vm3211, 0.0
        %3227 = vst.msk [vmem:[#allocation3 + $0x80] sm:$0xff] %vm3154, 0.0
        %3228 = vst.msk [vmem:[#allocation3 + $0x88] sm:$0x3] %vm3211, 0.0
        %3229 = vst.msk [vmem:[#allocation3 + $0x90] sm:$0xff] %vm3154, 0.0
        %3230 = vst.msk [vmem:[#allocation3 + $0x98] sm:$0x3] %vm3211, 0.0
        %s3231 = scalar_lea.vmem [#allocation3], 16
        %3232 = vst.msk [vmem:[%s3231 + $0x1] sm:$0xff] %vm3154, %v3202
        %3233 = vst.msk [vmem:[%s3231 + $0x11] sm:$0xff] %vm3154, %v3203
        %3234 = vst.msk [vmem:[%s3231 + $0x21] sm:$0xff] %vm3154, %v3204
        %3235 = vst.msk [vmem:[%s3231 + $0x31] sm:$0xff] %vm3154, %v3205
        %3236 = vst.msk [vmem:[%s3231 + $0x41] sm:$0xff] %vm3154, %v3206
        %3237 = vst.msk [vmem:[%s3231 + $0x51] sm:$0xff] %vm3154, %v3207
        %3238 = vst.msk [vmem:[%s3231 + $0x61] sm:$0xff] %vm3154, %v3208
        %3239 = vst.msk [vmem:[%s3231 + $0x71] sm:$0xff] %vm3154, %v3209
        %v3240 = vld [vmem:[#allocation3] sm:$0xff]
        %v3241 = vld [vmem:[#allocation3 + $0x10] sm:$0xff]
        %v3242 = vld [vmem:[#allocation3 + $0x20] sm:$0xff]
        %v3243 = vld [vmem:[#allocation3 + $0x30] sm:$0xff]
        %v3244 = vld [vmem:[#allocation3 + $0x40] sm:$0xff]
        %v3245 = vld [vmem:[#allocation3 + $0x50] sm:$0xff]
        %v3246 = vld [vmem:[#allocation3 + $0x60] sm:$0xff]
        %v3247 = vld [vmem:[#allocation3 + $0x70] sm:$0xff]
        %v3248 = vpack.c.bf16 %v3241, %v3240
        %v3249 = vpack.c.bf16 %v3243, %v3242
        %v3250 = vpack.c.bf16 %v3245, %v3244
        %v3251 = vpack.c.bf16 %v3247, %v3246
        %v3252 = vld [vmem:[%s3] sm:$0xf]
        %v3253 = vld [vmem:[#allocation3 + $0x1] sm:$0xff]
        %v3254 = vld [vmem:[#allocation3 + $0x11] sm:$0xff]
        %v3255 = vld [vmem:[#allocation3 + $0x21] sm:$0xff]
        %v3256 = vld [vmem:[#allocation3 + $0x31] sm:$0xff]
        %v3257 = vld [vmem:[#allocation3 + $0x41] sm:$0xff]
        %v3258 = vld [vmem:[#allocation3 + $0x51] sm:$0xff]
        %v3259 = vld [vmem:[#allocation3 + $0x61] sm:$0xff]
        %v3260 = vld [vmem:[#allocation3 + $0x71] sm:$0xff]
        %v3261 = vpack.c.bf16 %v3254, %v3253
        %v3262 = vpack.c.bf16 %v3256, %v3255
        %v3263 = vpack.c.bf16 %v3258, %v3257
        %v3264 = vpack.c.bf16 %v3260, %v3259
        %s3265 = scalar_lea.vmem %s3, 4
        %v3266 = vld [vmem:[%s3265] sm:$0xf]
        %v3268 = vsel %vm3154, %v3261, 0
        %v3271 = vsel %vm3154, %v3262, 0
        %v3274 = vsel %vm3154, %v3263, 0
        %v3277 = vsel %vm3154, %v3264, 0
        %vm3279 = vcmask 1043456
        %v3281 = vsel %vm3279, %v3266, 0
        %3283 = vmatprep.subr.bf16.mxu0 0
        %3284 = vmatpush1.bf16.msra.mxu0 0
        %3285 = vmatprep.subr.bf16.mxu0 0
        %3286 = vmatpush1.bf16.msra.mxu0 0
        %3287 = vmatprep.subr.bf16.mxu0 0
        %3288 = vmatpush1.bf16.msra.mxu0 0
        %3289 = vmatprep.subr.bf16.mxu0 0
        %3290 = vmatpush1.bf16.msra.mxu0 0
        %3291 = vmatprep.subr.bf16.mxu0 0
        %3292 = vmatpush1.bf16.msra.mxu0 0
        %3293 = vmatprep.subr.bf16.mxu0 0
        %3294 = vmatpush1.bf16.msra.mxu0 0
        %3295 = vmatprep.subr.bf16.mxu0 0
        %3296 = vmatpush1.bf16.msra.mxu0 0
        %3297 = vmatprep.subr.bf16.mxu0 0
        %3298 = vmatpush1.bf16.msra.mxu0 %v3281
        %3299 = vmatprep.subr.bf16.mxu0 0
        %3300 = vmatpush2.bf16.msra.mxu0 0
        %3301 = vmatprep.subr.bf16.mxu0 0
        %3302 = vmatpush2.bf16.msra.mxu0 0
        %3303 = vmatprep.subr.bf16.mxu0 0
        %3304 = vmatpush2.bf16.msra.mxu0 0
        %3305 = vmatprep.subr.bf16.mxu0 0
        %3306 = vmatpush2.bf16.msra.mxu0 0
        %3307 = vmatprep.subr.bf16.mxu0 0
        %3308 = vmatpush2.bf16.msra.mxu0 0
        %3309 = vmatprep.subr.bf16.mxu0 0
        %3310 = vmatpush2.bf16.msra.mxu0 0
        %3311 = vmatprep.subr.bf16.mxu0 0
        %3312 = vmatpush2.bf16.msra.mxu0 0
        %3313 = vmatprep.subr.bf16.mxu0 0
        %3314 = vmatpush2.bf16.msra.mxu0 0
        %3315 = vmatprep.mubr.bf16.mxu0 0
        %3316 = vmatmul.mubr.bf16.gmra.mxu0 %v3268
        %v3317 = vpop.f32.mrf.mxu0
        %v3318 = vadd.f32 0.0, %v3317
        %v3319 = vpop.f32.mrf.mxu0
        %v3320 = vpop.f32.mrf.mxu0
        %v3321 = vadd.f32 0.0, %v3320
        %v3322 = vpop.f32.mrf.mxu0
        %3323 = vmatprep.mubr.bf16.mxu0 0
        %3324 = vmatmul.mubr.bf16.gmra.mxu0 %v3271
        %v3325 = vpop.f32.mrf.mxu0
        %v3326 = vadd.f32 0.0, %v3325
        %v3327 = vpop.f32.mrf.mxu0
        %v3328 = vpop.f32.mrf.mxu0
        %v3329 = vadd.f32 0.0, %v3328
        %v3330 = vpop.f32.mrf.mxu0
        %3331 = vmatprep.mubr.bf16.mxu0 0
        %3332 = vmatmul.mubr.bf16.gmra.mxu0 %v3274
        %v3333 = vpop.f32.mrf.mxu0
        %v3334 = vadd.f32 0.0, %v3333
        %v3335 = vpop.f32.mrf.mxu0
        %v3336 = vpop.f32.mrf.mxu0
        %v3337 = vadd.f32 0.0, %v3336
        %v3338 = vpop.f32.mrf.mxu0
        %3339 = vmatprep.mubr.bf16.mxu0 0
        %3340 = vmatmul.mubr.bf16.gmra.mxu0 %v3277
        %v3341 = vpop.f32.mrf.mxu0
        %v3342 = vadd.f32 0.0, %v3341
        %v3343 = vpop.f32.mrf.mxu0
        %v3344 = vpop.f32.mrf.mxu0
        %v3345 = vadd.f32 0.0, %v3344
        %v3346 = vpop.f32.mrf.mxu0
        %3347 = vdwg.mxu0
        %v3349 = vsel %vm3154, %v3248, 0
        %v3352 = vsel %vm3154, %v3249, 0
        %v3355 = vsel %vm3154, %v3250, 0
        %v3358 = vsel %vm3154, %v3251, 0
        %v3361 = vsel %vm3279, %v3252, 0
        %3363 = vmatprep.subr.bf16.mxu0 0
        %3364 = vmatpush1.bf16.msra.mxu0 0
        %3365 = vmatprep.subr.bf16.mxu0 0
        %3366 = vmatpush1.bf16.msra.mxu0 0
        %3367 = vmatprep.subr.bf16.mxu0 0
        %3368 = vmatpush1.bf16.msra.mxu0 0
        %3369 = vmatprep.subr.bf16.mxu0 0
        %3370 = vmatpush1.bf16.msra.mxu0 0
        %3371 = vmatprep.subr.bf16.mxu0 0
        %3372 = vmatpush1.bf16.msra.mxu0 0
        %3373 = vmatprep.subr.bf16.mxu0 0
        %3374 = vmatpush1.bf16.msra.mxu0 0
        %3375 = vmatprep.subr.bf16.mxu0 0
        %3376 = vmatpush1.bf16.msra.mxu0 0
        %3377 = vmatprep.subr.bf16.mxu0 0
        %3378 = vmatpush1.bf16.msra.mxu0 %v3361
        %3379 = vmatprep.subr.bf16.mxu0 0
        %3380 = vmatpush2.bf16.msra.mxu0 0
        %3381 = vmatprep.subr.bf16.mxu0 0
        %3382 = vmatpush2.bf16.msra.mxu0 0
        %3383 = vmatprep.subr.bf16.mxu0 0
        %3384 = vmatpush2.bf16.msra.mxu0 0
        %3385 = vmatprep.subr.bf16.mxu0 0
        %3386 = vmatpush2.bf16.msra.mxu0 0
        %3387 = vmatprep.subr.bf16.mxu0 0
        %3388 = vmatpush2.bf16.msra.mxu0 0
        %3389 = vmatprep.subr.bf16.mxu0 0
        %3390 = vmatpush2.bf16.msra.mxu0 0
        %3391 = vmatprep.subr.bf16.mxu0 0
        %3392 = vmatpush2.bf16.msra.mxu0 0
        %3393 = vmatprep.subr.bf16.mxu0 0
        %3394 = vmatpush2.bf16.msra.mxu0 0
        %3395 = vmatprep.mubr.bf16.mxu0 0
        %3396 = vmatmul.mubr.bf16.gmra.mxu0 %v3349
        %v3397 = vpop.f32.mrf.mxu0
        %v3398 = vadd.f32 %v3318, %v3397
        %v3399 = vpop.f32.mrf.mxu0
        %v3400 = vpop.f32.mrf.mxu0
        %v3401 = vadd.f32 %v3321, %v3400
        %v3402 = vpop.f32.mrf.mxu0
        %3403 = vmatprep.mubr.bf16.mxu0 0
        %3404 = vmatmul.mubr.bf16.gmra.mxu0 %v3352
        %v3405 = vpop.f32.mrf.mxu0
        %v3406 = vadd.f32 %v3326, %v3405
        %v3407 = vpop.f32.mrf.mxu0
        %v3408 = vpop.f32.mrf.mxu0
        %v3409 = vadd.f32 %v3329, %v3408
        %v3410 = vpop.f32.mrf.mxu0
        %3411 = vmatprep.mubr.bf16.mxu0 0
        %3412 = vmatmul.mubr.bf16.gmra.mxu0 %v3355
        %v3413 = vpop.f32.mrf.mxu0
        %v3414 = vadd.f32 %v3334, %v3413
        %v3415 = vpop.f32.mrf.mxu0
        %v3416 = vpop.f32.mrf.mxu0
        %v3417 = vadd.f32 %v3337, %v3416
        %v3418 = vpop.f32.mrf.mxu0
        %3419 = vmatprep.mubr.bf16.mxu0 0
        %3420 = vmatmul.mubr.bf16.gmra.mxu0 %v3358
        %v3421 = vpop.f32.mrf.mxu0
        %v3422 = vadd.f32 %v3342, %v3421
        %v3423 = vpop.f32.mrf.mxu0
        %v3424 = vpop.f32.mrf.mxu0
        %v3425 = vadd.f32 %v3345, %v3424
        %v3426 = vpop.f32.mrf.mxu0
        %3427 = vdwg.mxu0
        %v3428 = vld [vmem:[#allocation3 + $0x2] sm:$0xff]
        %v3429 = vld [vmem:[#allocation3 + $0x12] sm:$0xff]
        %v3430 = vld [vmem:[#allocation3 + $0x22] sm:$0xff]
        %v3431 = vld [vmem:[#allocation3 + $0x32] sm:$0xff]
        %v3432 = vld [vmem:[#allocation3 + $0x42] sm:$0xff]
        %v3433 = vld [vmem:[#allocation3 + $0x52] sm:$0xff]
        %v3434 = vld [vmem:[#allocation3 + $0x62] sm:$0xff]
        %v3435 = vld [vmem:[#allocation3 + $0x72] sm:$0xff]
        %v3436 = vpack.c.bf16 %v3429, %v3428
        %v3437 = vpack.c.bf16 %v3431, %v3430
        %v3438 = vpack.c.bf16 %v3433, %v3432
        %v3439 = vpack.c.bf16 %v3435, %v3434
        %s3440 = scalar_lea.vmem %s3, 8
        %v3441 = vld [vmem:[%s3440] sm:$0xf]
        %v3443 = vsel %vm3154, %v3436, 0
        %v3446 = vsel %vm3154, %v3437, 0
        %v3449 = vsel %vm3154, %v3438, 0
        %v3452 = vsel %vm3154, %v3439, 0
        %v3455 = vsel %vm3279, %v3441, 0
        %3457 = vmatprep.subr.bf16.mxu0 0
        %3458 = vmatpush1.bf16.msra.mxu0 0
        %3459 = vmatprep.subr.bf16.mxu0 0
        %3460 = vmatpush1.bf16.msra.mxu0 0
        %3461 = vmatprep.subr.bf16.mxu0 0
        %3462 = vmatpush1.bf16.msra.mxu0 0
        %3463 = vmatprep.subr.bf16.mxu0 0
        %3464 = vmatpush1.bf16.msra.mxu0 0
        %3465 = vmatprep.subr.bf16.mxu0 0
        %3466 = vmatpush1.bf16.msra.mxu0 0
        %3467 = vmatprep.subr.bf16.mxu0 0
        %3468 = vmatpush1.bf16.msra.mxu0 0
        %3469 = vmatprep.subr.bf16.mxu0 0
        %3470 = vmatpush1.bf16.msra.mxu0 0
        %3471 = vmatprep.subr.bf16.mxu0 0
        %3472 = vmatpush1.bf16.msra.mxu0 %v3455
        %3473 = vmatprep.subr.bf16.mxu0 0
        %3474 = vmatpush2.bf16.msra.mxu0 0
        %3475 = vmatprep.subr.bf16.mxu0 0
        %3476 = vmatpush2.bf16.msra.mxu0 0
        %3477 = vmatprep.subr.bf16.mxu0 0
        %3478 = vmatpush2.bf16.msra.mxu0 0
        %3479 = vmatprep.subr.bf16.mxu0 0
        %3480 = vmatpush2.bf16.msra.mxu0 0
        %3481 = vmatprep.subr.bf16.mxu0 0
        %3482 = vmatpush2.bf16.msra.mxu0 0
        %3483 = vmatprep.subr.bf16.mxu0 0
        %3484 = vmatpush2.bf16.msra.mxu0 0
        %3485 = vmatprep.subr.bf16.mxu0 0
        %3486 = vmatpush2.bf16.msra.mxu0 0
        %3487 = vmatprep.subr.bf16.mxu0 0
        %3488 = vmatpush2.bf16.msra.mxu0 0
        %3489 = vmatprep.mubr.bf16.mxu0 0
        %3490 = vmatmul.mubr.bf16.gmra.mxu0 %v3443
        %v3491 = vpop.f32.mrf.mxu0
        %v3492 = vadd.f32 0.0, %v3491
        %v3493 = vpop.f32.mrf.mxu0
        %v3494 = vpop.f32.mrf.mxu0
        %v3495 = vadd.f32 0.0, %v3494
        %v3496 = vpop.f32.mrf.mxu0
        %3497 = vmatprep.mubr.bf16.mxu0 0
        %3498 = vmatmul.mubr.bf16.gmra.mxu0 %v3446
        %v3499 = vpop.f32.mrf.mxu0
        %v3500 = vadd.f32 0.0, %v3499
        %v3501 = vpop.f32.mrf.mxu0
        %v3502 = vpop.f32.mrf.mxu0
        %v3503 = vadd.f32 0.0, %v3502
        %v3504 = vpop.f32.mrf.mxu0
        %3505 = vmatprep.mubr.bf16.mxu0 0
        %3506 = vmatmul.mubr.bf16.gmra.mxu0 %v3449
        %v3507 = vpop.f32.mrf.mxu0
        %v3508 = vadd.f32 0.0, %v3507
        %v3509 = vpop.f32.mrf.mxu0
        %v3510 = vpop.f32.mrf.mxu0
        %v3511 = vadd.f32 0.0, %v3510
        %v3512 = vpop.f32.mrf.mxu0
        %3513 = vmatprep.mubr.bf16.mxu0 0
        %3514 = vmatmul.mubr.bf16.gmra.mxu0 %v3452
        %v3515 = vpop.f32.mrf.mxu0
        %v3516 = vadd.f32 0.0, %v3515
        %v3517 = vpop.f32.mrf.mxu0
        %v3518 = vpop.f32.mrf.mxu0
        %v3519 = vadd.f32 0.0, %v3518
        %v3520 = vpop.f32.mrf.mxu0
        %3521 = vdwg.mxu0
        %v3522 = vadd.f32 %v3398, %v3492
        %v3523 = vadd.f32 %v3401, %v3495
        %v3524 = vadd.f32 %v3406, %v3500
        %v3525 = vadd.f32 %v3409, %v3503
        %v3526 = vadd.f32 %v3414, %v3508
        %v3527 = vadd.f32 %v3417, %v3511
        %v3528 = vadd.f32 %v3422, %v3516
        %v3529 = vadd.f32 %v3425, %v3519
        %v3530 = vld [vmem:[%s3231] sm:$0xff]
        %v3531 = vld [vmem:[%s3231 + $0x10] sm:$0xff]
        %v3532 = vld [vmem:[%s3231 + $0x20] sm:$0xff]
        %v3533 = vld [vmem:[%s3231 + $0x30] sm:$0xff]
        %v3534 = vld [vmem:[%s3231 + $0x40] sm:$0xff]
        %v3535 = vld [vmem:[%s3231 + $0x50] sm:$0xff]
        %v3536 = vld [vmem:[%s3231 + $0x60] sm:$0xff]
        %v3537 = vld [vmem:[%s3231 + $0x70] sm:$0xff]
        %v3538 = vpack.c.bf16 %v3531, %v3530
        %v3539 = vpack.c.bf16 %v3533, %v3532
        %v3540 = vpack.c.bf16 %v3535, %v3534
        %v3541 = vpack.c.bf16 %v3537, %v3536
        %s3542 = scalar_lea.vmem %s3, 12
        %v3543 = vld [vmem:[%s3542] sm:$0xf]
        %v3545 = vsel %vm3154, %v3538, 0
        %v3548 = vsel %vm3154, %v3539, 0
        %v3551 = vsel %vm3154, %v3540, 0
        %v3554 = vsel %vm3154, %v3541, 0
        %v3557 = vsel %vm3279, %v3543, 0
        %3559 = vmatprep.subr.bf16.mxu0 0
        %3560 = vmatpush1.bf16.msra.mxu0 0
        %3561 = vmatprep.subr.bf16.mxu0 0
        %3562 = vmatpush1.bf16.msra.mxu0 0
        %3563 = vmatprep.subr.bf16.mxu0 0
        %3564 = vmatpush1.bf16.msra.mxu0 0
        %3565 = vmatprep.subr.bf16.mxu0 0
        %3566 = vmatpush1.bf16.msra.mxu0 0
        %3567 = vmatprep.subr.bf16.mxu0 0
        %3568 = vmatpush1.bf16.msra.mxu0 0
        %3569 = vmatprep.subr.bf16.mxu0 0
        %3570 = vmatpush1.bf16.msra.mxu0 0
        %3571 = vmatprep.subr.bf16.mxu0 0
        %3572 = vmatpush1.bf16.msra.mxu0 0
        %3573 = vmatprep.subr.bf16.mxu0 0
        %3574 = vmatpush1.bf16.msra.mxu0 %v3557
        %3575 = vmatprep.subr.bf16.mxu0 0
        %3576 = vmatpush2.bf16.msra.mxu0 0
        %3577 = vmatprep.subr.bf16.mxu0 0
        %3578 = vmatpush2.bf16.msra.mxu0 0
        %3579 = vmatprep.subr.bf16.mxu0 0
        %3580 = vmatpush2.bf16.msra.mxu0 0
        %3581 = vmatprep.subr.bf16.mxu0 0
        %3582 = vmatpush2.bf16.msra.mxu0 0
        %3583 = vmatprep.subr.bf16.mxu0 0
        %3584 = vmatpush2.bf16.msra.mxu0 0
        %3585 = vmatprep.subr.bf16.mxu0 0
        %3586 = vmatpush2.bf16.msra.mxu0 0
        %3587 = vmatprep.subr.bf16.mxu0 0
        %3588 = vmatpush2.bf16.msra.mxu0 0
        %3589 = vmatprep.subr.bf16.mxu0 0
        %3590 = vmatpush2.bf16.msra.mxu0 0
        %3591 = vmatprep.mubr.bf16.mxu0 0
        %3592 = vmatmul.mubr.bf16.gmra.mxu0 %v3545
        %v3593 = vpop.f32.mrf.mxu0
        %v3594 = vadd.f32 0.0, %v3593
        %v3595 = vpop.f32.mrf.mxu0
        %v3596 = vpop.f32.mrf.mxu0
        %v3597 = vadd.f32 0.0, %v3596
        %v3598 = vpop.f32.mrf.mxu0
        %3599 = vmatprep.mubr.bf16.mxu0 0
        %3600 = vmatmul.mubr.bf16.gmra.mxu0 %v3548
        %v3601 = vpop.f32.mrf.mxu0
        %v3602 = vadd.f32 0.0, %v3601
        %v3603 = vpop.f32.mrf.mxu0
        %v3604 = vpop.f32.mrf.mxu0
        %v3605 = vadd.f32 0.0, %v3604
        %v3606 = vpop.f32.mrf.mxu0
        %3607 = vmatprep.mubr.bf16.mxu0 0
        %3608 = vmatmul.mubr.bf16.gmra.mxu0 %v3551
        %v3609 = vpop.f32.mrf.mxu0
        %v3610 = vadd.f32 0.0, %v3609
        %v3611 = vpop.f32.mrf.mxu0
        %v3612 = vpop.f32.mrf.mxu0
        %v3613 = vadd.f32 0.0, %v3612
        %v3614 = vpop.f32.mrf.mxu0
        %3615 = vmatprep.mubr.bf16.mxu0 0
        %3616 = vmatmul.mubr.bf16.gmra.mxu0 %v3554
        %v3617 = vpop.f32.mrf.mxu0
        %v3618 = vadd.f32 0.0, %v3617
        %v3619 = vpop.f32.mrf.mxu0
        %v3620 = vpop.f32.mrf.mxu0
        %v3621 = vadd.f32 0.0, %v3620
        %v3622 = vpop.f32.mrf.mxu0
        %3623 = vdwg.mxu0
        %v3624 = vadd.f32 %v3522, %v3594
        %v3625 = vadd.f32 %v3523, %v3597
        %v3626 = vadd.f32 %v3524, %v3602
        %v3627 = vadd.f32 %v3525, %v3605
        %v3628 = vadd.f32 %v3526, %v3610
        %v3629 = vadd.f32 %v3527, %v3613
        %v3630 = vadd.f32 %v3528, %v3618
        %v3631 = vadd.f32 %v3529, %v3621
        %v3632 = vld [vmem:[%s3231 + $0x1] sm:$0xff]
        %v3633 = vld [vmem:[%s3231 + $0x11] sm:$0xff]
        %v3634 = vld [vmem:[%s3231 + $0x21] sm:$0xff]
        %v3635 = vld [vmem:[%s3231 + $0x31] sm:$0xff]
        %v3636 = vld [vmem:[%s3231 + $0x41] sm:$0xff]
        %v3637 = vld [vmem:[%s3231 + $0x51] sm:$0xff]
        %v3638 = vld [vmem:[%s3231 + $0x61] sm:$0xff]
        %v3639 = vld [vmem:[%s3231 + $0x71] sm:$0xff]
        %v3640 = vpack.c.bf16 %v3633, %v3632
        %v3641 = vpack.c.bf16 %v3635, %v3634
        %v3642 = vpack.c.bf16 %v3637, %v3636
        %v3643 = vpack.c.bf16 %v3639, %v3638
        %s3644 = scalar_lea.vmem %s3, 16
        %v3645 = vld [vmem:[%s3644] sm:$0xf]
        %v3647 = vsel %vm3154, %v3640, 0
        %v3650 = vsel %vm3154, %v3641, 0
        %v3653 = vsel %vm3154, %v3642, 0
        %v3656 = vsel %vm3154, %v3643, 0
        %v3659 = vsel %vm3279, %v3645, 0
        %3661 = vmatprep.subr.bf16.mxu0 0
        %3662 = vmatpush1.bf16.msra.mxu0 0
        %3663 = vmatprep.subr.bf16.mxu0 0
        %3664 = vmatpush1.bf16.msra.mxu0 0
        %3665 = vmatprep.subr.bf16.mxu0 0
        %3666 = vmatpush1.bf16.msra.mxu0 0
        %3667 = vmatprep.subr.bf16.mxu0 0
        %3668 = vmatpush1.bf16.msra.mxu0 0
        %3669 = vmatprep.subr.bf16.mxu0 0
        %3670 = vmatpush1.bf16.msra.mxu0 0
        %3671 = vmatprep.subr.bf16.mxu0 0
        %3672 = vmatpush1.bf16.msra.mxu0 0
        %3673 = vmatprep.subr.bf16.mxu0 0
        %3674 = vmatpush1.bf16.msra.mxu0 0
        %3675 = vmatprep.subr.bf16.mxu0 0
        %3676 = vmatpush1.bf16.msra.mxu0 %v3659
        %3677 = vmatprep.subr.bf16.mxu0 0
        %3678 = vmatpush2.bf16.msra.mxu0 0
        %3679 = vmatprep.subr.bf16.mxu0 0
        %3680 = vmatpush2.bf16.msra.mxu0 0
        %3681 = vmatprep.subr.bf16.mxu0 0
        %3682 = vmatpush2.bf16.msra.mxu0 0
        %3683 = vmatprep.subr.bf16.mxu0 0
        %3684 = vmatpush2.bf16.msra.mxu0 0
        %3685 = vmatprep.subr.bf16.mxu0 0
        %3686 = vmatpush2.bf16.msra.mxu0 0
        %3687 = vmatprep.subr.bf16.mxu0 0
        %3688 = vmatpush2.bf16.msra.mxu0 0
        %3689 = vmatprep.subr.bf16.mxu0 0
        %3690 = vmatpush2.bf16.msra.mxu0 0
        %3691 = vmatprep.subr.bf16.mxu0 0
        %3692 = vmatpush2.bf16.msra.mxu0 0
        %3693 = vmatprep.mubr.bf16.mxu0 0
        %3694 = vmatmul.mubr.bf16.gmra.mxu0 %v3647
        %v3695 = vpop.f32.mrf.mxu0
        %v3696 = vadd.f32 0.0, %v3695
        %v3697 = vpop.f32.mrf.mxu0
        %v3698 = vpop.f32.mrf.mxu0
        %v3699 = vadd.f32 0.0, %v3698
        %v3700 = vpop.f32.mrf.mxu0
        %3701 = vmatprep.mubr.bf16.mxu0 0
        %3702 = vmatmul.mubr.bf16.gmra.mxu0 %v3650
        %v3703 = vpop.f32.mrf.mxu0
        %v3704 = vadd.f32 0.0, %v3703
        %v3705 = vpop.f32.mrf.mxu0
        %v3706 = vpop.f32.mrf.mxu0
        %v3707 = vadd.f32 0.0, %v3706
        %v3708 = vpop.f32.mrf.mxu0
        %3709 = vmatprep.mubr.bf16.mxu0 0
        %3710 = vmatmul.mubr.bf16.gmra.mxu0 %v3653
        %v3711 = vpop.f32.mrf.mxu0
        %v3712 = vadd.f32 0.0, %v3711
        %v3713 = vpop.f32.mrf.mxu0
        %v3714 = vpop.f32.mrf.mxu0
        %v3715 = vadd.f32 0.0, %v3714
        %v3716 = vpop.f32.mrf.mxu0
        %3717 = vmatprep.mubr.bf16.mxu0 0
        %3718 = vmatmul.mubr.bf16.gmra.mxu0 %v3656
        %v3719 = vpop.f32.mrf.mxu0
        %v3720 = vadd.f32 0.0, %v3719
        %v3721 = vpop.f32.mrf.mxu0
        %v3722 = vpop.f32.mrf.mxu0
        %v3723 = vadd.f32 0.0, %v3722
        %v3724 = vpop.f32.mrf.mxu0
        %3725 = vdwg.mxu0
        %v3726 = vadd.f32 %v3624, %v3696
        %v3727 = vadd.f32 %v3625, %v3699
        %v3728 = vadd.f32 %v3626, %v3704
        %v3729 = vadd.f32 %v3627, %v3707
        %v3730 = vadd.f32 %v3628, %v3712
        %v3731 = vadd.f32 %v3629, %v3715
        %v3732 = vadd.f32 %v3630, %v3720
        %v3733 = vadd.f32 %v3631, %v3723
        %v3734 = vld [vmem:[%s3231 + $0x2] sm:$0xff]
        %v3735 = vld [vmem:[%s3231 + $0x12] sm:$0xff]
        %v3736 = vld [vmem:[%s3231 + $0x22] sm:$0xff]
        %v3737 = vld [vmem:[%s3231 + $0x32] sm:$0xff]
        %v3738 = vld [vmem:[%s3231 + $0x42] sm:$0xff]
        %v3739 = vld [vmem:[%s3231 + $0x52] sm:$0xff]
        %v3740 = vld [vmem:[%s3231 + $0x62] sm:$0xff]
        %v3741 = vld [vmem:[%s3231 + $0x72] sm:$0xff]
        %v3742 = vpack.c.bf16 %v3735, %v3734
        %v3743 = vpack.c.bf16 %v3737, %v3736
        %v3744 = vpack.c.bf16 %v3739, %v3738
        %v3745 = vpack.c.bf16 %v3741, %v3740
        %s3746 = scalar_lea.vmem %s3, 20
        %v3747 = vld [vmem:[%s3746] sm:$0xf]
        %v3749 = vsel %vm3154, %v3742, 0
        %v3752 = vsel %vm3154, %v3743, 0
        %v3755 = vsel %vm3154, %v3744, 0
        %v3758 = vsel %vm3154, %v3745, 0
        %v3761 = vsel %vm3279, %v3747, 0
        %3763 = vmatprep.subr.bf16.mxu0 0
        %3764 = vmatpush1.bf16.msra.mxu0 0
        %3765 = vmatprep.subr.bf16.mxu0 0
        %3766 = vmatpush1.bf16.msra.mxu0 0
        %3767 = vmatprep.subr.bf16.mxu0 0
        %3768 = vmatpush1.bf16.msra.mxu0 0
        %3769 = vmatprep.subr.bf16.mxu0 0
        %3770 = vmatpush1.bf16.msra.mxu0 0
        %3771 = vmatprep.subr.bf16.mxu0 0
        %3772 = vmatpush1.bf16.msra.mxu0 0
        %3773 = vmatprep.subr.bf16.mxu0 0
        %3774 = vmatpush1.bf16.msra.mxu0 0
        %3775 = vmatprep.subr.bf16.mxu0 0
        %3776 = vmatpush1.bf16.msra.mxu0 0
        %3777 = vmatprep.subr.bf16.mxu0 0
        %3778 = vmatpush1.bf16.msra.mxu0 %v3761
        %3779 = vmatprep.subr.bf16.mxu0 0
        %3780 = vmatpush2.bf16.msra.mxu0 0
        %3781 = vmatprep.subr.bf16.mxu0 0
        %3782 = vmatpush2.bf16.msra.mxu0 0
        %3783 = vmatprep.subr.bf16.mxu0 0
        %3784 = vmatpush2.bf16.msra.mxu0 0
        %3785 = vmatprep.subr.bf16.mxu0 0
        %3786 = vmatpush2.bf16.msra.mxu0 0
        %3787 = vmatprep.subr.bf16.mxu0 0
        %3788 = vmatpush2.bf16.msra.mxu0 0
        %3789 = vmatprep.subr.bf16.mxu0 0
        %3790 = vmatpush2.bf16.msra.mxu0 0
        %3791 = vmatprep.subr.bf16.mxu0 0
        %3792 = vmatpush2.bf16.msra.mxu0 0
        %3793 = vmatprep.subr.bf16.mxu0 0
        %3794 = vmatpush2.bf16.msra.mxu0 0
        %3795 = vmatprep.mubr.bf16.mxu0 0
        %3796 = vmatmul.mubr.bf16.gmra.mxu0 %v3749
        %v3797 = vpop.f32.mrf.mxu0
        %v3798 = vadd.f32 0.0, %v3797
        %v3799 = vpop.f32.mrf.mxu0
        %v3800 = vpop.f32.mrf.mxu0
        %v3801 = vadd.f32 0.0, %v3800
        %v3802 = vpop.f32.mrf.mxu0
        %3803 = vmatprep.mubr.bf16.mxu0 0
        %3804 = vmatmul.mubr.bf16.gmra.mxu0 %v3752
        %v3805 = vpop.f32.mrf.mxu0
        %v3806 = vadd.f32 0.0, %v3805
        %v3807 = vpop.f32.mrf.mxu0
        %v3808 = vpop.f32.mrf.mxu0
        %v3809 = vadd.f32 0.0, %v3808
        %v3810 = vpop.f32.mrf.mxu0
        %3811 = vmatprep.mubr.bf16.mxu0 0
        %3812 = vmatmul.mubr.bf16.gmra.mxu0 %v3755
        %v3813 = vpop.f32.mrf.mxu0
        %v3814 = vadd.f32 0.0, %v3813
        %v3815 = vpop.f32.mrf.mxu0
        %v3816 = vpop.f32.mrf.mxu0
        %v3817 = vadd.f32 0.0, %v3816
        %v3818 = vpop.f32.mrf.mxu0
        %3819 = vmatprep.mubr.bf16.mxu0 0
        %3820 = vmatmul.mubr.bf16.gmra.mxu0 %v3758
        %v3821 = vpop.f32.mrf.mxu0
        %v3822 = vadd.f32 0.0, %v3821
        %v3823 = vpop.f32.mrf.mxu0
        %v3824 = vpop.f32.mrf.mxu0
        %v3825 = vadd.f32 0.0, %v3824
        %v3826 = vpop.f32.mrf.mxu0
        %3827 = vdwg.mxu0
        %v3828 = vadd.f32 %v3726, %v3798
        %v3829 = vadd.f32 %v3727, %v3801
        %v3830 = vadd.f32 %v3728, %v3806
        %v3831 = vadd.f32 %v3729, %v3809
        %v3832 = vadd.f32 %v3730, %v3814
        %v3833 = vadd.f32 %v3731, %v3817
        %v3834 = vadd.f32 %v3732, %v3822
        %v3835 = vadd.f32 %v3733, %v3825
        %s3836 = scalar_lea.vmem [#allocation3], 32
        %v3837 = vld [vmem:[%s3836] sm:$0xff]
        %v3838 = vld [vmem:[%s3836 + $0x10] sm:$0xff]
        %v3839 = vld [vmem:[%s3836 + $0x20] sm:$0xff]
        %v3840 = vld [vmem:[%s3836 + $0x30] sm:$0xff]
        %v3841 = vld [vmem:[%s3836 + $0x40] sm:$0xff]
        %v3842 = vld [vmem:[%s3836 + $0x50] sm:$0xff]
        %v3843 = vld [vmem:[%s3836 + $0x60] sm:$0xff]
        %v3844 = vld [vmem:[%s3836 + $0x70] sm:$0xff]
        %v3845 = vpack.c.bf16 %v3838, %v3837
        %v3846 = vpack.c.bf16 %v3840, %v3839
        %v3847 = vpack.c.bf16 %v3842, %v3841
        %v3848 = vpack.c.bf16 %v3844, %v3843
        %s3849 = scalar_lea.vmem %s3, 24
        %v3850 = vld [vmem:[%s3849] sm:$0xf]
        %v3852 = vsel %vm3154, %v3845, 0
        %v3855 = vsel %vm3154, %v3846, 0
        %v3858 = vsel %vm3154, %v3847, 0
        %v3861 = vsel %vm3154, %v3848, 0
        %v3864 = vsel %vm3279, %v3850, 0
        %3866 = vmatprep.subr.bf16.mxu0 0
        %3867 = vmatpush1.bf16.msra.mxu0 0
        %3868 = vmatprep.subr.bf16.mxu0 0
        %3869 = vmatpush1.bf16.msra.mxu0 0
        %3870 = vmatprep.subr.bf16.mxu0 0
        %3871 = vmatpush1.bf16.msra.mxu0 0
        %3872 = vmatprep.subr.bf16.mxu0 0
        %3873 = vmatpush1.bf16.msra.mxu0 0
        %3874 = vmatprep.subr.bf16.mxu0 0
        %3875 = vmatpush1.bf16.msra.mxu0 0
        %3876 = vmatprep.subr.bf16.mxu0 0
        %3877 = vmatpush1.bf16.msra.mxu0 0
        %3878 = vmatprep.subr.bf16.mxu0 0
        %3879 = vmatpush1.bf16.msra.mxu0 0
        %3880 = vmatprep.subr.bf16.mxu0 0
        %3881 = vmatpush1.bf16.msra.mxu0 %v3864
        %3882 = vmatprep.subr.bf16.mxu0 0
        %3883 = vmatpush2.bf16.msra.mxu0 0
        %3884 = vmatprep.subr.bf16.mxu0 0
        %3885 = vmatpush2.bf16.msra.mxu0 0
        %3886 = vmatprep.subr.bf16.mxu0 0
        %3887 = vmatpush2.bf16.msra.mxu0 0
        %3888 = vmatprep.subr.bf16.mxu0 0
        %3889 = vmatpush2.bf16.msra.mxu0 0
        %3890 = vmatprep.subr.bf16.mxu0 0
        %3891 = vmatpush2.bf16.msra.mxu0 0
        %3892 = vmatprep.subr.bf16.mxu0 0
        %3893 = vmatpush2.bf16.msra.mxu0 0
        %3894 = vmatprep.subr.bf16.mxu0 0
        %3895 = vmatpush2.bf16.msra.mxu0 0
        %3896 = vmatprep.subr.bf16.mxu0 0
        %3897 = vmatpush2.bf16.msra.mxu0 0
        %3898 = vmatprep.mubr.bf16.mxu0 0
        %3899 = vmatmul.mubr.bf16.gmra.mxu0 %v3852
        %v3900 = vpop.f32.mrf.mxu0
        %v3901 = vadd.f32 0.0, %v3900
        %v3902 = vpop.f32.mrf.mxu0
        %v3903 = vpop.f32.mrf.mxu0
        %v3904 = vadd.f32 0.0, %v3903
        %v3905 = vpop.f32.mrf.mxu0
        %3906 = vmatprep.mubr.bf16.mxu0 0
        %3907 = vmatmul.mubr.bf16.gmra.mxu0 %v3855
        %v3908 = vpop.f32.mrf.mxu0
        %v3909 = vadd.f32 0.0, %v3908
        %v3910 = vpop.f32.mrf.mxu0
        %v3911 = vpop.f32.mrf.mxu0
        %v3912 = vadd.f32 0.0, %v3911
        %v3913 = vpop.f32.mrf.mxu0
        %3914 = vmatprep.mubr.bf16.mxu0 0
        %3915 = vmatmul.mubr.bf16.gmra.mxu0 %v3858
        %v3916 = vpop.f32.mrf.mxu0
        %v3917 = vadd.f32 0.0, %v3916
        %v3918 = vpop.f32.mrf.mxu0
        %v3919 = vpop.f32.mrf.mxu0
        %v3920 = vadd.f32 0.0, %v3919
        %v3921 = vpop.f32.mrf.mxu0
        %3922 = vmatprep.mubr.bf16.mxu0 0
        %3923 = vmatmul.mubr.bf16.gmra.mxu0 %v3861
        %v3924 = vpop.f32.mrf.mxu0
        %v3925 = vadd.f32 0.0, %v3924
        %v3926 = vpop.f32.mrf.mxu0
        %v3927 = vpop.f32.mrf.mxu0
        %v3928 = vadd.f32 0.0, %v3927
        %v3929 = vpop.f32.mrf.mxu0
        %3930 = vdwg.mxu0
        %v3931 = vadd.f32 %v3828, %v3901
        %v3932 = vadd.f32 %v3829, %v3904
        %v3933 = vadd.f32 %v3830, %v3909
        %v3934 = vadd.f32 %v3831, %v3912
        %v3935 = vadd.f32 %v3832, %v3917
        %v3936 = vadd.f32 %v3833, %v3920
        %v3937 = vadd.f32 %v3834, %v3925
        %v3938 = vadd.f32 %v3835, %v3928
        %v3939 = vld [vmem:[%s3836 + $0x1] sm:$0xff]
        %v3940 = vld [vmem:[%s3836 + $0x11] sm:$0xff]
        %v3941 = vld [vmem:[%s3836 + $0x21] sm:$0xff]
        %v3942 = vld [vmem:[%s3836 + $0x31] sm:$0xff]
        %v3943 = vld [vmem:[%s3836 + $0x41] sm:$0xff]
        %v3944 = vld [vmem:[%s3836 + $0x51] sm:$0xff]
        %v3945 = vld [vmem:[%s3836 + $0x61] sm:$0xff]
        %v3946 = vld [vmem:[%s3836 + $0x71] sm:$0xff]
        %v3947 = vpack.c.bf16 %v3940, %v3939
        %v3948 = vpack.c.bf16 %v3942, %v3941
        %v3949 = vpack.c.bf16 %v3944, %v3943
        %v3950 = vpack.c.bf16 %v3946, %v3945
        %s3951 = scalar_lea.vmem %s3, 28
        %v3952 = vld [vmem:[%s3951] sm:$0xf]
        %v3954 = vsel %vm3154, %v3947, 0
        %v3957 = vsel %vm3154, %v3948, 0
        %v3960 = vsel %vm3154, %v3949, 0
        %v3963 = vsel %vm3154, %v3950, 0
        %v3966 = vsel %vm3279, %v3952, 0
        %3968 = vmatprep.subr.bf16.mxu0 0
        %3969 = vmatpush1.bf16.msra.mxu0 0
        %3970 = vmatprep.subr.bf16.mxu0 0
        %3971 = vmatpush1.bf16.msra.mxu0 0
        %3972 = vmatprep.subr.bf16.mxu0 0
        %3973 = vmatpush1.bf16.msra.mxu0 0
        %3974 = vmatprep.subr.bf16.mxu0 0
        %3975 = vmatpush1.bf16.msra.mxu0 0
        %3976 = vmatprep.subr.bf16.mxu0 0
        %3977 = vmatpush1.bf16.msra.mxu0 0
        %3978 = vmatprep.subr.bf16.mxu0 0
        %3979 = vmatpush1.bf16.msra.mxu0 0
        %3980 = vmatprep.subr.bf16.mxu0 0
        %3981 = vmatpush1.bf16.msra.mxu0 0
        %3982 = vmatprep.subr.bf16.mxu0 0
        %3983 = vmatpush1.bf16.msra.mxu0 %v3966
        %3984 = vmatprep.subr.bf16.mxu0 0
        %3985 = vmatpush2.bf16.msra.mxu0 0
        %3986 = vmatprep.subr.bf16.mxu0 0
        %3987 = vmatpush2.bf16.msra.mxu0 0
        %3988 = vmatprep.subr.bf16.mxu0 0
        %3989 = vmatpush2.bf16.msra.mxu0 0
        %3990 = vmatprep.subr.bf16.mxu0 0
        %3991 = vmatpush2.bf16.msra.mxu0 0
        %3992 = vmatprep.subr.bf16.mxu0 0
        %3993 = vmatpush2.bf16.msra.mxu0 0
        %3994 = vmatprep.subr.bf16.mxu0 0
        %3995 = vmatpush2.bf16.msra.mxu0 0
        %3996 = vmatprep.subr.bf16.mxu0 0
        %3997 = vmatpush2.bf16.msra.mxu0 0
        %3998 = vmatprep.subr.bf16.mxu0 0
        %3999 = vmatpush2.bf16.msra.mxu0 0
        %4000 = vmatprep.mubr.bf16.mxu0 0
        %4001 = vmatmul.mubr.bf16.gmra.mxu0 %v3954
        %v4002 = vpop.f32.mrf.mxu0
        %v4003 = vadd.f32 0.0, %v4002
        %v4004 = vpop.f32.mrf.mxu0
        %v4005 = vpop.f32.mrf.mxu0
        %v4006 = vadd.f32 0.0, %v4005
        %v4007 = vpop.f32.mrf.mxu0
        %4008 = vmatprep.mubr.bf16.mxu0 0
        %4009 = vmatmul.mubr.bf16.gmra.mxu0 %v3957
        %v4010 = vpop.f32.mrf.mxu0
        %v4011 = vadd.f32 0.0, %v4010
        %v4012 = vpop.f32.mrf.mxu0
        %v4013 = vpop.f32.mrf.mxu0
        %v4014 = vadd.f32 0.0, %v4013
        %v4015 = vpop.f32.mrf.mxu0
        %4016 = vmatprep.mubr.bf16.mxu0 0
        %4017 = vmatmul.mubr.bf16.gmra.mxu0 %v3960
        %v4018 = vpop.f32.mrf.mxu0
        %v4019 = vadd.f32 0.0, %v4018
        %v4020 = vpop.f32.mrf.mxu0
        %v4021 = vpop.f32.mrf.mxu0
        %v4022 = vadd.f32 0.0, %v4021
        %v4023 = vpop.f32.mrf.mxu0
        %4024 = vmatprep.mubr.bf16.mxu0 0
        %4025 = vmatmul.mubr.bf16.gmra.mxu0 %v3963
        %v4026 = vpop.f32.mrf.mxu0
        %v4027 = vadd.f32 0.0, %v4026
        %v4028 = vpop.f32.mrf.mxu0
        %v4029 = vpop.f32.mrf.mxu0
        %v4030 = vadd.f32 0.0, %v4029
        %v4031 = vpop.f32.mrf.mxu0
        %4032 = vdwg.mxu0
        %v4033 = vadd.f32 %v3931, %v4003
        %v4034 = vadd.f32 %v3932, %v4006
        %v4035 = vadd.f32 %v3933, %v4011
        %v4036 = vadd.f32 %v3934, %v4014
        %v4037 = vadd.f32 %v3935, %v4019
        %v4038 = vadd.f32 %v3936, %v4022
        %v4039 = vadd.f32 %v3937, %v4027
        %v4040 = vadd.f32 %v3938, %v4030
        %v4041 = vld [vmem:[%s3836 + $0x2] sm:$0xff]
        %v4042 = vld [vmem:[%s3836 + $0x12] sm:$0xff]
        %v4043 = vld [vmem:[%s3836 + $0x22] sm:$0xff]
        %v4044 = vld [vmem:[%s3836 + $0x32] sm:$0xff]
        %v4045 = vld [vmem:[%s3836 + $0x42] sm:$0xff]
        %v4046 = vld [vmem:[%s3836 + $0x52] sm:$0xff]
        %v4047 = vld [vmem:[%s3836 + $0x62] sm:$0xff]
        %v4048 = vld [vmem:[%s3836 + $0x72] sm:$0xff]
        %v4049 = vpack.c.bf16 %v4042, %v4041
        %v4050 = vpack.c.bf16 %v4044, %v4043
        %v4051 = vpack.c.bf16 %v4046, %v4045
        %v4052 = vpack.c.bf16 %v4048, %v4047
        %s4053 = scalar_lea.vmem %s3, 32
        %v4054 = vld [vmem:[%s4053] sm:$0xf]
        %v4056 = vsel %vm3154, %v4049, 0
        %v4059 = vsel %vm3154, %v4050, 0
        %v4062 = vsel %vm3154, %v4051, 0
        %v4065 = vsel %vm3154, %v4052, 0
        %v4068 = vsel %vm3279, %v4054, 0
        %4070 = vmatprep.subr.bf16.mxu0 0
        %4071 = vmatpush1.bf16.msra.mxu0 0
        %4072 = vmatprep.subr.bf16.mxu0 0
        %4073 = vmatpush1.bf16.msra.mxu0 0
        %4074 = vmatprep.subr.bf16.mxu0 0
        %4075 = vmatpush1.bf16.msra.mxu0 0
        %4076 = vmatprep.subr.bf16.mxu0 0
        %4077 = vmatpush1.bf16.msra.mxu0 0
        %4078 = vmatprep.subr.bf16.mxu0 0
        %4079 = vmatpush1.bf16.msra.mxu0 0
        %4080 = vmatprep.subr.bf16.mxu0 0
        %4081 = vmatpush1.bf16.msra.mxu0 0
        %4082 = vmatprep.subr.bf16.mxu0 0
        %4083 = vmatpush1.bf16.msra.mxu0 0
        %4084 = vmatprep.subr.bf16.mxu0 0
        %4085 = vmatpush1.bf16.msra.mxu0 %v4068
        %4086 = vmatprep.subr.bf16.mxu0 0
        %4087 = vmatpush2.bf16.msra.mxu0 0
        %4088 = vmatprep.subr.bf16.mxu0 0
        %4089 = vmatpush2.bf16.msra.mxu0 0
        %4090 = vmatprep.subr.bf16.mxu0 0
        %4091 = vmatpush2.bf16.msra.mxu0 0
        %4092 = vmatprep.subr.bf16.mxu0 0
        %4093 = vmatpush2.bf16.msra.mxu0 0
        %4094 = vmatprep.subr.bf16.mxu0 0
        %4095 = vmatpush2.bf16.msra.mxu0 0
        %4096 = vmatprep.subr.bf16.mxu0 0
        %4097 = vmatpush2.bf16.msra.mxu0 0
        %4098 = vmatprep.subr.bf16.mxu0 0
        %4099 = vmatpush2.bf16.msra.mxu0 0
        %4100 = vmatprep.subr.bf16.mxu0 0
        %4101 = vmatpush2.bf16.msra.mxu0 0
        %4102 = vmatprep.mubr.bf16.mxu0 0
        %4103 = vmatmul.mubr.bf16.gmra.mxu0 %v4056
        %v4104 = vpop.f32.mrf.mxu0
        %v4105 = vadd.f32 0.0, %v4104
        %v4106 = vpop.f32.mrf.mxu0
        %v4107 = vpop.f32.mrf.mxu0
        %v4108 = vadd.f32 0.0, %v4107
        %v4109 = vpop.f32.mrf.mxu0
        %4110 = vmatprep.mubr.bf16.mxu0 0
        %4111 = vmatmul.mubr.bf16.gmra.mxu0 %v4059
        %v4112 = vpop.f32.mrf.mxu0
        %v4113 = vadd.f32 0.0, %v4112
        %v4114 = vpop.f32.mrf.mxu0
        %v4115 = vpop.f32.mrf.mxu0
        %v4116 = vadd.f32 0.0, %v4115
        %v4117 = vpop.f32.mrf.mxu0
        %4118 = vmatprep.mubr.bf16.mxu0 0
        %4119 = vmatmul.mubr.bf16.gmra.mxu0 %v4062
        %v4120 = vpop.f32.mrf.mxu0
        %v4121 = vadd.f32 0.0, %v4120
        %v4122 = vpop.f32.mrf.mxu0
        %v4123 = vpop.f32.mrf.mxu0
        %v4124 = vadd.f32 0.0, %v4123
        %v4125 = vpop.f32.mrf.mxu0
        %4126 = vmatprep.mubr.bf16.mxu0 0
        %4127 = vmatmul.mubr.bf16.gmra.mxu0 %v4065
        %v4128 = vpop.f32.mrf.mxu0
        %v4129 = vadd.f32 0.0, %v4128
        %v4130 = vpop.f32.mrf.mxu0
        %v4131 = vpop.f32.mrf.mxu0
        %v4132 = vadd.f32 0.0, %v4131
        %v4133 = vpop.f32.mrf.mxu0
        %4134 = vdwg.mxu0
        %v4135 = vadd.f32 %v4033, %v4105
        %v4136 = vadd.f32 %v4034, %v4108
        %v4137 = vadd.f32 %v4035, %v4113
        %v4138 = vadd.f32 %v4036, %v4116
        %v4139 = vadd.f32 %v4037, %v4121
        %v4140 = vadd.f32 %v4038, %v4124
        %v4141 = vadd.f32 %v4039, %v4129
        %v4142 = vadd.f32 %v4040, %v4132
        %v4143 = vld [vmem:[%s4] sm:$0x1]
        %v4145 = vlaneseq
        %v4146 = vshrl.u32 %v4145, 7
        %v4147 = vsub.s32 0, %v4146
        %v4148 = vrot.slane %v4143, %v4147
        %v4150 = vadd.f32 %v4135, %v4148
        %v4151 = vadd.f32 %v4136, %v4148
        %v4152 = vadd.f32 %v4137, %v4148
        %v4153 = vadd.f32 %v4138, %v4148
        %v4154 = vadd.f32 %v4139, %v4148
        %v4155 = vadd.f32 %v4140, %v4148
        %v4156 = vadd.f32 %v4141, %v4148
        %v4157 = vadd.f32 %v4142, %v4148
        %v4158 = vmax.f32 %v4150, 0.0
        %v4159 = vmax.f32 %v4151, 0.0
        %v4160 = vmax.f32 %v4152, 0.0
        %v4161 = vmax.f32 %v4153, 0.0
        %v4162 = vmax.f32 %v4154, 0.0
        %v4163 = vmax.f32 %v4155, 0.0
        %v4164 = vmax.f32 %v4156, 0.0
        %v4165 = vmax.f32 %v4157, 0.0
        %v4166 = vmax.f32 %v4158, %v4159
        %v4167 = vmax.f32 %v4160, %v4161
        %v4168 = vmax.f32 %v4162, %v4163
        %v4169 = vmax.f32 %v4164, %v4165
        %4170 = vst.msk [vmem:[#allocation5] sm:$0xff] %vm3154, %v4166
        %4171 = vst.msk [vmem:[#allocation5 + $0x8] sm:$0xff] %vm3154, %v4167
        %4172 = vst.msk [vmem:[#allocation5 + $0x10] sm:$0xff] %vm3154, %v4168
        %4173 = vst.msk [vmem:[#allocation5 + $0x18] sm:$0xff] %vm3154, %v4169
        %v4174 = vld [vmem:[#allocation5] ss:$2 sm:$0xff]
        %s4175 = scalar_lea.vmem [#allocation5], 16
        %v4176 = vld [vmem:[%s4175] ss:$2 sm:$0xff]
        %s4177 = scalar_lea.vmem [#allocation5], 1
        %v4178 = vld [vmem:[%s4177] ss:$2 sm:$0xff]
        %s4179 = scalar_lea.vmem [#allocation5], 17
        %v4180 = vld [vmem:[%s4179] ss:$2 sm:$0xff]
        %v4181 = vmax.f32 %v4174, %v4178
        %v4182 = vmax.f32 %v4176, %v4180
        %v4183 = vld [vmem:[%s6] sm:$0x1]
        %v4184 = vpack.c.bf16 %v4181, %v4181
        %v4185 = vld [vmem:[%s5] sm:$0xf]
        %v4187 = vsel %vm3154, %v4184, 0
        %v4190 = vsel %vm3279, %v4185, 0
        %4192 = vmatprep.subr.bf16.mxu0 0
        %4193 = vmatpush1.bf16.msra.mxu0 0
        %4194 = vmatprep.subr.bf16.mxu0 0
        %4195 = vmatpush1.bf16.msra.mxu0 0
        %4196 = vmatprep.subr.bf16.mxu0 0
        %4197 = vmatpush1.bf16.msra.mxu0 0
        %4198 = vmatprep.subr.bf16.mxu0 0
        %4199 = vmatpush1.bf16.msra.mxu0 0
        %4200 = vmatprep.subr.bf16.mxu0 0
        %4201 = vmatpush1.bf16.msra.mxu0 0
        %4202 = vmatprep.subr.bf16.mxu0 0
        %4203 = vmatpush1.bf16.msra.mxu0 0
        %4204 = vmatprep.subr.bf16.mxu0 0
        %4205 = vmatpush1.bf16.msra.mxu0 0
        %4206 = vmatprep.subr.bf16.mxu0 0
        %4207 = vmatpush1.bf16.msra.mxu0 %v4190
        %4208 = vmatprep.subr.bf16.mxu0 0
        %4209 = vmatpush2.bf16.msra.mxu0 0
        %4210 = vmatprep.subr.bf16.mxu0 0
        %4211 = vmatpush2.bf16.msra.mxu0 0
        %4212 = vmatprep.subr.bf16.mxu0 0
        %4213 = vmatpush2.bf16.msra.mxu0 0
        %4214 = vmatprep.subr.bf16.mxu0 0
        %4215 = vmatpush2.bf16.msra.mxu0 0
        %4216 = vmatprep.subr.bf16.mxu0 0
        %4217 = vmatpush2.bf16.msra.mxu0 0
        %4218 = vmatprep.subr.bf16.mxu0 0
        %4219 = vmatpush2.bf16.msra.mxu0 0
        %4220 = vmatprep.subr.bf16.mxu0 0
        %4221 = vmatpush2.bf16.msra.mxu0 0
        %4222 = vmatprep.subr.bf16.mxu0 0
        %4223 = vmatpush2.bf16.msra.mxu0 0
        %4224 = vmatprep.mubr.bf16.mxu0 0
        %4225 = vmatmul.mubr.bf16.gmra.mxu0 %v4187
        %v4226 = vpop.f32.mrf.mxu0
        %v4227 = vadd.f32 0.0, %v4226
        %v4228 = vpop.f32.mrf.mxu0
        %v4229 = vpop.f32.mrf.mxu0
        %v4230 = vpop.f32.mrf.mxu0
        %4231 = vdwg.mxu0
        %v4232 = vadd.f32 %v4183, %v4227
        %s4233 = scalar_lea.vmem %s5, 4
        %v4234 = vld [vmem:[%s4233] sm:$0xf]
        %v4235 = vshrl.u32 %v4184, 16
        %v4238 = vsel %vm3154, %v4235, 0
        %v4241 = vsel %vm3279, %v4234, 0
        %4243 = vmatprep.subr.bf16.mxu0 0
        %4244 = vmatpush1.bf16.msra.mxu0 0
        %4245 = vmatprep.subr.bf16.mxu0 0
        %4246 = vmatpush1.bf16.msra.mxu0 0
        %4247 = vmatprep.subr.bf16.mxu0 0
        %4248 = vmatpush1.bf16.msra.mxu0 0
        %4249 = vmatprep.subr.bf16.mxu0 0
        %4250 = vmatpush1.bf16.msra.mxu0 0
        %4251 = vmatprep.subr.bf16.mxu0 0
        %4252 = vmatpush1.bf16.msra.mxu0 0
        %4253 = vmatprep.subr.bf16.mxu0 0
        %4254 = vmatpush1.bf16.msra.mxu0 0
        %4255 = vmatprep.subr.bf16.mxu0 0
        %4256 = vmatpush1.bf16.msra.mxu0 0
        %4257 = vmatprep.subr.bf16.mxu0 0
        %4258 = vmatpush1.bf16.msra.mxu0 %v4241
        %4259 = vmatprep.subr.bf16.mxu0 0
        %4260 = vmatpush2.bf16.msra.mxu0 0
        %4261 = vmatprep.subr.bf16.mxu0 0
        %4262 = vmatpush2.bf16.msra.mxu0 0
        %4263 = vmatprep.subr.bf16.mxu0 0
        %4264 = vmatpush2.bf16.msra.mxu0 0
        %4265 = vmatprep.subr.bf16.mxu0 0
        %4266 = vmatpush2.bf16.msra.mxu0 0
        %4267 = vmatprep.subr.bf16.mxu0 0
        %4268 = vmatpush2.bf16.msra.mxu0 0
        %4269 = vmatprep.subr.bf16.mxu0 0
        %4270 = vmatpush2.bf16.msra.mxu0 0
        %4271 = vmatprep.subr.bf16.mxu0 0
        %4272 = vmatpush2.bf16.msra.mxu0 0
        %4273 = vmatprep.subr.bf16.mxu0 0
        %4274 = vmatpush2.bf16.msra.mxu0 0
        %4275 = vmatprep.mubr.bf16.mxu0 0
        %4276 = vmatmul.mubr.bf16.gmra.mxu0 %v4238
        %v4277 = vpop.f32.mrf.mxu0
        %v4278 = vadd.f32 0.0, %v4277
        %v4279 = vpop.f32.mrf.mxu0
        %v4280 = vpop.f32.mrf.mxu0
        %v4281 = vpop.f32.mrf.mxu0
        %4282 = vdwg.mxu0
        %v4283 = vadd.f32 %v4232, %v4278
        %s4284 = scalar_lea.vmem %s5, 8
        %v4285 = vld [vmem:[%s4284] sm:$0xf]
        %v4287 = vrot.slane %v4184, 1
        %v4289 = vsel %vm3154, %v4287, 0
        %v4292 = vsel %vm3279, %v4285, 0
        %4294 = vmatprep.subr.bf16.mxu0 0
        %4295 = vmatpush1.bf16.msra.mxu0 0
        %4296 = vmatprep.subr.bf16.mxu0 0
        %4297 = vmatpush1.bf16.msra.mxu0 0
        %4298 = vmatprep.subr.bf16.mxu0 0
        %4299 = vmatpush1.bf16.msra.mxu0 0
        %4300 = vmatprep.subr.bf16.mxu0 0
        %4301 = vmatpush1.bf16.msra.mxu0 0
        %4302 = vmatprep.subr.bf16.mxu0 0
        %4303 = vmatpush1.bf16.msra.mxu0 0
        %4304 = vmatprep.subr.bf16.mxu0 0
        %4305 = vmatpush1.bf16.msra.mxu0 0
        %4306 = vmatprep.subr.bf16.mxu0 0
        %4307 = vmatpush1.bf16.msra.mxu0 0
        %4308 = vmatprep.subr.bf16.mxu0 0
        %4309 = vmatpush1.bf16.msra.mxu0 %v4292
        %4310 = vmatprep.subr.bf16.mxu0 0
        %4311 = vmatpush2.bf16.msra.mxu0 0
        %4312 = vmatprep.subr.bf16.mxu0 0
        %4313 = vmatpush2.bf16.msra.mxu0 0
        %4314 = vmatprep.subr.bf16.mxu0 0
        %4315 = vmatpush2.bf16.msra.mxu0 0
        %4316 = vmatprep.subr.bf16.mxu0 0
        %4317 = vmatpush2.bf16.msra.mxu0 0
        %4318 = vmatprep.subr.bf16.mxu0 0
        %4319 = vmatpush2.bf16.msra.mxu0 0
        %4320 = vmatprep.subr.bf16.mxu0 0
        %4321 = vmatpush2.bf16.msra.mxu0 0
        %4322 = vmatprep.subr.bf16.mxu0 0
        %4323 = vmatpush2.bf16.msra.mxu0 0
        %4324 = vmatprep.subr.bf16.mxu0 0
        %4325 = vmatpush2.bf16.msra.mxu0 0
        %4326 = vmatprep.mubr.bf16.mxu0 0
        %4327 = vmatmul.mubr.bf16.gmra.mxu0 %v4289
        %v4328 = vpop.f32.mrf.mxu0
        %v4329 = vadd.f32 0.0, %v4328
        %v4330 = vpop.f32.mrf.mxu0
        %v4331 = vpop.f32.mrf.mxu0
        %v4332 = vpop.f32.mrf.mxu0
        %4333 = vdwg.mxu0
        %v4334 = vadd.f32 %v4283, %v4329
        %s4335 = scalar_lea.vmem %s5, 12
        %v4336 = vld [vmem:[%s4335] sm:$0xf]
        %v4337 = vrot.slane %v4235, 1
        %v4339 = vsel %vm3154, %v4337, 0
        %v4342 = vsel %vm3279, %v4336, 0
        %4344 = vmatprep.subr.bf16.mxu0 0
        %4345 = vmatpush1.bf16.msra.mxu0 0
        %4346 = vmatprep.subr.bf16.mxu0 0
        %4347 = vmatpush1.bf16.msra.mxu0 0
        %4348 = vmatprep.subr.bf16.mxu0 0
        %4349 = vmatpush1.bf16.msra.mxu0 0
        %4350 = vmatprep.subr.bf16.mxu0 0
        %4351 = vmatpush1.bf16.msra.mxu0 0
        %4352 = vmatprep.subr.bf16.mxu0 0
        %4353 = vmatpush1.bf16.msra.mxu0 0
        %4354 = vmatprep.subr.bf16.mxu0 0
        %4355 = vmatpush1.bf16.msra.mxu0 0
        %4356 = vmatprep.subr.bf16.mxu0 0
        %4357 = vmatpush1.bf16.msra.mxu0 0
        %4358 = vmatprep.subr.bf16.mxu0 0
        %4359 = vmatpush1.bf16.msra.mxu0 %v4342
        %4360 = vmatprep.subr.bf16.mxu0 0
        %4361 = vmatpush2.bf16.msra.mxu0 0
        %4362 = vmatprep.subr.bf16.mxu0 0
        %4363 = vmatpush2.bf16.msra.mxu0 0
        %4364 = vmatprep.subr.bf16.mxu0 0
        %4365 = vmatpush2.bf16.msra.mxu0 0
        %4366 = vmatprep.subr.bf16.mxu0 0
        %4367 = vmatpush2.bf16.msra.mxu0 0
        %4368 = vmatprep.subr.bf16.mxu0 0
        %4369 = vmatpush2.bf16.msra.mxu0 0
        %4370 = vmatprep.subr.bf16.mxu0 0
        %4371 = vmatpush2.bf16.msra.mxu0 0
        %4372 = vmatprep.subr.bf16.mxu0 0
        %4373 = vmatpush2.bf16.msra.mxu0 0
        %4374 = vmatprep.subr.bf16.mxu0 0
        %4375 = vmatpush2.bf16.msra.mxu0 0
        %4376 = vmatprep.mubr.bf16.mxu0 0
        %4377 = vmatmul.mubr.bf16.gmra.mxu0 %v4339
        %v4378 = vpop.f32.mrf.mxu0
        %v4379 = vadd.f32 0.0, %v4378
        %v4380 = vpop.f32.mrf.mxu0
        %v4381 = vpop.f32.mrf.mxu0
        %v4382 = vpop.f32.mrf.mxu0
        %4383 = vdwg.mxu0
        %v4384 = vadd.f32 %v4334, %v4379
        %s4385 = scalar_lea.vmem %s5, 16
        %v4386 = vld [vmem:[%s4385] sm:$0xf]
        %v4387 = vrot.slane %v4184, 2
        %v4389 = vsel %vm3154, %v4387, 0
        %v4392 = vsel %vm3279, %v4386, 0
        %4394 = vmatprep.subr.bf16.mxu0 0
        %4395 = vmatpush1.bf16.msra.mxu0 0
        %4396 = vmatprep.subr.bf16.mxu0 0
        %4397 = vmatpush1.bf16.msra.mxu0 0
        %4398 = vmatprep.subr.bf16.mxu0 0
        %4399 = vmatpush1.bf16.msra.mxu0 0
        %4400 = vmatprep.subr.bf16.mxu0 0
        %4401 = vmatpush1.bf16.msra.mxu0 0
        %4402 = vmatprep.subr.bf16.mxu0 0
        %4403 = vmatpush1.bf16.msra.mxu0 0
        %4404 = vmatprep.subr.bf16.mxu0 0
        %4405 = vmatpush1.bf16.msra.mxu0 0
        %4406 = vmatprep.subr.bf16.mxu0 0
        %4407 = vmatpush1.bf16.msra.mxu0 0
        %4408 = vmatprep.subr.bf16.mxu0 0
        %4409 = vmatpush1.bf16.msra.mxu0 %v4392
        %4410 = vmatprep.subr.bf16.mxu0 0
        %4411 = vmatpush2.bf16.msra.mxu0 0
        %4412 = vmatprep.subr.bf16.mxu0 0
        %4413 = vmatpush2.bf16.msra.mxu0 0
        %4414 = vmatprep.subr.bf16.mxu0 0
        %4415 = vmatpush2.bf16.msra.mxu0 0
        %4416 = vmatprep.subr.bf16.mxu0 0
        %4417 = vmatpush2.bf16.msra.mxu0 0
        %4418 = vmatprep.subr.bf16.mxu0 0
        %4419 = vmatpush2.bf16.msra.mxu0 0
        %4420 = vmatprep.subr.bf16.mxu0 0
        %4421 = vmatpush2.bf16.msra.mxu0 0
        %4422 = vmatprep.subr.bf16.mxu0 0
        %4423 = vmatpush2.bf16.msra.mxu0 0
        %4424 = vmatprep.subr.bf16.mxu0 0
        %4425 = vmatpush2.bf16.msra.mxu0 0
        %4426 = vmatprep.mubr.bf16.mxu0 0
        %4427 = vmatmul.mubr.bf16.gmra.mxu0 %v4389
        %v4428 = vpop.f32.mrf.mxu0
        %v4429 = vadd.f32 0.0, %v4428
        %v4430 = vpop.f32.mrf.mxu0
        %v4431 = vpop.f32.mrf.mxu0
        %v4432 = vpop.f32.mrf.mxu0
        %4433 = vdwg.mxu0
        %v4434 = vadd.f32 %v4384, %v4429
        %s4435 = scalar_lea.vmem %s5, 20
        %v4436 = vld [vmem:[%s4435] sm:$0xf]
        %v4437 = vrot.slane %v4235, 2
        %v4439 = vsel %vm3154, %v4437, 0
        %v4442 = vsel %vm3279, %v4436, 0
        %4444 = vmatprep.subr.bf16.mxu0 0
        %4445 = vmatpush1.bf16.msra.mxu0 0
        %4446 = vmatprep.subr.bf16.mxu0 0
        %4447 = vmatpush1.bf16.msra.mxu0 0
        %4448 = vmatprep.subr.bf16.mxu0 0
        %4449 = vmatpush1.bf16.msra.mxu0 0
        %4450 = vmatprep.subr.bf16.mxu0 0
        %4451 = vmatpush1.bf16.msra.mxu0 0
        %4452 = vmatprep.subr.bf16.mxu0 0
        %4453 = vmatpush1.bf16.msra.mxu0 0
        %4454 = vmatprep.subr.bf16.mxu0 0
        %4455 = vmatpush1.bf16.msra.mxu0 0
        %4456 = vmatprep.subr.bf16.mxu0 0
        %4457 = vmatpush1.bf16.msra.mxu0 0
        %4458 = vmatprep.subr.bf16.mxu0 0
        %4459 = vmatpush1.bf16.msra.mxu0 %v4442
        %4460 = vmatprep.subr.bf16.mxu0 0
        %4461 = vmatpush2.bf16.msra.mxu0 0
        %4462 = vmatprep.subr.bf16.mxu0 0
        %4463 = vmatpush2.bf16.msra.mxu0 0
        %4464 = vmatprep.subr.bf16.mxu0 0
        %4465 = vmatpush2.bf16.msra.mxu0 0
        %4466 = vmatprep.subr.bf16.mxu0 0
        %4467 = vmatpush2.bf16.msra.mxu0 0
        %4468 = vmatprep.subr.bf16.mxu0 0
        %4469 = vmatpush2.bf16.msra.mxu0 0
        %4470 = vmatprep.subr.bf16.mxu0 0
        %4471 = vmatpush2.bf16.msra.mxu0 0
        %4472 = vmatprep.subr.bf16.mxu0 0
        %4473 = vmatpush2.bf16.msra.mxu0 0
        %4474 = vmatprep.subr.bf16.mxu0 0
        %4475 = vmatpush2.bf16.msra.mxu0 0
        %4476 = vmatprep.mubr.bf16.mxu0 0
        %4477 = vmatmul.mubr.bf16.gmra.mxu0 %v4439
        %v4478 = vpop.f32.mrf.mxu0
        %v4479 = vadd.f32 0.0, %v4478
        %v4480 = vpop.f32.mrf.mxu0
        %v4481 = vpop.f32.mrf.mxu0
        %v4482 = vpop.f32.mrf.mxu0
        %4483 = vdwg.mxu0
        %v4484 = vadd.f32 %v4434, %v4479
        %s4485 = scalar_lea.vmem %s5, 24
        %v4486 = vld [vmem:[%s4485] sm:$0xf]
        %v4487 = vrot.slane %v4184, 3
        %v4489 = vsel %vm3154, %v4487, 0
        %v4492 = vsel %vm3279, %v4486, 0
        %4494 = vmatprep.subr.bf16.mxu0 0
        %4495 = vmatpush1.bf16.msra.mxu0 0
        %4496 = vmatprep.subr.bf16.mxu0 0
        %4497 = vmatpush1.bf16.msra.mxu0 0
        %4498 = vmatprep.subr.bf16.mxu0 0
        %4499 = vmatpush1.bf16.msra.mxu0 0
        %4500 = vmatprep.subr.bf16.mxu0 0
        %4501 = vmatpush1.bf16.msra.mxu0 0
        %4502 = vmatprep.subr.bf16.mxu0 0
        %4503 = vmatpush1.bf16.msra.mxu0 0
        %4504 = vmatprep.subr.bf16.mxu0 0
        %4505 = vmatpush1.bf16.msra.mxu0 0
        %4506 = vmatprep.subr.bf16.mxu0 0
        %4507 = vmatpush1.bf16.msra.mxu0 0
        %4508 = vmatprep.subr.bf16.mxu0 0
        %4509 = vmatpush1.bf16.msra.mxu0 %v4492
        %4510 = vmatprep.subr.bf16.mxu0 0
        %4511 = vmatpush2.bf16.msra.mxu0 0
        %4512 = vmatprep.subr.bf16.mxu0 0
        %4513 = vmatpush2.bf16.msra.mxu0 0
        %4514 = vmatprep.subr.bf16.mxu0 0
        %4515 = vmatpush2.bf16.msra.mxu0 0
        %4516 = vmatprep.subr.bf16.mxu0 0
        %4517 = vmatpush2.bf16.msra.mxu0 0
        %4518 = vmatprep.subr.bf16.mxu0 0
        %4519 = vmatpush2.bf16.msra.mxu0 0
        %4520 = vmatprep.subr.bf16.mxu0 0
        %4521 = vmatpush2.bf16.msra.mxu0 0
        %4522 = vmatprep.subr.bf16.mxu0 0
        %4523 = vmatpush2.bf16.msra.mxu0 0
        %4524 = vmatprep.subr.bf16.mxu0 0
        %4525 = vmatpush2.bf16.msra.mxu0 0
        %4526 = vmatprep.mubr.bf16.mxu0 0
        %4527 = vmatmul.mubr.bf16.gmra.mxu0 %v4489
        %v4528 = vpop.f32.mrf.mxu0
        %v4529 = vadd.f32 0.0, %v4528
        %v4530 = vpop.f32.mrf.mxu0
        %v4531 = vpop.f32.mrf.mxu0
        %v4532 = vpop.f32.mrf.mxu0
        %4533 = vdwg.mxu0
        %v4534 = vadd.f32 %v4484, %v4529
        %s4535 = scalar_lea.vmem %s5, 28
        %v4536 = vld [vmem:[%s4535] sm:$0xf]
        %v4537 = vrot.slane %v4235, 3
        %v4539 = vsel %vm3154, %v4537, 0
        %v4542 = vsel %vm3279, %v4536, 0
        %4544 = vmatprep.subr.bf16.mxu0 0
        %4545 = vmatpush1.bf16.msra.mxu0 0
        %4546 = vmatprep.subr.bf16.mxu0 0
        %4547 = vmatpush1.bf16.msra.mxu0 0
        %4548 = vmatprep.subr.bf16.mxu0 0
        %4549 = vmatpush1.bf16.msra.mxu0 0
        %4550 = vmatprep.subr.bf16.mxu0 0
        %4551 = vmatpush1.bf16.msra.mxu0 0
        %4552 = vmatprep.subr.bf16.mxu0 0
        %4553 = vmatpush1.bf16.msra.mxu0 0
        %4554 = vmatprep.subr.bf16.mxu0 0
        %4555 = vmatpush1.bf16.msra.mxu0 0
        %4556 = vmatprep.subr.bf16.mxu0 0
        %4557 = vmatpush1.bf16.msra.mxu0 0
        %4558 = vmatprep.subr.bf16.mxu0 0
        %4559 = vmatpush1.bf16.msra.mxu0 %v4542
        %4560 = vmatprep.subr.bf16.mxu0 0
        %4561 = vmatpush2.bf16.msra.mxu0 0
        %4562 = vmatprep.subr.bf16.mxu0 0
        %4563 = vmatpush2.bf16.msra.mxu0 0
        %4564 = vmatprep.subr.bf16.mxu0 0
        %4565 = vmatpush2.bf16.msra.mxu0 0
        %4566 = vmatprep.subr.bf16.mxu0 0
        %4567 = vmatpush2.bf16.msra.mxu0 0
        %4568 = vmatprep.subr.bf16.mxu0 0
        %4569 = vmatpush2.bf16.msra.mxu0 0
        %4570 = vmatprep.subr.bf16.mxu0 0
        %4571 = vmatpush2.bf16.msra.mxu0 0
        %4572 = vmatprep.subr.bf16.mxu0 0
        %4573 = vmatpush2.bf16.msra.mxu0 0
        %4574 = vmatprep.subr.bf16.mxu0 0
        %4575 = vmatpush2.bf16.msra.mxu0 0
        %4576 = vmatprep.mubr.bf16.mxu0 0
        %4577 = vmatmul.mubr.bf16.gmra.mxu0 %v4539
        %v4578 = vpop.f32.mrf.mxu0
        %v4579 = vadd.f32 0.0, %v4578
        %v4580 = vpop.f32.mrf.mxu0
        %v4581 = vpop.f32.mrf.mxu0
        %v4582 = vpop.f32.mrf.mxu0
        %4583 = vdwg.mxu0
        %v4584 = vadd.f32 %v4534, %v4579
        %v4585 = vpack.c.bf16 %v4182, %v4182
        %s4586 = scalar_lea.vmem %s5, 32
        %v4587 = vld [vmem:[%s4586] sm:$0xf]
        %v4589 = vsel %vm3154, %v4585, 0
        %v4592 = vsel %vm3279, %v4587, 0
        %4594 = vmatprep.subr.bf16.mxu0 0
        %4595 = vmatpush1.bf16.msra.mxu0 0
        %4596 = vmatprep.subr.bf16.mxu0 0
        %4597 = vmatpush1.bf16.msra.mxu0 0
        %4598 = vmatprep.subr.bf16.mxu0 0
        %4599 = vmatpush1.bf16.msra.mxu0 0
        %4600 = vmatprep.subr.bf16.mxu0 0
        %4601 = vmatpush1.bf16.msra.mxu0 0
        %4602 = vmatprep.subr.bf16.mxu0 0
        %4603 = vmatpush1.bf16.msra.mxu0 0
        %4604 = vmatprep.subr.bf16.mxu0 0
        %4605 = vmatpush1.bf16.msra.mxu0 0
        %4606 = vmatprep.subr.bf16.mxu0 0
        %4607 = vmatpush1.bf16.msra.mxu0 0
        %4608 = vmatprep.subr.bf16.mxu0 0
        %4609 = vmatpush1.bf16.msra.mxu0 %v4592
        %4610 = vmatprep.subr.bf16.mxu0 0
        %4611 = vmatpush2.bf16.msra.mxu0 0
        %4612 = vmatprep.subr.bf16.mxu0 0
        %4613 = vmatpush2.bf16.msra.mxu0 0
        %4614 = vmatprep.subr.bf16.mxu0 0
        %4615 = vmatpush2.bf16.msra.mxu0 0
        %4616 = vmatprep.subr.bf16.mxu0 0
        %4617 = vmatpush2.bf16.msra.mxu0 0
        %4618 = vmatprep.subr.bf16.mxu0 0
        %4619 = vmatpush2.bf16.msra.mxu0 0
        %4620 = vmatprep.subr.bf16.mxu0 0
        %4621 = vmatpush2.bf16.msra.mxu0 0
        %4622 = vmatprep.subr.bf16.mxu0 0
        %4623 = vmatpush2.bf16.msra.mxu0 0
        %4624 = vmatprep.subr.bf16.mxu0 0
        %4625 = vmatpush2.bf16.msra.mxu0 0
        %4626 = vmatprep.mubr.bf16.mxu0 0
        %4627 = vmatmul.mubr.bf16.gmra.mxu0 %v4589
        %v4628 = vpop.f32.mrf.mxu0
        %v4629 = vadd.f32 0.0, %v4628
        %v4630 = vpop.f32.mrf.mxu0
        %v4631 = vpop.f32.mrf.mxu0
        %v4632 = vpop.f32.mrf.mxu0
        %4633 = vdwg.mxu0
        %v4634 = vadd.f32 %v4584, %v4629
        %s4635 = scalar_lea.vmem %s5, 36
        %v4636 = vld [vmem:[%s4635] sm:$0xf]
        %v4637 = vshrl.u32 %v4585, 16
        %v4640 = vsel %vm3154, %v4637, 0
        %v4643 = vsel %vm3279, %v4636, 0
        %4645 = vmatprep.subr.bf16.mxu0 0
        %4646 = vmatpush1.bf16.msra.mxu0 0
        %4647 = vmatprep.subr.bf16.mxu0 0
        %4648 = vmatpush1.bf16.msra.mxu0 0
        %4649 = vmatprep.subr.bf16.mxu0 0
        %4650 = vmatpush1.bf16.msra.mxu0 0
        %4651 = vmatprep.subr.bf16.mxu0 0
        %4652 = vmatpush1.bf16.msra.mxu0 0
        %4653 = vmatprep.subr.bf16.mxu0 0
        %4654 = vmatpush1.bf16.msra.mxu0 0
        %4655 = vmatprep.subr.bf16.mxu0 0
        %4656 = vmatpush1.bf16.msra.mxu0 0
        %4657 = vmatprep.subr.bf16.mxu0 0
        %4658 = vmatpush1.bf16.msra.mxu0 0
        %4659 = vmatprep.subr.bf16.mxu0 0
        %4660 = vmatpush1.bf16.msra.mxu0 %v4643
        %4661 = vmatprep.subr.bf16.mxu0 0
        %4662 = vmatpush2.bf16.msra.mxu0 0
        %4663 = vmatprep.subr.bf16.mxu0 0
        %4664 = vmatpush2.bf16.msra.mxu0 0
        %4665 = vmatprep.subr.bf16.mxu0 0
        %4666 = vmatpush2.bf16.msra.mxu0 0
        %4667 = vmatprep.subr.bf16.mxu0 0
        %4668 = vmatpush2.bf16.msra.mxu0 0
        %4669 = vmatprep.subr.bf16.mxu0 0
        %4670 = vmatpush2.bf16.msra.mxu0 0
        %4671 = vmatprep.subr.bf16.mxu0 0
        %4672 = vmatpush2.bf16.msra.mxu0 0
        %4673 = vmatprep.subr.bf16.mxu0 0
        %4674 = vmatpush2.bf16.msra.mxu0 0
        %4675 = vmatprep.subr.bf16.mxu0 0
        %4676 = vmatpush2.bf16.msra.mxu0 0
        %4677 = vmatprep.mubr.bf16.mxu0 0
        %4678 = vmatmul.mubr.bf16.gmra.mxu0 %v4640
        %v4679 = vpop.f32.mrf.mxu0
        %v4680 = vadd.f32 0.0, %v4679
        %v4681 = vpop.f32.mrf.mxu0
        %v4682 = vpop.f32.mrf.mxu0
        %v4683 = vpop.f32.mrf.mxu0
        %4684 = vdwg.mxu0
        %v4685 = vadd.f32 %v4634, %v4680
        %s4686 = scalar_lea.vmem %s5, 40
        %v4687 = vld [vmem:[%s4686] sm:$0xf]
        %v4689 = vrot.slane %v4585, 1
        %v4691 = vsel %vm3154, %v4689, 0
        %v4694 = vsel %vm3279, %v4687, 0
        %4696 = vmatprep.subr.bf16.mxu0 0
        %4697 = vmatpush1.bf16.msra.mxu0 0
        %4698 = vmatprep.subr.bf16.mxu0 0
        %4699 = vmatpush1.bf16.msra.mxu0 0
        %4700 = vmatprep.subr.bf16.mxu0 0
        %4701 = vmatpush1.bf16.msra.mxu0 0
        %4702 = vmatprep.subr.bf16.mxu0 0
        %4703 = vmatpush1.bf16.msra.mxu0 0
        %4704 = vmatprep.subr.bf16.mxu0 0
        %4705 = vmatpush1.bf16.msra.mxu0 0
        %4706 = vmatprep.subr.bf16.mxu0 0
        %4707 = vmatpush1.bf16.msra.mxu0 0
        %4708 = vmatprep.subr.bf16.mxu0 0
        %4709 = vmatpush1.bf16.msra.mxu0 0
        %4710 = vmatprep.subr.bf16.mxu0 0
        %4711 = vmatpush1.bf16.msra.mxu0 %v4694
        %4712 = vmatprep.subr.bf16.mxu0 0
        %4713 = vmatpush2.bf16.msra.mxu0 0
        %4714 = vmatprep.subr.bf16.mxu0 0
        %4715 = vmatpush2.bf16.msra.mxu0 0
        %4716 = vmatprep.subr.bf16.mxu0 0
        %4717 = vmatpush2.bf16.msra.mxu0 0
        %4718 = vmatprep.subr.bf16.mxu0 0
        %4719 = vmatpush2.bf16.msra.mxu0 0
        %4720 = vmatprep.subr.bf16.mxu0 0
        %4721 = vmatpush2.bf16.msra.mxu0 0
        %4722 = vmatprep.subr.bf16.mxu0 0
        %4723 = vmatpush2.bf16.msra.mxu0 0
        %4724 = vmatprep.subr.bf16.mxu0 0
        %4725 = vmatpush2.bf16.msra.mxu0 0
        %4726 = vmatprep.subr.bf16.mxu0 0
        %4727 = vmatpush2.bf16.msra.mxu0 0
        %4728 = vmatprep.mubr.bf16.mxu0 0
        %4729 = vmatmul.mubr.bf16.gmra.mxu0 %v4691
        %v4730 = vpop.f32.mrf.mxu0
        %v4731 = vadd.f32 0.0, %v4730
        %v4732 = vpop.f32.mrf.mxu0
        %v4733 = vpop.f32.mrf.mxu0
        %v4734 = vpop.f32.mrf.mxu0
        %4735 = vdwg.mxu0
        %v4736 = vadd.f32 %v4685, %v4731
        %s4737 = scalar_lea.vmem %s5, 44
        %v4738 = vld [vmem:[%s4737] sm:$0xf]
        %v4739 = vrot.slane %v4637, 1
        %v4741 = vsel %vm3154, %v4739, 0
        %v4744 = vsel %vm3279, %v4738, 0
        %4746 = vmatprep.subr.bf16.mxu0 0
        %4747 = vmatpush1.bf16.msra.mxu0 0
        %4748 = vmatprep.subr.bf16.mxu0 0
        %4749 = vmatpush1.bf16.msra.mxu0 0
        %4750 = vmatprep.subr.bf16.mxu0 0
        %4751 = vmatpush1.bf16.msra.mxu0 0
        %4752 = vmatprep.subr.bf16.mxu0 0
        %4753 = vmatpush1.bf16.msra.mxu0 0
        %4754 = vmatprep.subr.bf16.mxu0 0
        %4755 = vmatpush1.bf16.msra.mxu0 0
        %4756 = vmatprep.subr.bf16.mxu0 0
        %4757 = vmatpush1.bf16.msra.mxu0 0
        %4758 = vmatprep.subr.bf16.mxu0 0
        %4759 = vmatpush1.bf16.msra.mxu0 0
        %4760 = vmatprep.subr.bf16.mxu0 0
        %4761 = vmatpush1.bf16.msra.mxu0 %v4744
        %4762 = vmatprep.subr.bf16.mxu0 0
        %4763 = vmatpush2.bf16.msra.mxu0 0
        %4764 = vmatprep.subr.bf16.mxu0 0
        %4765 = vmatpush2.bf16.msra.mxu0 0
        %4766 = vmatprep.subr.bf16.mxu0 0
        %4767 = vmatpush2.bf16.msra.mxu0 0
        %4768 = vmatprep.subr.bf16.mxu0 0
        %4769 = vmatpush2.bf16.msra.mxu0 0
        %4770 = vmatprep.subr.bf16.mxu0 0
        %4771 = vmatpush2.bf16.msra.mxu0 0
        %4772 = vmatprep.subr.bf16.mxu0 0
        %4773 = vmatpush2.bf16.msra.mxu0 0
        %4774 = vmatprep.subr.bf16.mxu0 0
        %4775 = vmatpush2.bf16.msra.mxu0 0
        %4776 = vmatprep.subr.bf16.mxu0 0
        %4777 = vmatpush2.bf16.msra.mxu0 0
        %4778 = vmatprep.mubr.bf16.mxu0 0
        %4779 = vmatmul.mubr.bf16.gmra.mxu0 %v4741
        %v4780 = vpop.f32.mrf.mxu0
        %v4781 = vadd.f32 0.0, %v4780
        %v4782 = vpop.f32.mrf.mxu0
        %v4783 = vpop.f32.mrf.mxu0
        %v4784 = vpop.f32.mrf.mxu0
        %4785 = vdwg.mxu0
        %v4786 = vadd.f32 %v4736, %v4781
        %s4787 = scalar_lea.vmem %s5, 48
        %v4788 = vld [vmem:[%s4787] sm:$0xf]
        %v4789 = vrot.slane %v4585, 2
        %v4791 = vsel %vm3154, %v4789, 0
        %v4794 = vsel %vm3279, %v4788, 0
        %4796 = vmatprep.subr.bf16.mxu0 0
        %4797 = vmatpush1.bf16.msra.mxu0 0
        %4798 = vmatprep.subr.bf16.mxu0 0
        %4799 = vmatpush1.bf16.msra.mxu0 0
        %4800 = vmatprep.subr.bf16.mxu0 0
        %4801 = vmatpush1.bf16.msra.mxu0 0
        %4802 = vmatprep.subr.bf16.mxu0 0
        %4803 = vmatpush1.bf16.msra.mxu0 0
        %4804 = vmatprep.subr.bf16.mxu0 0
        %4805 = vmatpush1.bf16.msra.mxu0 0
        %4806 = vmatprep.subr.bf16.mxu0 0
        %4807 = vmatpush1.bf16.msra.mxu0 0
        %4808 = vmatprep.subr.bf16.mxu0 0
        %4809 = vmatpush1.bf16.msra.mxu0 0
        %4810 = vmatprep.subr.bf16.mxu0 0
        %4811 = vmatpush1.bf16.msra.mxu0 %v4794
        %4812 = vmatprep.subr.bf16.mxu0 0
        %4813 = vmatpush2.bf16.msra.mxu0 0
        %4814 = vmatprep.subr.bf16.mxu0 0
        %4815 = vmatpush2.bf16.msra.mxu0 0
        %4816 = vmatprep.subr.bf16.mxu0 0
        %4817 = vmatpush2.bf16.msra.mxu0 0
        %4818 = vmatprep.subr.bf16.mxu0 0
        %4819 = vmatpush2.bf16.msra.mxu0 0
        %4820 = vmatprep.subr.bf16.mxu0 0
        %4821 = vmatpush2.bf16.msra.mxu0 0
        %4822 = vmatprep.subr.bf16.mxu0 0
        %4823 = vmatpush2.bf16.msra.mxu0 0
        %4824 = vmatprep.subr.bf16.mxu0 0
        %4825 = vmatpush2.bf16.msra.mxu0 0
        %4826 = vmatprep.subr.bf16.mxu0 0
        %4827 = vmatpush2.bf16.msra.mxu0 0
        %4828 = vmatprep.mubr.bf16.mxu0 0
        %4829 = vmatmul.mubr.bf16.gmra.mxu0 %v4791
        %v4830 = vpop.f32.mrf.mxu0
        %v4831 = vadd.f32 0.0, %v4830
        %v4832 = vpop.f32.mrf.mxu0
        %v4833 = vpop.f32.mrf.mxu0
        %v4834 = vpop.f32.mrf.mxu0
        %4835 = vdwg.mxu0
        %v4836 = vadd.f32 %v4786, %v4831
        %s4837 = scalar_lea.vmem %s5, 52
        %v4838 = vld [vmem:[%s4837] sm:$0xf]
        %v4839 = vrot.slane %v4637, 2
        %v4841 = vsel %vm3154, %v4839, 0
        %v4844 = vsel %vm3279, %v4838, 0
        %4846 = vmatprep.subr.bf16.mxu0 0
        %4847 = vmatpush1.bf16.msra.mxu0 0
        %4848 = vmatprep.subr.bf16.mxu0 0
        %4849 = vmatpush1.bf16.msra.mxu0 0
        %4850 = vmatprep.subr.bf16.mxu0 0
        %4851 = vmatpush1.bf16.msra.mxu0 0
        %4852 = vmatprep.subr.bf16.mxu0 0
        %4853 = vmatpush1.bf16.msra.mxu0 0
        %4854 = vmatprep.subr.bf16.mxu0 0
        %4855 = vmatpush1.bf16.msra.mxu0 0
        %4856 = vmatprep.subr.bf16.mxu0 0
        %4857 = vmatpush1.bf16.msra.mxu0 0
        %4858 = vmatprep.subr.bf16.mxu0 0
        %4859 = vmatpush1.bf16.msra.mxu0 0
        %4860 = vmatprep.subr.bf16.mxu0 0
        %4861 = vmatpush1.bf16.msra.mxu0 %v4844
        %4862 = vmatprep.subr.bf16.mxu0 0
        %4863 = vmatpush2.bf16.msra.mxu0 0
        %4864 = vmatprep.subr.bf16.mxu0 0
        %4865 = vmatpush2.bf16.msra.mxu0 0
        %4866 = vmatprep.subr.bf16.mxu0 0
        %4867 = vmatpush2.bf16.msra.mxu0 0
        %4868 = vmatprep.subr.bf16.mxu0 0
        %4869 = vmatpush2.bf16.msra.mxu0 0
        %4870 = vmatprep.subr.bf16.mxu0 0
        %4871 = vmatpush2.bf16.msra.mxu0 0
        %4872 = vmatprep.subr.bf16.mxu0 0
        %4873 = vmatpush2.bf16.msra.mxu0 0
        %4874 = vmatprep.subr.bf16.mxu0 0
        %4875 = vmatpush2.bf16.msra.mxu0 0
        %4876 = vmatprep.subr.bf16.mxu0 0
        %4877 = vmatpush2.bf16.msra.mxu0 0
        %4878 = vmatprep.mubr.bf16.mxu0 0
        %4879 = vmatmul.mubr.bf16.gmra.mxu0 %v4841
        %v4880 = vpop.f32.mrf.mxu0
        %v4881 = vadd.f32 0.0, %v4880
        %v4882 = vpop.f32.mrf.mxu0
        %v4883 = vpop.f32.mrf.mxu0
        %v4884 = vpop.f32.mrf.mxu0
        %4885 = vdwg.mxu0
        %v4886 = vadd.f32 %v4836, %v4881
        %s4887 = scalar_lea.vmem %s5, 56
        %v4888 = vld [vmem:[%s4887] sm:$0xf]
        %v4889 = vrot.slane %v4585, 3
        %v4891 = vsel %vm3154, %v4889, 0
        %v4894 = vsel %vm3279, %v4888, 0
        %4896 = vmatprep.subr.bf16.mxu0 0
        %4897 = vmatpush1.bf16.msra.mxu0 0
        %4898 = vmatprep.subr.bf16.mxu0 0
        %4899 = vmatpush1.bf16.msra.mxu0 0
        %4900 = vmatprep.subr.bf16.mxu0 0
        %4901 = vmatpush1.bf16.msra.mxu0 0
        %4902 = vmatprep.subr.bf16.mxu0 0
        %4903 = vmatpush1.bf16.msra.mxu0 0
        %4904 = vmatprep.subr.bf16.mxu0 0
        %4905 = vmatpush1.bf16.msra.mxu0 0
        %4906 = vmatprep.subr.bf16.mxu0 0
        %4907 = vmatpush1.bf16.msra.mxu0 0
        %4908 = vmatprep.subr.bf16.mxu0 0
        %4909 = vmatpush1.bf16.msra.mxu0 0
        %4910 = vmatprep.subr.bf16.mxu0 0
        %4911 = vmatpush1.bf16.msra.mxu0 %v4894
        %4912 = vmatprep.subr.bf16.mxu0 0
        %4913 = vmatpush2.bf16.msra.mxu0 0
        %4914 = vmatprep.subr.bf16.mxu0 0
        %4915 = vmatpush2.bf16.msra.mxu0 0
        %4916 = vmatprep.subr.bf16.mxu0 0
        %4917 = vmatpush2.bf16.msra.mxu0 0
        %4918 = vmatprep.subr.bf16.mxu0 0
        %4919 = vmatpush2.bf16.msra.mxu0 0
        %4920 = vmatprep.subr.bf16.mxu0 0
        %4921 = vmatpush2.bf16.msra.mxu0 0
        %4922 = vmatprep.subr.bf16.mxu0 0
        %4923 = vmatpush2.bf16.msra.mxu0 0
        %4924 = vmatprep.subr.bf16.mxu0 0
        %4925 = vmatpush2.bf16.msra.mxu0 0
        %4926 = vmatprep.subr.bf16.mxu0 0
        %4927 = vmatpush2.bf16.msra.mxu0 0
        %4928 = vmatprep.mubr.bf16.mxu0 0
        %4929 = vmatmul.mubr.bf16.gmra.mxu0 %v4891
        %v4930 = vpop.f32.mrf.mxu0
        %v4931 = vadd.f32 0.0, %v4930
        %v4932 = vpop.f32.mrf.mxu0
        %v4933 = vpop.f32.mrf.mxu0
        %v4934 = vpop.f32.mrf.mxu0
        %4935 = vdwg.mxu0
        %v4936 = vadd.f32 %v4886, %v4931
        %s4937 = scalar_lea.vmem %s5, 60
        %v4938 = vld [vmem:[%s4937] sm:$0xf]
        %v4939 = vrot.slane %v4637, 3
        %v4941 = vsel %vm3154, %v4939, 0
        %v4944 = vsel %vm3279, %v4938, 0
        %4946 = vmatprep.subr.bf16.mxu0 0
        %4947 = vmatpush1.bf16.msra.mxu0 0
        %4948 = vmatprep.subr.bf16.mxu0 0
        %4949 = vmatpush1.bf16.msra.mxu0 0
        %4950 = vmatprep.subr.bf16.mxu0 0
        %4951 = vmatpush1.bf16.msra.mxu0 0
        %4952 = vmatprep.subr.bf16.mxu0 0
        %4953 = vmatpush1.bf16.msra.mxu0 0
        %4954 = vmatprep.subr.bf16.mxu0 0
        %4955 = vmatpush1.bf16.msra.mxu0 0
        %4956 = vmatprep.subr.bf16.mxu0 0
        %4957 = vmatpush1.bf16.msra.mxu0 0
        %4958 = vmatprep.subr.bf16.mxu0 0
        %4959 = vmatpush1.bf16.msra.mxu0 0
        %4960 = vmatprep.subr.bf16.mxu0 0
        %4961 = vmatpush1.bf16.msra.mxu0 %v4944
        %4962 = vmatprep.subr.bf16.mxu0 0
        %4963 = vmatpush2.bf16.msra.mxu0 0
        %4964 = vmatprep.subr.bf16.mxu0 0
        %4965 = vmatpush2.bf16.msra.mxu0 0
        %4966 = vmatprep.subr.bf16.mxu0 0
        %4967 = vmatpush2.bf16.msra.mxu0 0
        %4968 = vmatprep.subr.bf16.mxu0 0
        %4969 = vmatpush2.bf16.msra.mxu0 0
        %4970 = vmatprep.subr.bf16.mxu0 0
        %4971 = vmatpush2.bf16.msra.mxu0 0
        %4972 = vmatprep.subr.bf16.mxu0 0
        %4973 = vmatpush2.bf16.msra.mxu0 0
        %4974 = vmatprep.subr.bf16.mxu0 0
        %4975 = vmatpush2.bf16.msra.mxu0 0
        %4976 = vmatprep.subr.bf16.mxu0 0
        %4977 = vmatpush2.bf16.msra.mxu0 0
        %4978 = vmatprep.mubr.bf16.mxu0 0
        %4979 = vmatmul.mubr.bf16.gmra.mxu0 %v4941
        %v4980 = vpop.f32.mrf.mxu0
        %v4981 = vadd.f32 0.0, %v4980
        %v4982 = vpop.f32.mrf.mxu0
        %v4983 = vpop.f32.mrf.mxu0
        %v4984 = vpop.f32.mrf.mxu0
        %4985 = vdwg.mxu0
        %v4986 = vadd.f32 %v4936, %v4981
        %v4987 = vmax.f32 %v4986, 0.0
        %v4988 = vpack.c.bf16 %v4987, %v4987
        %v4989 = vld [vmem:[%s7] sm:$0xf]
        %v4990 = vld [vmem:[%s7 + $0x4] sm:$0xf]
        %v4991 = vld [vmem:[%s7 + $0x8] sm:$0xf]
        %v4992 = vld [vmem:[%s7 + $0xc] sm:$0xf]
        %v4993 = vld [vmem:[%s7 + $0x10] sm:$0xf]
        %v4994 = vld [vmem:[%s7 + $0x14] sm:$0xf]
        %v4995 = vld [vmem:[%s7 + $0x18] sm:$0xf]
        %v4996 = vld [vmem:[%s7 + $0x1c] sm:$0xf]
        %v4997 = vld [vmem:[%s7 + $0x20] sm:$0xf]
        %v4998 = vld [vmem:[%s7 + $0x24] sm:$0xf]
        %v4999 = vld [vmem:[%s7 + $0x28] sm:$0xf]
        %v5000 = vld [vmem:[%s7 + $0x2c] sm:$0xf]
        %v5001 = vld [vmem:[%s7 + $0x30] sm:$0xf]
        %v5002 = vld [vmem:[%s7 + $0x34] sm:$0xf]
        %v5003 = vld [vmem:[%s7 + $0x38] sm:$0xf]
        %v5004 = vld [vmem:[%s7 + $0x3c] sm:$0xf]
        %v5005 = vld [vmem:[%s8] sm:$0x1]
        %v5022 = vunpack.c.l.b16 %v4989
        %v5023 = vunpack.c.l.b16 %v4990
        %v5024 = vunpack.c.l.b16 %v4991
        %v5025 = vunpack.c.l.b16 %v4992
        %v5026 = vunpack.c.l.b16 %v4993
        %v5027 = vunpack.c.l.b16 %v4994
        %v5028 = vunpack.c.l.b16 %v4995
        %v5029 = vunpack.c.l.b16 %v4996
        %v5030 = vunpack.c.l.b16 %v4997
        %v5031 = vunpack.c.l.b16 %v4998
        %v5032 = vunpack.c.l.b16 %v4999
        %v5033 = vunpack.c.l.b16 %v5000
        %v5034 = vunpack.c.l.b16 %v5001
        %v5035 = vunpack.c.l.b16 %v5002
        %v5036 = vunpack.c.l.b16 %v5003
        %v5037 = vunpack.c.l.b16 %v5004
        %v5038 = vpack.c.b16 %v5023, %v5022
        %v5039 = vpack.c.b16 %v5025, %v5024
        %v5040 = vpack.c.b16 %v5027, %v5026
        %v5041 = vpack.c.b16 %v5029, %v5028
        %v5042 = vpack.c.b16 %v5031, %v5030
        %v5043 = vpack.c.b16 %v5033, %v5032
        %v5044 = vpack.c.b16 %v5035, %v5034
        %v5045 = vpack.c.b16 %v5037, %v5036
        %5054 = vmatprep.subr.bf16.mxu0 0
        %5055 = vmatpush1.bf16.msra.mxu0 %v5045
        %5056 = vmatprep.subr.bf16.mxu0 0
        %5057 = vmatpush1.bf16.msra.mxu0 %v5044
        %5058 = vmatprep.subr.bf16.mxu0 0
        %5059 = vmatpush1.bf16.msra.mxu0 %v5043
        %5060 = vmatprep.subr.bf16.mxu0 0
        %5061 = vmatpush1.bf16.msra.mxu0 %v5042
        %5062 = vmatprep.subr.bf16.mxu0 0
        %5063 = vmatpush1.bf16.msra.mxu0 %v5041
        %5064 = vmatprep.subr.bf16.mxu0 0
        %5065 = vmatpush1.bf16.msra.mxu0 %v5040
        %5066 = vmatprep.subr.bf16.mxu0 0
        %5067 = vmatpush1.bf16.msra.mxu0 %v5039
        %5068 = vmatprep.subr.bf16.mxu0 0
        %5069 = vmatpush1.bf16.msra.mxu0 %v5038
        %5070 = vmatprep.subr.bf16.mxu0 0
        %5071 = vmatpush2.bf16.msra.mxu0 0
        %5072 = vmatprep.subr.bf16.mxu0 0
        %5073 = vmatpush2.bf16.msra.mxu0 0
        %5074 = vmatprep.subr.bf16.mxu0 0
        %5075 = vmatpush2.bf16.msra.mxu0 0
        %5076 = vmatprep.subr.bf16.mxu0 0
        %5077 = vmatpush2.bf16.msra.mxu0 0
        %5078 = vmatprep.subr.bf16.mxu0 0
        %5079 = vmatpush2.bf16.msra.mxu0 0
        %5080 = vmatprep.subr.bf16.mxu0 0
        %5081 = vmatpush2.bf16.msra.mxu0 0
        %5082 = vmatprep.subr.bf16.mxu0 0
        %5083 = vmatpush2.bf16.msra.mxu0 0
        %5084 = vmatprep.subr.bf16.mxu0 0
        %5085 = vmatpush2.bf16.msra.mxu0 0
        %5086 = vmatprep.mubr.bf16.mxu0 0
        %5087 = vmatmul.mubr.bf16.gmra.mxu0 %v4988
        %v5088 = vpop.f32.mrf.mxu0
        %v5089 = vadd.f32 %v5005, %v5088
        %v5090 = vpop.f32.mrf.mxu0
        %v5091 = vpop.f32.mrf.mxu0
        %v5092 = vpop.f32.mrf.mxu0
        %5093 = vdwg.mxu0
        %vm5094 = vcmask 73728
        %5095 = vst.msk [vmem:[%s324] sm:$0x1] %vm5094, %v5089
        %s5096 = sand.u32 %s225, 1
        %s5097 = scalar_lea.sflag [#allocation7], %s5096
        %s5098 = sand.u32 %s225, 1
        %s5099 = scalar_lea.vmem [#allocation6], %s5098
        // Predicated region
        $region57: #{cnn_forward.1} parent=55 // pred_check
          %p5100 = pneg %p235
        $region58: #{cnn_forward.1} parent=55 // pred_check_branch
          %5102 = sbr.rel (%p5100) target = $region60
        $region59: #{cnn_forward.1} parent=55 // pred_region
          %s5104 = ssub.s32 16, 16
          %5105 = vsyncadd %s5097, %s5104
          %s5106 = smul.addr %s23, 16
          %s5107 = scalar_lea.hbm %s9, %s5106
          %s5109 = sshll.u32 %s5099, 4
          %s5110 = int_to_ptr.vmem [resolvable:$true] %s5109
          %5112 = dma.vmem_to_hbm [thread:$0]  %s5110, 16, %s5107, %s5097
        $region60: #{cnn_forward.1} parent=55 // pred_fallthru
          _
      $region56: #{cnn_forward.1} parent=5 // pred_fallthru
        _
      %p5113 = scmp.le.s32.totalorder 2, %s18
      // Predicated region
      $region61: #{cnn_forward.1} parent=5 // pred_check
        %p5114 = pneg %p5113
      $region62: #{cnn_forward.1} parent=5 // pred_check_branch
        %5116 = sbr.rel (%p5114) target = $region64
      $region63: #{cnn_forward.1} parent=5 // pred_region
        %s5117 = ssub.s32 %s18, 2
        // Predicated region
        $region65: #{cnn_forward.1} parent=63 // pred_check
          %p5118 = pneg %p241
        $region66: #{cnn_forward.1} parent=63 // pred_check_branch
          %5120 = sbr.rel (%p5118) target = $region68
        $region67: #{cnn_forward.1} parent=63 // pred_region
          %s5121 = sand.u32 %s226, 1
          %s5122 = scalar_lea.sflag [#allocation7], %s5121
          %s5123 = sand.u32 %s226, 1
          %s5124 = scalar_lea.vmem [#allocation6], %s5123
          %5125 = dma.done %s5122, 16
        $region68: #{cnn_forward.1} parent=63 // pred_fallthru
          _
      $region64: #{cnn_forward.1} parent=5 // pred_fallthru
        _
    $region6: #{cnn_forward.1} parent=1 // loop_footer
      %s22 = sadd.s32 1, %s18
    $region7: #{cnn_forward.1} parent=1 // loop_footer_branch
      %17 = sbr.rel target = $region3
    $region8: #{cnn_forward.1} parent=1 // loop_exit
      _
    %5126 = vsyncpa [#allocation7], 1
    %s5127 = scalar_lea.sflag [#allocation7], 1
    %5128 = vsyncpa %s5127, 1

</llo_original>
